<compile_context>
chip_gen: v7x
topology: tpu7x:2x2x1
jax: 0.10.0
libtpu: 0.0.40
codegen_flags: <defaults>
</compile_context>

<pallas_src>
import numpy as np
import jax
import jax.numpy as jnp
from jax.experimental import pallas as pl
from jax.experimental.pallas import tpu as pltpu


# ----------------------------------------------------------------------------
# Fully fused Pallas kernel: conv1+pool+relu -> conv2+pool+relu -> fc1+relu -> fc2
# ----------------------------------------------------------------------------

def _fused_forward_kernel(p1_ref, w1_ref, b1_ref, w2_ref, b2_ref,
                          wf1_ref, bf1_ref, wf2_ref, bf2_ref,
                          o_ref, h1_scr, c2_scr):
    N = o_ref.shape[0]       # samples
    B = 2 * N                # towers folded into batch, tower-major: b = t*N + n

    # ---- stage 1: conv1 (4 pool-window im2col matmuls) + window max + bias + relu ----
    y0 = jnp.dot(p1_ref[0], w1_ref[...], preferred_element_type=jnp.float32)
    y1 = jnp.dot(p1_ref[1], w1_ref[...], preferred_element_type=jnp.float32)
    y2 = jnp.dot(p1_ref[2], w1_ref[...], preferred_element_type=jnp.float32)
    y3 = jnp.dot(p1_ref[3], w1_ref[...], preferred_element_type=jnp.float32)
    m = jnp.maximum(jnp.maximum(y0, y1), jnp.maximum(y2, y3))
    # bias is constant per pool window, so max(y) + b == max(y + b)
    h1_scr[...] = jnp.maximum(m + b1_ref[...], 0.0)       # rows = (i, j, b), lanes = 32 c

    # ---- stage 2: conv2 as in-VMEM shift-and-matmul over h1 ----
    # For conv-output row oi, tap (di, dj) needs h1 rows ((oi+di)*6 + dj + oj)*B + b for
    # oj in [0,4), b in [0,B): exactly one contiguous 4B-row slice per tap.
    for oi in range(4):
        acc = jnp.dot(h1_scr[pl.ds((oi * 6) * B, 4 * B), :], w2_ref[0],
                      preferred_element_type=jnp.float32)
        for t in range(1, 9):
            di, dj = t // 3, t % 3
            start = ((oi + di) * 6 + dj) * B
            acc = acc + jnp.dot(h1_scr[pl.ds(start, 4 * B), :], w2_ref[t],
                                preferred_element_type=jnp.float32)
        c2_scr[oi] = acc                                   # rows = (oj, b), lanes = 64 c

    # ---- stage-2 2x2 max-pool + bias + relu fused with the fc1 chunk contraction ----
    # torch flatten/cat order: feat column = tower*256 + c*4 + ph*2 + pw; wf1 is pre-split
    # into the matching 8 (tower, ph, pw) chunks of shape (64, 128) on the host.
    hid = None
    for tw in range(2):
        for ph in range(2):
            for pw in range(2):
                v00 = c2_scr[2 * ph,     pl.ds((2 * pw)     * B + tw * N, N), :]
                v01 = c2_scr[2 * ph,     pl.ds((2 * pw + 1) * B + tw * N, N), :]
                v10 = c2_scr[2 * ph + 1, pl.ds((2 * pw)     * B + tw * N, N), :]
                v11 = c2_scr[2 * ph + 1, pl.ds((2 * pw + 1) * B + tw * N, N), :]
                h2c = jnp.maximum(
                    jnp.maximum(jnp.maximum(v00, v01), jnp.maximum(v10, v11))
                    + b2_ref[...], 0.0)                    # (N, 64)
                d = jnp.dot(h2c, wf1_ref[tw * 4 + ph * 2 + pw],
                            preferred_element_type=jnp.float32)
                hid = d if hid is None else hid + d
    hid = jnp.maximum(hid + bf1_ref[...], 0.0)             # (N, 128) lane-dense; pad cols = 0

    # ---- fc2 (output width 1): VPU multiply + lane reduction, bias scalar from SMEM ----
    out = jnp.sum(hid * wf2_ref[...], axis=-1, keepdims=True) + bf2_ref[0]
    o_ref[...] = out.astype(o_ref.dtype)


# ----------------------------------------------------------------------------
# Host-side glue (jitted, fuses into one XLA op feeding the kernel)
# ----------------------------------------------------------------------------

def pool_im2col_s1(xb):
    """(B, 14, 14) -> (4, 36*B, 9) patches for conv1(3x3 valid) + 2x2/2 max-pool.

    Leading axis = pool-window position u*2+v; row = (i*6 + j)*B + b (spatial-major,
    batch-minor -> conv2 taps become contiguous row slices in-kernel); column =
    ki*3 + kj (torch conv1_w.reshape(32, 9) ordering)."""
    B = xb.shape[0]
    taps = jnp.stack([xb[:, ki:ki + 12, kj:kj + 12]
                      for ki in range(3) for kj in range(3)], axis=-1)   # (B,12,12,9)
    t = taps.reshape(B, 6, 2, 6, 2, 9)                                   # (b,i,u,j,v,k)
    t = jnp.transpose(t, (2, 4, 1, 3, 0, 5))                             # (u,v,i,j,b,k)
    return t.reshape(4, 36 * B, 9)


# ----------------------------------------------------------------------------
# Full forward pass (NetSharing1 semantics)
# ----------------------------------------------------------------------------

@jax.jit
def net_sharing1_forward(x, params):
    N = x.shape[0]
    B = 2 * N
    nbh = params["fc1_w"].shape[0]
    h_pad = ((nbh + 127) // 128) * 128                       # lane-dense hidden (100 -> 128)

    # conv weights in matmul layout
    w1_mat = params["conv1_w"].reshape(32, 9).T                           # (9, 32)
    cb1 = params["conv1_b"].reshape(1, 32)
    w2_taps = jnp.transpose(params["conv2_w"], (2, 3, 1, 0)).reshape(9, 32, 64)
    cb2 = params["conv2_b"].reshape(1, 64)

    # fc1 weight split into 8 (tower, ph, pw) chunks; hidden padded with zeros to 128.
    wf1 = params["fc1_w"].reshape(nbh, 2, 64, 2, 2)                       # (h, t, c, ph, pw)
    wf1 = jnp.transpose(wf1, (1, 3, 4, 2, 0))                             # (t, ph, pw, c, h)
    wf1 = jnp.pad(wf1, ((0, 0),) * 4 + ((0, h_pad - nbh),))
    wf1 = wf1.reshape(8, 64, h_pad)
    bf1 = jnp.pad(params["fc1_b"], (0, h_pad - nbh)).reshape(1, h_pad)    # pad = 0
    wf2 = jnp.pad(params["fc2_w"].reshape(1, nbh), ((0, 0), (0, h_pad - nbh)))  # pad = 0
    bf2 = params["fc2_b"].reshape(1)                                      # SMEM scalar

    # Fold the two weight-sharing towers into the batch (tower-major: b = t*N + n).
    xb = jnp.transpose(x, (1, 0, 2, 3)).reshape(B, 14, 14)
    p1 = pool_im2col_s1(xb)                                               # (4, 36B, 9)

    flops = (2 * 4 * (36 * B) * 9 * 32
             + 2 * 9 * (16 * B) * 32 * 64
             + 2 * 8 * N * 64 * h_pad
             + 2 * N * h_pad)
    bytes_acc = 4 * (p1.size + w1_mat.size + cb1.size + w2_taps.size + cb2.size
                     + wf1.size + bf1.size + wf2.size + bf2.size + N)

    vmem_specs = [pl.BlockSpec(memory_space=pltpu.MemorySpace.VMEM) for _ in range(8)]
    return pl.pallas_call(
        _fused_forward_kernel,
        out_shape=jax.ShapeDtypeStruct((N, 1), jnp.float32),
        in_specs=vmem_specs + [pl.BlockSpec(memory_space=pltpu.MemorySpace.SMEM)],
        out_specs=pl.BlockSpec(memory_space=pltpu.MemorySpace.VMEM),
        scratch_shapes=[pltpu.VMEM((36 * B, 32), jnp.float32),     # h1: pooled conv1 act
                        pltpu.VMEM((4, 4 * B, 64), jnp.float32)],  # conv2 pre-pool rows
        cost_estimate=pl.CostEstimate(flops=flops, transcendentals=0,
                                      bytes_accessed=bytes_acc),
    )(p1, w1_mat, cb1, w2_taps, cb2, wf1, bf1, wf2, bf2)


# ----------------------------------------------------------------------------
# Deterministic parameter init (torch-like uniform(-1/sqrt(fan_in), 1/sqrt(fan_in)))
# ----------------------------------------------------------------------------

def init_params(key, nb_hidden=100):
    ks = jax.random.split(key, 8)

    def u(k, shape, fan_in):
        bound = 1.0 / np.sqrt(fan_in)
        return jax.random.uniform(k, shape, jnp.float32, -bound, bound)

    return dict(
        conv1_w=u(ks[0], (32, 1, 3, 3), 1 * 9),
        conv1_b=u(ks[1], (32,), 1 * 9),
        conv2_w=u(ks[2], (64, 32, 3, 3), 32 * 9),
        conv2_b=u(ks[3], (64,), 32 * 9),
        fc1_w=u(ks[4], (nb_hidden, 512), 512),
        fc1_b=u(ks[5], (nb_hidden,), 512),
        fc2_w=u(ks[6], (1, nb_hidden), nb_hidden),
        fc2_b=u(ks[7], (1,), nb_hidden),
    )


# ----------------------------------------------------------------------------
# Pure-JAX reference (mirrors the PyTorch forward exactly) for validation
# ----------------------------------------------------------------------------

def reference_forward(x, params):
    def conv2d(inp, w, b):
        out = jax.lax.conv_general_dilated(
            inp, w, window_strides=(1, 1), padding="VALID",
            dimension_numbers=("NCHW", "OIHW", "NCHW"),
            precision=jax.lax.Precision.HIGHEST)
        return out + b[None, :, None, None]

    def maxpool2(z):
        return jax.lax.reduce_window(z, -jnp.inf, jax.lax.max,
                                     (1, 1, 2, 2), (1, 1, 2, 2), "VALID")

    res = []
    for c in range(2):
        h = x[:, c:c + 1]
        h = jax.nn.relu(maxpool2(conv2d(h, params["conv1_w"], params["conv1_b"])))
        h = jax.nn.relu(maxpool2(conv2d(h, params["conv2_w"], params["conv2_b"])))
        res.append(h.reshape(h.shape[0], -1))
    f = jnp.concatenate(res, axis=1)
    f = jax.nn.relu(jnp.dot(f, params["fc1_w"].T,
                            precision=jax.lax.Precision.HIGHEST) + params["fc1_b"])
    return jnp.dot(f, params["fc2_w"].T,
                   precision=jax.lax.Precision.HIGHEST) + params["fc2_b"]


if __name__ == "__main__":
    key = jax.random.PRNGKey(0)
    kx, kp = jax.random.split(key)

    x = jax.random.normal(kx, (2, 2, 14, 14), jnp.float32)   # (batch, 2 digits, 14, 14)
    params = init_params(kp, nb_hidden=100)

    out = jax.block_until_ready(net_sharing1_forward(x, params))
    assert out.shape == (2, 1), out.shape

    ref = jax.block_until_ready(reference_forward(x, params))
    err = float(jnp.max(jnp.abs(out - ref)))
    # 1e-4 catches any layout/permutation bug (those give O(0.1+) errors) while
    # tolerating MXU multi-pass f32 vs XLA HIGHEST rounding differences.
    if not np.allclose(np.asarray(out), np.asarray(ref), rtol=1e-4, atol=1e-4):
        raise AssertionError(f"Pallas output mismatch, max abs err={err}")

    print("KERNEL_OK")
</pallas_src>

<mosaic_0001>
module attributes {stable_mosaic.version = 11 : i64} {
  func.func @_fused_forward_kernel(%arg0: memref<4x144x9xf32, #tpu.memory_space<vmem>>, %arg1: memref<9x32xf32, #tpu.memory_space<vmem>>, %arg2: memref<1x32xf32, #tpu.memory_space<vmem>>, %arg3: memref<9x32x64xf32, #tpu.memory_space<vmem>>, %arg4: memref<1x64xf32, #tpu.memory_space<vmem>>, %arg5: memref<8x64x128xf32, #tpu.memory_space<vmem>>, %arg6: memref<1x128xf32, #tpu.memory_space<vmem>>, %arg7: memref<1x128xf32, #tpu.memory_space<vmem>>, %arg8: memref<1xf32, #tpu.memory_space<smem>>, %arg9: memref<2x1xf32, #tpu.memory_space<vmem>>, %arg10: memref<144x32xf32, #tpu.memory_space<vmem>>, %arg11: memref<4x16x64xf32, #tpu.memory_space<vmem>>) attributes {dimension_semantics = [], scalar_prefetch = 0 : i64, scratch_operands = 2 : i64, tpu.core_type = #tpu.core_type<tc>} {
    %c0 = arith.constant 0 : index
    %c0_0 = arith.constant 0 : index
    %c0_1 = arith.constant 0 : index
    %0 = vector.load %arg0[%c0, %c0_0, %c0_1] : memref<4x144x9xf32, #tpu.memory_space<vmem>>, vector<1x144x9xf32>
    %1 = vector.shape_cast %0 : vector<1x144x9xf32> to vector<144x9xf32>
    %c0_2 = arith.constant 0 : index
    %c0_3 = arith.constant 0 : index
    %2 = vector.load %arg1[%c0_2, %c0_3] : memref<9x32xf32, #tpu.memory_space<vmem>>, vector<9x32xf32>
    %cst = arith.constant dense<0.000000e+00> : vector<144x32xf32>
    %3 = tpu.matmul %1, %2, %cst {dimension_numbers = #tpu.dot_dimension_numbers<[1], [0], [0], [1], [0, 0, 1, 1], [], []>} : vector<144x9xf32>, vector<9x32xf32>, vector<144x32xf32> -> vector<144x32xf32>
    %c1 = arith.constant 1 : index
    %c0_4 = arith.constant 0 : index
    %c0_5 = arith.constant 0 : index
    %4 = vector.load %arg0[%c1, %c0_4, %c0_5] : memref<4x144x9xf32, #tpu.memory_space<vmem>>, vector<1x144x9xf32>
    %5 = vector.shape_cast %4 : vector<1x144x9xf32> to vector<144x9xf32>
    %c0_6 = arith.constant 0 : index
    %c0_7 = arith.constant 0 : index
    %6 = vector.load %arg1[%c0_6, %c0_7] : memref<9x32xf32, #tpu.memory_space<vmem>>, vector<9x32xf32>
    %cst_8 = arith.constant dense<0.000000e+00> : vector<144x32xf32>
    %7 = tpu.matmul %5, %6, %cst_8 {dimension_numbers = #tpu.dot_dimension_numbers<[1], [0], [0], [1], [0, 0, 1, 1], [], []>} : vector<144x9xf32>, vector<9x32xf32>, vector<144x32xf32> -> vector<144x32xf32>
    %c2 = arith.constant 2 : index
    %c0_9 = arith.constant 0 : index
    %c0_10 = arith.constant 0 : index
    %8 = vector.load %arg0[%c2, %c0_9, %c0_10] : memref<4x144x9xf32, #tpu.memory_space<vmem>>, vector<1x144x9xf32>
    %9 = vector.shape_cast %8 : vector<1x144x9xf32> to vector<144x9xf32>
    %c0_11 = arith.constant 0 : index
    %c0_12 = arith.constant 0 : index
    %10 = vector.load %arg1[%c0_11, %c0_12] : memref<9x32xf32, #tpu.memory_space<vmem>>, vector<9x32xf32>
    %cst_13 = arith.constant dense<0.000000e+00> : vector<144x32xf32>
    %11 = tpu.matmul %9, %10, %cst_13 {dimension_numbers = #tpu.dot_dimension_numbers<[1], [0], [0], [1], [0, 0, 1, 1], [], []>} : vector<144x9xf32>, vector<9x32xf32>, vector<144x32xf32> -> vector<144x32xf32>
    %c3 = arith.constant 3 : index
    %c0_14 = arith.constant 0 : index
    %c0_15 = arith.constant 0 : index
    %12 = vector.load %arg0[%c3, %c0_14, %c0_15] : memref<4x144x9xf32, #tpu.memory_space<vmem>>, vector<1x144x9xf32>
    %13 = vector.shape_cast %12 : vector<1x144x9xf32> to vector<144x9xf32>
    %c0_16 = arith.constant 0 : index
    %c0_17 = arith.constant 0 : index
    %14 = vector.load %arg1[%c0_16, %c0_17] : memref<9x32xf32, #tpu.memory_space<vmem>>, vector<9x32xf32>
    %cst_18 = arith.constant dense<0.000000e+00> : vector<144x32xf32>
    %15 = tpu.matmul %13, %14, %cst_18 {dimension_numbers = #tpu.dot_dimension_numbers<[1], [0], [0], [1], [0, 0, 1, 1], [], []>} : vector<144x9xf32>, vector<9x32xf32>, vector<144x32xf32> -> vector<144x32xf32>
    %16 = arith.maximumf %3, %7 : vector<144x32xf32>
    %17 = arith.maximumf %11, %15 : vector<144x32xf32>
    %18 = arith.maximumf %16, %17 : vector<144x32xf32>
    %c0_19 = arith.constant 0 : index
    %c0_20 = arith.constant 0 : index
    %19 = vector.load %arg2[%c0_19, %c0_20] : memref<1x32xf32, #tpu.memory_space<vmem>>, vector<1x32xf32>
    %20 = vector.broadcast %19 : vector<1x32xf32> to vector<144x32xf32>
    %21 = arith.addf %18, %20 : vector<144x32xf32>
    %cst_21 = arith.constant 0.000000e+00 : f32
    %22 = vector.broadcast %cst_21 : f32 to vector<144x32xf32>
    %23 = arith.maximumf %21, %22 : vector<144x32xf32>
    %c0_22 = arith.constant 0 : index
    %c0_23 = arith.constant 0 : index
    %24 = vector.load %arg10[%c0_22, %c0_23] : memref<144x32xf32, #tpu.memory_space<vmem>>, vector<144x32xf32>
    tpu.vector_store %arg10[%c0_22, %c0_23], %23 {strides = array<i32>} : memref<144x32xf32, #tpu.memory_space<vmem>>, vector<144x32xf32>,
    %c0_24 = arith.constant 0 : index
    %c0_25 = arith.constant 0 : index
    %25 = vector.load %arg10[%c0_24, %c0_25] : memref<144x32xf32, #tpu.memory_space<vmem>>, vector<16x32xf32>
    %c0_26 = arith.constant 0 : index
    %c0_27 = arith.constant 0 : index
    %c0_28 = arith.constant 0 : index
    %26 = vector.load %arg3[%c0_26, %c0_27, %c0_28] : memref<9x32x64xf32, #tpu.memory_space<vmem>>, vector<1x32x64xf32>
    %27 = vector.shape_cast %26 : vector<1x32x64xf32> to vector<32x64xf32>
    %cst_29 = arith.constant dense<0.000000e+00> : vector<16x64xf32>
    %28 = tpu.matmul %25, %27, %cst_29 {dimension_numbers = #tpu.dot_dimension_numbers<[1], [0], [0], [1], [0, 0, 1, 1], [], []>} : vector<16x32xf32>, vector<32x64xf32>, vector<16x64xf32> -> vector<16x64xf32>
    %c4 = arith.constant 4 : index
    %c0_30 = arith.constant 0 : index
    %29 = vector.load %arg10[%c4, %c0_30] : memref<144x32xf32, #tpu.memory_space<vmem>>, vector<16x32xf32>
    %c1_31 = arith.constant 1 : index
    %c0_32 = arith.constant 0 : index
    %c0_33 = arith.constant 0 : index
    %30 = vector.load %arg3[%c1_31, %c0_32, %c0_33] : memref<9x32x64xf32, #tpu.memory_space<vmem>>, vector<1x32x64xf32>
    %31 = vector.shape_cast %30 : vector<1x32x64xf32> to vector<32x64xf32>
    %cst_34 = arith.constant dense<0.000000e+00> : vector<16x64xf32>
    %32 = tpu.matmul %29, %31, %cst_34 {dimension_numbers = #tpu.dot_dimension_numbers<[1], [0], [0], [1], [0, 0, 1, 1], [], []>} : vector<16x32xf32>, vector<32x64xf32>, vector<16x64xf32> -> vector<16x64xf32>
    %33 = arith.addf %28, %32 : vector<16x64xf32>
    %c8 = arith.constant 8 : index
    %c0_35 = arith.constant 0 : index
    %34 = vector.load %arg10[%c8, %c0_35] : memref<144x32xf32, #tpu.memory_space<vmem>>, vector<16x32xf32>
    %c2_36 = arith.constant 2 : index
    %c0_37 = arith.constant 0 : index
    %c0_38 = arith.constant 0 : index
    %35 = vector.load %arg3[%c2_36, %c0_37, %c0_38] : memref<9x32x64xf32, #tpu.memory_space<vmem>>, vector<1x32x64xf32>
    %36 = vector.shape_cast %35 : vector<1x32x64xf32> to vector<32x64xf32>
    %cst_39 = arith.constant dense<0.000000e+00> : vector<16x64xf32>
    %37 = tpu.matmul %34, %36, %cst_39 {dimension_numbers = #tpu.dot_dimension_numbers<[1], [0], [0], [1], [0, 0, 1, 1], [], []>} : vector<16x32xf32>, vector<32x64xf32>, vector<16x64xf32> -> vector<16x64xf32>
    %38 = arith.addf %33, %37 : vector<16x64xf32>
    %c24 = arith.constant 24 : index
    %c0_40 = arith.constant 0 : index
    %39 = vector.load %arg10[%c24, %c0_40] : memref<144x32xf32, #tpu.memory_space<vmem>>, vector<16x32xf32>
    %c3_41 = arith.constant 3 : index
    %c0_42 = arith.constant 0 : index
    %c0_43 = arith.constant 0 : index
    %40 = vector.load %arg3[%c3_41, %c0_42, %c0_43] : memref<9x32x64xf32, #tpu.memory_space<vmem>>, vector<1x32x64xf32>
    %41 = vector.shape_cast %40 : vector<1x32x64xf32> to vector<32x64xf32>
    %cst_44 = arith.constant dense<0.000000e+00> : vector<16x64xf32>
    %42 = tpu.matmul %39, %41, %cst_44 {dimension_numbers = #tpu.dot_dimension_numbers<[1], [0], [0], [1], [0, 0, 1, 1], [], []>} : vector<16x32xf32>, vector<32x64xf32>, vector<16x64xf32> -> vector<16x64xf32>
    %43 = arith.addf %38, %42 : vector<16x64xf32>
    %c28 = arith.constant 28 : index
    %c0_45 = arith.constant 0 : index
    %44 = vector.load %arg10[%c28, %c0_45] : memref<144x32xf32, #tpu.memory_space<vmem>>, vector<16x32xf32>
    %c4_46 = arith.constant 4 : index
    %c0_47 = arith.constant 0 : index
    %c0_48 = arith.constant 0 : index
    %45 = vector.load %arg3[%c4_46, %c0_47, %c0_48] : memref<9x32x64xf32, #tpu.memory_space<vmem>>, vector<1x32x64xf32>
    %46 = vector.shape_cast %45 : vector<1x32x64xf32> to vector<32x64xf32>
    %cst_49 = arith.constant dense<0.000000e+00> : vector<16x64xf32>
    %47 = tpu.matmul %44, %46, %cst_49 {dimension_numbers = #tpu.dot_dimension_numbers<[1], [0], [0], [1], [0, 0, 1, 1], [], []>} : vector<16x32xf32>, vector<32x64xf32>, vector<16x64xf32> -> vector<16x64xf32>
    %48 = arith.addf %43, %47 : vector<16x64xf32>
    %c32 = arith.constant 32 : index
    %c0_50 = arith.constant 0 : index
    %49 = vector.load %arg10[%c32, %c0_50] : memref<144x32xf32, #tpu.memory_space<vmem>>, vector<16x32xf32>
    %c5 = arith.constant 5 : index
    %c0_51 = arith.constant 0 : index
    %c0_52 = arith.constant 0 : index
    %50 = vector.load %arg3[%c5, %c0_51, %c0_52] : memref<9x32x64xf32, #tpu.memory_space<vmem>>, vector<1x32x64xf32>
    %51 = vector.shape_cast %50 : vector<1x32x64xf32> to vector<32x64xf32>
    %cst_53 = arith.constant dense<0.000000e+00> : vector<16x64xf32>
    %52 = tpu.matmul %49, %51, %cst_53 {dimension_numbers = #tpu.dot_dimension_numbers<[1], [0], [0], [1], [0, 0, 1, 1], [], []>} : vector<16x32xf32>, vector<32x64xf32>, vector<16x64xf32> -> vector<16x64xf32>
    %53 = arith.addf %48, %52 : vector<16x64xf32>
    %c48 = arith.constant 48 : index
    %c0_54 = arith.constant 0 : index
    %54 = vector.load %arg10[%c48, %c0_54] : memref<144x32xf32, #tpu.memory_space<vmem>>, vector<16x32xf32>
    %c6 = arith.constant 6 : index
    %c0_55 = arith.constant 0 : index
    %c0_56 = arith.constant 0 : index
    %55 = vector.load %arg3[%c6, %c0_55, %c0_56] : memref<9x32x64xf32, #tpu.memory_space<vmem>>, vector<1x32x64xf32>
    %56 = vector.shape_cast %55 : vector<1x32x64xf32> to vector<32x64xf32>
    %cst_57 = arith.constant dense<0.000000e+00> : vector<16x64xf32>
    %57 = tpu.matmul %54, %56, %cst_57 {dimension_numbers = #tpu.dot_dimension_numbers<[1], [0], [0], [1], [0, 0, 1, 1], [], []>} : vector<16x32xf32>, vector<32x64xf32>, vector<16x64xf32> -> vector<16x64xf32>
    %58 = arith.addf %53, %57 : vector<16x64xf32>
    %c52 = arith.constant 52 : index
    %c0_58 = arith.constant 0 : index
    %59 = vector.load %arg10[%c52, %c0_58] : memref<144x32xf32, #tpu.memory_space<vmem>>, vector<16x32xf32>
    %c7 = arith.constant 7 : index
    %c0_59 = arith.constant 0 : index
    %c0_60 = arith.constant 0 : index
    %60 = vector.load %arg3[%c7, %c0_59, %c0_60] : memref<9x32x64xf32, #tpu.memory_space<vmem>>, vector<1x32x64xf32>
    %61 = vector.shape_cast %60 : vector<1x32x64xf32> to vector<32x64xf32>
    %cst_61 = arith.constant dense<0.000000e+00> : vector<16x64xf32>
    %62 = tpu.matmul %59, %61, %cst_61 {dimension_numbers = #tpu.dot_dimension_numbers<[1], [0], [0], [1], [0, 0, 1, 1], [], []>} : vector<16x32xf32>, vector<32x64xf32>, vector<16x64xf32> -> vector<16x64xf32>
    %63 = arith.addf %58, %62 : vector<16x64xf32>
    %c56 = arith.constant 56 : index
    %c0_62 = arith.constant 0 : index
    %64 = vector.load %arg10[%c56, %c0_62] : memref<144x32xf32, #tpu.memory_space<vmem>>, vector<16x32xf32>
    %c8_63 = arith.constant 8 : index
    %c0_64 = arith.constant 0 : index
    %c0_65 = arith.constant 0 : index
    %65 = vector.load %arg3[%c8_63, %c0_64, %c0_65] : memref<9x32x64xf32, #tpu.memory_space<vmem>>, vector<1x32x64xf32>
    %66 = vector.shape_cast %65 : vector<1x32x64xf32> to vector<32x64xf32>
    %cst_66 = arith.constant dense<0.000000e+00> : vector<16x64xf32>
    %67 = tpu.matmul %64, %66, %cst_66 {dimension_numbers = #tpu.dot_dimension_numbers<[1], [0], [0], [1], [0, 0, 1, 1], [], []>} : vector<16x32xf32>, vector<32x64xf32>, vector<16x64xf32> -> vector<16x64xf32>
    %68 = arith.addf %63, %67 : vector<16x64xf32>
    %c0_67 = arith.constant 0 : index
    %c0_68 = arith.constant 0 : index
    %c0_69 = arith.constant 0 : index
    %69 = vector.load %arg11[%c0_67, %c0_68, %c0_69] : memref<4x16x64xf32, #tpu.memory_space<vmem>>, vector<1x16x64xf32>
    %70 = vector.shape_cast %69 : vector<1x16x64xf32> to vector<16x64xf32>
    %71 = vector.shape_cast %68 : vector<16x64xf32> to vector<1x16x64xf32>
    tpu.vector_store %arg11[%c0_67, %c0_68, %c0_69], %71 {strides = array<i32>} : memref<4x16x64xf32, #tpu.memory_space<vmem>>, vector<1x16x64xf32>,
    %c24_70 = arith.constant 24 : index
    %c0_71 = arith.constant 0 : index
    %72 = vector.load %arg10[%c24_70, %c0_71] : memref<144x32xf32, #tpu.memory_space<vmem>>, vector<16x32xf32>
    %c0_72 = arith.constant 0 : index
    %c0_73 = arith.constant 0 : index
    %c0_74 = arith.constant 0 : index
    %73 = vector.load %arg3[%c0_72, %c0_73, %c0_74] : memref<9x32x64xf32, #tpu.memory_space<vmem>>, vector<1x32x64xf32>
    %74 = vector.shape_cast %73 : vector<1x32x64xf32> to vector<32x64xf32>
    %cst_75 = arith.constant dense<0.000000e+00> : vector<16x64xf32>
    %75 = tpu.matmul %72, %74, %cst_75 {dimension_numbers = #tpu.dot_dimension_numbers<[1], [0], [0], [1], [0, 0, 1, 1], [], []>} : vector<16x32xf32>, vector<32x64xf32>, vector<16x64xf32> -> vector<16x64xf32>
    %c28_76 = arith.constant 28 : index
    %c0_77 = arith.constant 0 : index
    %76 = vector.load %arg10[%c28_76, %c0_77] : memref<144x32xf32, #tpu.memory_space<vmem>>, vector<16x32xf32>
    %c1_78 = arith.constant 1 : index
    %c0_79 = arith.constant 0 : index
    %c0_80 = arith.constant 0 : index
    %77 = vector.load %arg3[%c1_78, %c0_79, %c0_80] : memref<9x32x64xf32, #tpu.memory_space<vmem>>, vector<1x32x64xf32>
    %78 = vector.shape_cast %77 : vector<1x32x64xf32> to vector<32x64xf32>
    %cst_81 = arith.constant dense<0.000000e+00> : vector<16x64xf32>
    %79 = tpu.matmul %76, %78, %cst_81 {dimension_numbers = #tpu.dot_dimension_numbers<[1], [0], [0], [1], [0, 0, 1, 1], [], []>} : vector<16x32xf32>, vector<32x64xf32>, vector<16x64xf32> -> vector<16x64xf32>
    %80 = arith.addf %75, %79 : vector<16x64xf32>
    %c32_82 = arith.constant 32 : index
    %c0_83 = arith.constant 0 : index
    %81 = vector.load %arg10[%c32_82, %c0_83] : memref<144x32xf32, #tpu.memory_space<vmem>>, vector<16x32xf32>
    %c2_84 = arith.constant 2 : index
    %c0_85 = arith.constant 0 : index
    %c0_86 = arith.constant 0 : index
    %82 = vector.load %arg3[%c2_84, %c0_85, %c0_86] : memref<9x32x64xf32, #tpu.memory_space<vmem>>, vector<1x32x64xf32>
    %83 = vector.shape_cast %82 : vector<1x32x64xf32> to vector<32x64xf32>
    %cst_87 = arith.constant dense<0.000000e+00> : vector<16x64xf32>
    %84 = tpu.matmul %81, %83, %cst_87 {dimension_numbers = #tpu.dot_dimension_numbers<[1], [0], [0], [1], [0, 0, 1, 1], [], []>} : vector<16x32xf32>, vector<32x64xf32>, vector<16x64xf32> -> vector<16x64xf32>
    %85 = arith.addf %80, %84 : vector<16x64xf32>
    %c48_88 = arith.constant 48 : index
    %c0_89 = arith.constant 0 : index
    %86 = vector.load %arg10[%c48_88, %c0_89] : memref<144x32xf32, #tpu.memory_space<vmem>>, vector<16x32xf32>
    %c3_90 = arith.constant 3 : index
    %c0_91 = arith.constant 0 : index
    %c0_92 = arith.constant 0 : index
    %87 = vector.load %arg3[%c3_90, %c0_91, %c0_92] : memref<9x32x64xf32, #tpu.memory_space<vmem>>, vector<1x32x64xf32>
    %88 = vector.shape_cast %87 : vector<1x32x64xf32> to vector<32x64xf32>
    %cst_93 = arith.constant dense<0.000000e+00> : vector<16x64xf32>
    %89 = tpu.matmul %86, %88, %cst_93 {dimension_numbers = #tpu.dot_dimension_numbers<[1], [0], [0], [1], [0, 0, 1, 1], [], []>} : vector<16x32xf32>, vector<32x64xf32>, vector<16x64xf32> -> vector<16x64xf32>
    %90 = arith.addf %85, %89 : vector<16x64xf32>
    %c52_94 = arith.constant 52 : index
    %c0_95 = arith.constant 0 : index
    %91 = vector.load %arg10[%c52_94, %c0_95] : memref<144x32xf32, #tpu.memory_space<vmem>>, vector<16x32xf32>
    %c4_96 = arith.constant 4 : index
    %c0_97 = arith.constant 0 : index
    %c0_98 = arith.constant 0 : index
    %92 = vector.load %arg3[%c4_96, %c0_97, %c0_98] : memref<9x32x64xf32, #tpu.memory_space<vmem>>, vector<1x32x64xf32>
    %93 = vector.shape_cast %92 : vector<1x32x64xf32> to vector<32x64xf32>
    %cst_99 = arith.constant dense<0.000000e+00> : vector<16x64xf32>
    %94 = tpu.matmul %91, %93, %cst_99 {dimension_numbers = #tpu.dot_dimension_numbers<[1], [0], [0], [1], [0, 0, 1, 1], [], []>} : vector<16x32xf32>, vector<32x64xf32>, vector<16x64xf32> -> vector<16x64xf32>
    %95 = arith.addf %90, %94 : vector<16x64xf32>
    %c56_100 = arith.constant 56 : index
    %c0_101 = arith.constant 0 : index
    %96 = vector.load %arg10[%c56_100, %c0_101] : memref<144x32xf32, #tpu.memory_space<vmem>>, vector<16x32xf32>
    %c5_102 = arith.constant 5 : index
    %c0_103 = arith.constant 0 : index
    %c0_104 = arith.constant 0 : index
    %97 = vector.load %arg3[%c5_102, %c0_103, %c0_104] : memref<9x32x64xf32, #tpu.memory_space<vmem>>, vector<1x32x64xf32>
    %98 = vector.shape_cast %97 : vector<1x32x64xf32> to vector<32x64xf32>
    %cst_105 = arith.constant dense<0.000000e+00> : vector<16x64xf32>
    %99 = tpu.matmul %96, %98, %cst_105 {dimension_numbers = #tpu.dot_dimension_numbers<[1], [0], [0], [1], [0, 0, 1, 1], [], []>} : vector<16x32xf32>, vector<32x64xf32>, vector<16x64xf32> -> vector<16x64xf32>
    %100 = arith.addf %95, %99 : vector<16x64xf32>
    %c72 = arith.constant 72 : index
    %c0_106 = arith.constant 0 : index
    %101 = vector.load %arg10[%c72, %c0_106] : memref<144x32xf32, #tpu.memory_space<vmem>>, vector<16x32xf32>
    %c6_107 = arith.constant 6 : index
    %c0_108 = arith.constant 0 : index
    %c0_109 = arith.constant 0 : index
    %102 = vector.load %arg3[%c6_107, %c0_108, %c0_109] : memref<9x32x64xf32, #tpu.memory_space<vmem>>, vector<1x32x64xf32>
    %103 = vector.shape_cast %102 : vector<1x32x64xf32> to vector<32x64xf32>
    %cst_110 = arith.constant dense<0.000000e+00> : vector<16x64xf32>
    %104 = tpu.matmul %101, %103, %cst_110 {dimension_numbers = #tpu.dot_dimension_numbers<[1], [0], [0], [1], [0, 0, 1, 1], [], []>} : vector<16x32xf32>, vector<32x64xf32>, vector<16x64xf32> -> vector<16x64xf32>
    %105 = arith.addf %100, %104 : vector<16x64xf32>
    %c76 = arith.constant 76 : index
    %c0_111 = arith.constant 0 : index
    %106 = vector.load %arg10[%c76, %c0_111] : memref<144x32xf32, #tpu.memory_space<vmem>>, vector<16x32xf32>
    %c7_112 = arith.constant 7 : index
    %c0_113 = arith.constant 0 : index
    %c0_114 = arith.constant 0 : index
    %107 = vector.load %arg3[%c7_112, %c0_113, %c0_114] : memref<9x32x64xf32, #tpu.memory_space<vmem>>, vector<1x32x64xf32>
    %108 = vector.shape_cast %107 : vector<1x32x64xf32> to vector<32x64xf32>
    %cst_115 = arith.constant dense<0.000000e+00> : vector<16x64xf32>
    %109 = tpu.matmul %106, %108, %cst_115 {dimension_numbers = #tpu.dot_dimension_numbers<[1], [0], [0], [1], [0, 0, 1, 1], [], []>} : vector<16x32xf32>, vector<32x64xf32>, vector<16x64xf32> -> vector<16x64xf32>
    %110 = arith.addf %105, %109 : vector<16x64xf32>
    %c80 = arith.constant 80 : index
    %c0_116 = arith.constant 0 : index
    %111 = vector.load %arg10[%c80, %c0_116] : memref<144x32xf32, #tpu.memory_space<vmem>>, vector<16x32xf32>
    %c8_117 = arith.constant 8 : index
    %c0_118 = arith.constant 0 : index
    %c0_119 = arith.constant 0 : index
    %112 = vector.load %arg3[%c8_117, %c0_118, %c0_119] : memref<9x32x64xf32, #tpu.memory_space<vmem>>, vector<1x32x64xf32>
    %113 = vector.shape_cast %112 : vector<1x32x64xf32> to vector<32x64xf32>
    %cst_120 = arith.constant dense<0.000000e+00> : vector<16x64xf32>
    %114 = tpu.matmul %111, %113, %cst_120 {dimension_numbers = #tpu.dot_dimension_numbers<[1], [0], [0], [1], [0, 0, 1, 1], [], []>} : vector<16x32xf32>, vector<32x64xf32>, vector<16x64xf32> -> vector<16x64xf32>
    %115 = arith.addf %110, %114 : vector<16x64xf32>
    %c1_121 = arith.constant 1 : index
    %c0_122 = arith.constant 0 : index
    %c0_123 = arith.constant 0 : index
    %116 = vector.load %arg11[%c1_121, %c0_122, %c0_123] : memref<4x16x64xf32, #tpu.memory_space<vmem>>, vector<1x16x64xf32>
    %117 = vector.shape_cast %116 : vector<1x16x64xf32> to vector<16x64xf32>
    %118 = vector.shape_cast %115 : vector<16x64xf32> to vector<1x16x64xf32>
    tpu.vector_store %arg11[%c1_121, %c0_122, %c0_123], %118 {strides = array<i32>} : memref<4x16x64xf32, #tpu.memory_space<vmem>>, vector<1x16x64xf32>,
    %c48_124 = arith.constant 48 : index
    %c0_125 = arith.constant 0 : index
    %119 = vector.load %arg10[%c48_124, %c0_125] : memref<144x32xf32, #tpu.memory_space<vmem>>, vector<16x32xf32>
    %c0_126 = arith.constant 0 : index
    %c0_127 = arith.constant 0 : index
    %c0_128 = arith.constant 0 : index
    %120 = vector.load %arg3[%c0_126, %c0_127, %c0_128] : memref<9x32x64xf32, #tpu.memory_space<vmem>>, vector<1x32x64xf32>
    %121 = vector.shape_cast %120 : vector<1x32x64xf32> to vector<32x64xf32>
    %cst_129 = arith.constant dense<0.000000e+00> : vector<16x64xf32>
    %122 = tpu.matmul %119, %121, %cst_129 {dimension_numbers = #tpu.dot_dimension_numbers<[1], [0], [0], [1], [0, 0, 1, 1], [], []>} : vector<16x32xf32>, vector<32x64xf32>, vector<16x64xf32> -> vector<16x64xf32>
    %c52_130 = arith.constant 52 : index
    %c0_131 = arith.constant 0 : index
    %123 = vector.load %arg10[%c52_130, %c0_131] : memref<144x32xf32, #tpu.memory_space<vmem>>, vector<16x32xf32>
    %c1_132 = arith.constant 1 : index
    %c0_133 = arith.constant 0 : index
    %c0_134 = arith.constant 0 : index
    %124 = vector.load %arg3[%c1_132, %c0_133, %c0_134] : memref<9x32x64xf32, #tpu.memory_space<vmem>>, vector<1x32x64xf32>
    %125 = vector.shape_cast %124 : vector<1x32x64xf32> to vector<32x64xf32>
    %cst_135 = arith.constant dense<0.000000e+00> : vector<16x64xf32>
    %126 = tpu.matmul %123, %125, %cst_135 {dimension_numbers = #tpu.dot_dimension_numbers<[1], [0], [0], [1], [0, 0, 1, 1], [], []>} : vector<16x32xf32>, vector<32x64xf32>, vector<16x64xf32> -> vector<16x64xf32>
    %127 = arith.addf %122, %126 : vector<16x64xf32>
    %c56_136 = arith.constant 56 : index
    %c0_137 = arith.constant 0 : index
    %128 = vector.load %arg10[%c56_136, %c0_137] : memref<144x32xf32, #tpu.memory_space<vmem>>, vector<16x32xf32>
    %c2_138 = arith.constant 2 : index
    %c0_139 = arith.constant 0 : index
    %c0_140 = arith.constant 0 : index
    %129 = vector.load %arg3[%c2_138, %c0_139, %c0_140] : memref<9x32x64xf32, #tpu.memory_space<vmem>>, vector<1x32x64xf32>
    %130 = vector.shape_cast %129 : vector<1x32x64xf32> to vector<32x64xf32>
    %cst_141 = arith.constant dense<0.000000e+00> : vector<16x64xf32>
    %131 = tpu.matmul %128, %130, %cst_141 {dimension_numbers = #tpu.dot_dimension_numbers<[1], [0], [0], [1], [0, 0, 1, 1], [], []>} : vector<16x32xf32>, vector<32x64xf32>, vector<16x64xf32> -> vector<16x64xf32>
    %132 = arith.addf %127, %131 : vector<16x64xf32>
    %c72_142 = arith.constant 72 : index
    %c0_143 = arith.constant 0 : index
    %133 = vector.load %arg10[%c72_142, %c0_143] : memref<144x32xf32, #tpu.memory_space<vmem>>, vector<16x32xf32>
    %c3_144 = arith.constant 3 : index
    %c0_145 = arith.constant 0 : index
    %c0_146 = arith.constant 0 : index
    %134 = vector.load %arg3[%c3_144, %c0_145, %c0_146] : memref<9x32x64xf32, #tpu.memory_space<vmem>>, vector<1x32x64xf32>
    %135 = vector.shape_cast %134 : vector<1x32x64xf32> to vector<32x64xf32>
    %cst_147 = arith.constant dense<0.000000e+00> : vector<16x64xf32>
    %136 = tpu.matmul %133, %135, %cst_147 {dimension_numbers = #tpu.dot_dimension_numbers<[1], [0], [0], [1], [0, 0, 1, 1], [], []>} : vector<16x32xf32>, vector<32x64xf32>, vector<16x64xf32> -> vector<16x64xf32>
    %137 = arith.addf %132, %136 : vector<16x64xf32>
    %c76_148 = arith.constant 76 : index
    %c0_149 = arith.constant 0 : index
    %138 = vector.load %arg10[%c76_148, %c0_149] : memref<144x32xf32, #tpu.memory_space<vmem>>, vector<16x32xf32>
    %c4_150 = arith.constant 4 : index
    %c0_151 = arith.constant 0 : index
    %c0_152 = arith.constant 0 : index
    %139 = vector.load %arg3[%c4_150, %c0_151, %c0_152] : memref<9x32x64xf32, #tpu.memory_space<vmem>>, vector<1x32x64xf32>
    %140 = vector.shape_cast %139 : vector<1x32x64xf32> to vector<32x64xf32>
    %cst_153 = arith.constant dense<0.000000e+00> : vector<16x64xf32>
    %141 = tpu.matmul %138, %140, %cst_153 {dimension_numbers = #tpu.dot_dimension_numbers<[1], [0], [0], [1], [0, 0, 1, 1], [], []>} : vector<16x32xf32>, vector<32x64xf32>, vector<16x64xf32> -> vector<16x64xf32>
    %142 = arith.addf %137, %141 : vector<16x64xf32>
    %c80_154 = arith.constant 80 : index
    %c0_155 = arith.constant 0 : index
    %143 = vector.load %arg10[%c80_154, %c0_155] : memref<144x32xf32, #tpu.memory_space<vmem>>, vector<16x32xf32>
    %c5_156 = arith.constant 5 : index
    %c0_157 = arith.constant 0 : index
    %c0_158 = arith.constant 0 : index
    %144 = vector.load %arg3[%c5_156, %c0_157, %c0_158] : memref<9x32x64xf32, #tpu.memory_space<vmem>>, vector<1x32x64xf32>
    %145 = vector.shape_cast %144 : vector<1x32x64xf32> to vector<32x64xf32>
    %cst_159 = arith.constant dense<0.000000e+00> : vector<16x64xf32>
    %146 = tpu.matmul %143, %145, %cst_159 {dimension_numbers = #tpu.dot_dimension_numbers<[1], [0], [0], [1], [0, 0, 1, 1], [], []>} : vector<16x32xf32>, vector<32x64xf32>, vector<16x64xf32> -> vector<16x64xf32>
    %147 = arith.addf %142, %146 : vector<16x64xf32>
    %c96 = arith.constant 96 : index
    %c0_160 = arith.constant 0 : index
    %148 = vector.load %arg10[%c96, %c0_160] : memref<144x32xf32, #tpu.memory_space<vmem>>, vector<16x32xf32>
    %c6_161 = arith.constant 6 : index
    %c0_162 = arith.constant 0 : index
    %c0_163 = arith.constant 0 : index
    %149 = vector.load %arg3[%c6_161, %c0_162, %c0_163] : memref<9x32x64xf32, #tpu.memory_space<vmem>>, vector<1x32x64xf32>
    %150 = vector.shape_cast %149 : vector<1x32x64xf32> to vector<32x64xf32>
    %cst_164 = arith.constant dense<0.000000e+00> : vector<16x64xf32>
    %151 = tpu.matmul %148, %150, %cst_164 {dimension_numbers = #tpu.dot_dimension_numbers<[1], [0], [0], [1], [0, 0, 1, 1], [], []>} : vector<16x32xf32>, vector<32x64xf32>, vector<16x64xf32> -> vector<16x64xf32>
    %152 = arith.addf %147, %151 : vector<16x64xf32>
    %c100 = arith.constant 100 : index
    %c0_165 = arith.constant 0 : index
    %153 = vector.load %arg10[%c100, %c0_165] : memref<144x32xf32, #tpu.memory_space<vmem>>, vector<16x32xf32>
    %c7_166 = arith.constant 7 : index
    %c0_167 = arith.constant 0 : index
    %c0_168 = arith.constant 0 : index
    %154 = vector.load %arg3[%c7_166, %c0_167, %c0_168] : memref<9x32x64xf32, #tpu.memory_space<vmem>>, vector<1x32x64xf32>
    %155 = vector.shape_cast %154 : vector<1x32x64xf32> to vector<32x64xf32>
    %cst_169 = arith.constant dense<0.000000e+00> : vector<16x64xf32>
    %156 = tpu.matmul %153, %155, %cst_169 {dimension_numbers = #tpu.dot_dimension_numbers<[1], [0], [0], [1], [0, 0, 1, 1], [], []>} : vector<16x32xf32>, vector<32x64xf32>, vector<16x64xf32> -> vector<16x64xf32>
    %157 = arith.addf %152, %156 : vector<16x64xf32>
    %c104 = arith.constant 104 : index
    %c0_170 = arith.constant 0 : index
    %158 = vector.load %arg10[%c104, %c0_170] : memref<144x32xf32, #tpu.memory_space<vmem>>, vector<16x32xf32>
    %c8_171 = arith.constant 8 : index
    %c0_172 = arith.constant 0 : index
    %c0_173 = arith.constant 0 : index
    %159 = vector.load %arg3[%c8_171, %c0_172, %c0_173] : memref<9x32x64xf32, #tpu.memory_space<vmem>>, vector<1x32x64xf32>
    %160 = vector.shape_cast %159 : vector<1x32x64xf32> to vector<32x64xf32>
    %cst_174 = arith.constant dense<0.000000e+00> : vector<16x64xf32>
    %161 = tpu.matmul %158, %160, %cst_174 {dimension_numbers = #tpu.dot_dimension_numbers<[1], [0], [0], [1], [0, 0, 1, 1], [], []>} : vector<16x32xf32>, vector<32x64xf32>, vector<16x64xf32> -> vector<16x64xf32>
    %162 = arith.addf %157, %161 : vector<16x64xf32>
    %c2_175 = arith.constant 2 : index
    %c0_176 = arith.constant 0 : index
    %c0_177 = arith.constant 0 : index
    %163 = vector.load %arg11[%c2_175, %c0_176, %c0_177] : memref<4x16x64xf32, #tpu.memory_space<vmem>>, vector<1x16x64xf32>
    %164 = vector.shape_cast %163 : vector<1x16x64xf32> to vector<16x64xf32>
    %165 = vector.shape_cast %162 : vector<16x64xf32> to vector<1x16x64xf32>
    tpu.vector_store %arg11[%c2_175, %c0_176, %c0_177], %165 {strides = array<i32>} : memref<4x16x64xf32, #tpu.memory_space<vmem>>, vector<1x16x64xf32>,
    %c72_178 = arith.constant 72 : index
    %c0_179 = arith.constant 0 : index
    %166 = vector.load %arg10[%c72_178, %c0_179] : memref<144x32xf32, #tpu.memory_space<vmem>>, vector<16x32xf32>
    %c0_180 = arith.constant 0 : index
    %c0_181 = arith.constant 0 : index
    %c0_182 = arith.constant 0 : index
    %167 = vector.load %arg3[%c0_180, %c0_181, %c0_182] : memref<9x32x64xf32, #tpu.memory_space<vmem>>, vector<1x32x64xf32>
    %168 = vector.shape_cast %167 : vector<1x32x64xf32> to vector<32x64xf32>
    %cst_183 = arith.constant dense<0.000000e+00> : vector<16x64xf32>
    %169 = tpu.matmul %166, %168, %cst_183 {dimension_numbers = #tpu.dot_dimension_numbers<[1], [0], [0], [1], [0, 0, 1, 1], [], []>} : vector<16x32xf32>, vector<32x64xf32>, vector<16x64xf32> -> vector<16x64xf32>
    %c76_184 = arith.constant 76 : index
    %c0_185 = arith.constant 0 : index
    %170 = vector.load %arg10[%c76_184, %c0_185] : memref<144x32xf32, #tpu.memory_space<vmem>>, vector<16x32xf32>
    %c1_186 = arith.constant 1 : index
    %c0_187 = arith.constant 0 : index
    %c0_188 = arith.constant 0 : index
    %171 = vector.load %arg3[%c1_186, %c0_187, %c0_188] : memref<9x32x64xf32, #tpu.memory_space<vmem>>, vector<1x32x64xf32>
    %172 = vector.shape_cast %171 : vector<1x32x64xf32> to vector<32x64xf32>
    %cst_189 = arith.constant dense<0.000000e+00> : vector<16x64xf32>
    %173 = tpu.matmul %170, %172, %cst_189 {dimension_numbers = #tpu.dot_dimension_numbers<[1], [0], [0], [1], [0, 0, 1, 1], [], []>} : vector<16x32xf32>, vector<32x64xf32>, vector<16x64xf32> -> vector<16x64xf32>
    %174 = arith.addf %169, %173 : vector<16x64xf32>
    %c80_190 = arith.constant 80 : index
    %c0_191 = arith.constant 0 : index
    %175 = vector.load %arg10[%c80_190, %c0_191] : memref<144x32xf32, #tpu.memory_space<vmem>>, vector<16x32xf32>
    %c2_192 = arith.constant 2 : index
    %c0_193 = arith.constant 0 : index
    %c0_194 = arith.constant 0 : index
    %176 = vector.load %arg3[%c2_192, %c0_193, %c0_194] : memref<9x32x64xf32, #tpu.memory_space<vmem>>, vector<1x32x64xf32>
    %177 = vector.shape_cast %176 : vector<1x32x64xf32> to vector<32x64xf32>
    %cst_195 = arith.constant dense<0.000000e+00> : vector<16x64xf32>
    %178 = tpu.matmul %175, %177, %cst_195 {dimension_numbers = #tpu.dot_dimension_numbers<[1], [0], [0], [1], [0, 0, 1, 1], [], []>} : vector<16x32xf32>, vector<32x64xf32>, vector<16x64xf32> -> vector<16x64xf32>
    %179 = arith.addf %174, %178 : vector<16x64xf32>
    %c96_196 = arith.constant 96 : index
    %c0_197 = arith.constant 0 : index
    %180 = vector.load %arg10[%c96_196, %c0_197] : memref<144x32xf32, #tpu.memory_space<vmem>>, vector<16x32xf32>
    %c3_198 = arith.constant 3 : index
    %c0_199 = arith.constant 0 : index
    %c0_200 = arith.constant 0 : index
    %181 = vector.load %arg3[%c3_198, %c0_199, %c0_200] : memref<9x32x64xf32, #tpu.memory_space<vmem>>, vector<1x32x64xf32>
    %182 = vector.shape_cast %181 : vector<1x32x64xf32> to vector<32x64xf32>
    %cst_201 = arith.constant dense<0.000000e+00> : vector<16x64xf32>
    %183 = tpu.matmul %180, %182, %cst_201 {dimension_numbers = #tpu.dot_dimension_numbers<[1], [0], [0], [1], [0, 0, 1, 1], [], []>} : vector<16x32xf32>, vector<32x64xf32>, vector<16x64xf32> -> vector<16x64xf32>
    %184 = arith.addf %179, %183 : vector<16x64xf32>
    %c100_202 = arith.constant 100 : index
    %c0_203 = arith.constant 0 : index
    %185 = vector.load %arg10[%c100_202, %c0_203] : memref<144x32xf32, #tpu.memory_space<vmem>>, vector<16x32xf32>
    %c4_204 = arith.constant 4 : index
    %c0_205 = arith.constant 0 : index
    %c0_206 = arith.constant 0 : index
    %186 = vector.load %arg3[%c4_204, %c0_205, %c0_206] : memref<9x32x64xf32, #tpu.memory_space<vmem>>, vector<1x32x64xf32>
    %187 = vector.shape_cast %186 : vector<1x32x64xf32> to vector<32x64xf32>
    %cst_207 = arith.constant dense<0.000000e+00> : vector<16x64xf32>
    %188 = tpu.matmul %185, %187, %cst_207 {dimension_numbers = #tpu.dot_dimension_numbers<[1], [0], [0], [1], [0, 0, 1, 1], [], []>} : vector<16x32xf32>, vector<32x64xf32>, vector<16x64xf32> -> vector<16x64xf32>
    %189 = arith.addf %184, %188 : vector<16x64xf32>
    %c104_208 = arith.constant 104 : index
    %c0_209 = arith.constant 0 : index
    %190 = vector.load %arg10[%c104_208, %c0_209] : memref<144x32xf32, #tpu.memory_space<vmem>>, vector<16x32xf32>
    %c5_210 = arith.constant 5 : index
    %c0_211 = arith.constant 0 : index
    %c0_212 = arith.constant 0 : index
    %191 = vector.load %arg3[%c5_210, %c0_211, %c0_212] : memref<9x32x64xf32, #tpu.memory_space<vmem>>, vector<1x32x64xf32>
    %192 = vector.shape_cast %191 : vector<1x32x64xf32> to vector<32x64xf32>
    %cst_213 = arith.constant dense<0.000000e+00> : vector<16x64xf32>
    %193 = tpu.matmul %190, %192, %cst_213 {dimension_numbers = #tpu.dot_dimension_numbers<[1], [0], [0], [1], [0, 0, 1, 1], [], []>} : vector<16x32xf32>, vector<32x64xf32>, vector<16x64xf32> -> vector<16x64xf32>
    %194 = arith.addf %189, %193 : vector<16x64xf32>
    %c120 = arith.constant 120 : index
    %c0_214 = arith.constant 0 : index
    %195 = vector.load %arg10[%c120, %c0_214] : memref<144x32xf32, #tpu.memory_space<vmem>>, vector<16x32xf32>
    %c6_215 = arith.constant 6 : index
    %c0_216 = arith.constant 0 : index
    %c0_217 = arith.constant 0 : index
    %196 = vector.load %arg3[%c6_215, %c0_216, %c0_217] : memref<9x32x64xf32, #tpu.memory_space<vmem>>, vector<1x32x64xf32>
    %197 = vector.shape_cast %196 : vector<1x32x64xf32> to vector<32x64xf32>
    %cst_218 = arith.constant dense<0.000000e+00> : vector<16x64xf32>
    %198 = tpu.matmul %195, %197, %cst_218 {dimension_numbers = #tpu.dot_dimension_numbers<[1], [0], [0], [1], [0, 0, 1, 1], [], []>} : vector<16x32xf32>, vector<32x64xf32>, vector<16x64xf32> -> vector<16x64xf32>
    %199 = arith.addf %194, %198 : vector<16x64xf32>
    %c124 = arith.constant 124 : index
    %c0_219 = arith.constant 0 : index
    %200 = vector.load %arg10[%c124, %c0_219] : memref<144x32xf32, #tpu.memory_space<vmem>>, vector<16x32xf32>
    %c7_220 = arith.constant 7 : index
    %c0_221 = arith.constant 0 : index
    %c0_222 = arith.constant 0 : index
    %201 = vector.load %arg3[%c7_220, %c0_221, %c0_222] : memref<9x32x64xf32, #tpu.memory_space<vmem>>, vector<1x32x64xf32>
    %202 = vector.shape_cast %201 : vector<1x32x64xf32> to vector<32x64xf32>
    %cst_223 = arith.constant dense<0.000000e+00> : vector<16x64xf32>
    %203 = tpu.matmul %200, %202, %cst_223 {dimension_numbers = #tpu.dot_dimension_numbers<[1], [0], [0], [1], [0, 0, 1, 1], [], []>} : vector<16x32xf32>, vector<32x64xf32>, vector<16x64xf32> -> vector<16x64xf32>
    %204 = arith.addf %199, %203 : vector<16x64xf32>
    %c128 = arith.constant 128 : index
    %c0_224 = arith.constant 0 : index
    %205 = vector.load %arg10[%c128, %c0_224] : memref<144x32xf32, #tpu.memory_space<vmem>>, vector<16x32xf32>
    %c8_225 = arith.constant 8 : index
    %c0_226 = arith.constant 0 : index
    %c0_227 = arith.constant 0 : index
    %206 = vector.load %arg3[%c8_225, %c0_226, %c0_227] : memref<9x32x64xf32, #tpu.memory_space<vmem>>, vector<1x32x64xf32>
    %207 = vector.shape_cast %206 : vector<1x32x64xf32> to vector<32x64xf32>
    %cst_228 = arith.constant dense<0.000000e+00> : vector<16x64xf32>
    %208 = tpu.matmul %205, %207, %cst_228 {dimension_numbers = #tpu.dot_dimension_numbers<[1], [0], [0], [1], [0, 0, 1, 1], [], []>} : vector<16x32xf32>, vector<32x64xf32>, vector<16x64xf32> -> vector<16x64xf32>
    %209 = arith.addf %204, %208 : vector<16x64xf32>
    %c3_229 = arith.constant 3 : index
    %c0_230 = arith.constant 0 : index
    %c0_231 = arith.constant 0 : index
    %210 = vector.load %arg11[%c3_229, %c0_230, %c0_231] : memref<4x16x64xf32, #tpu.memory_space<vmem>>, vector<1x16x64xf32>
    %211 = vector.shape_cast %210 : vector<1x16x64xf32> to vector<16x64xf32>
    %212 = vector.shape_cast %209 : vector<16x64xf32> to vector<1x16x64xf32>
    tpu.vector_store %arg11[%c3_229, %c0_230, %c0_231], %212 {strides = array<i32>} : memref<4x16x64xf32, #tpu.memory_space<vmem>>, vector<1x16x64xf32>,
    %c0_232 = arith.constant 0 : index
    %c0_233 = arith.constant 0 : index
    %c0_234 = arith.constant 0 : index
    %213 = vector.load %arg11[%c0_232, %c0_233, %c0_234] : memref<4x16x64xf32, #tpu.memory_space<vmem>>, vector<1x2x64xf32>
    %214 = vector.shape_cast %213 : vector<1x2x64xf32> to vector<2x64xf32>
    %c0_235 = arith.constant 0 : index
    %c4_236 = arith.constant 4 : index
    %c0_237 = arith.constant 0 : index
    %215 = vector.load %arg11[%c0_235, %c4_236, %c0_237] : memref<4x16x64xf32, #tpu.memory_space<vmem>>, vector<1x2x64xf32>
    %216 = vector.shape_cast %215 : vector<1x2x64xf32> to vector<2x64xf32>
    %c1_238 = arith.constant 1 : index
    %c0_239 = arith.constant 0 : index
    %c0_240 = arith.constant 0 : index
    %217 = vector.load %arg11[%c1_238, %c0_239, %c0_240] : memref<4x16x64xf32, #tpu.memory_space<vmem>>, vector<1x2x64xf32>
    %218 = vector.shape_cast %217 : vector<1x2x64xf32> to vector<2x64xf32>
    %c1_241 = arith.constant 1 : index
    %c4_242 = arith.constant 4 : index
    %c0_243 = arith.constant 0 : index
    %219 = vector.load %arg11[%c1_241, %c4_242, %c0_243] : memref<4x16x64xf32, #tpu.memory_space<vmem>>, vector<1x2x64xf32>
    %220 = vector.shape_cast %219 : vector<1x2x64xf32> to vector<2x64xf32>
    %221 = arith.maximumf %214, %216 : vector<2x64xf32>
    %222 = arith.maximumf %218, %220 : vector<2x64xf32>
    %223 = arith.maximumf %221, %222 : vector<2x64xf32>
    %c0_244 = arith.constant 0 : index
    %c0_245 = arith.constant 0 : index
    %224 = vector.load %arg4[%c0_244, %c0_245] : memref<1x64xf32, #tpu.memory_space<vmem>>, vector<1x64xf32>
    %225 = vector.broadcast %224 : vector<1x64xf32> to vector<2x64xf32>
    %226 = arith.addf %223, %225 : vector<2x64xf32>
    %cst_246 = arith.constant 0.000000e+00 : f32
    %227 = vector.broadcast %cst_246 : f32 to vector<2x64xf32>
    %228 = arith.maximumf %226, %227 : vector<2x64xf32>
    %c0_247 = arith.constant 0 : index
    %c0_248 = arith.constant 0 : index
    %c0_249 = arith.constant 0 : index
    %229 = vector.load %arg5[%c0_247, %c0_248, %c0_249] : memref<8x64x128xf32, #tpu.memory_space<vmem>>, vector<1x64x128xf32>
    %230 = vector.shape_cast %229 : vector<1x64x128xf32> to vector<64x128xf32>
    %cst_250 = arith.constant dense<0.000000e+00> : vector<2x128xf32>
    %231 = tpu.matmul %228, %230, %cst_250 {dimension_numbers = #tpu.dot_dimension_numbers<[1], [0], [0], [1], [0, 0, 1, 1], [], []>} : vector<2x64xf32>, vector<64x128xf32>, vector<2x128xf32> -> vector<2x128xf32>
    %c0_251 = arith.constant 0 : index
    %c8_252 = arith.constant 8 : index
    %c0_253 = arith.constant 0 : index
    %232 = vector.load %arg11[%c0_251, %c8_252, %c0_253] : memref<4x16x64xf32, #tpu.memory_space<vmem>>, vector<1x2x64xf32>
    %233 = vector.shape_cast %232 : vector<1x2x64xf32> to vector<2x64xf32>
    %c0_254 = arith.constant 0 : index
    %c12 = arith.constant 12 : index
    %c0_255 = arith.constant 0 : index
    %234 = vector.load %arg11[%c0_254, %c12, %c0_255] : memref<4x16x64xf32, #tpu.memory_space<vmem>>, vector<1x2x64xf32>
    %235 = vector.shape_cast %234 : vector<1x2x64xf32> to vector<2x64xf32>
    %c1_256 = arith.constant 1 : index
    %c8_257 = arith.constant 8 : index
    %c0_258 = arith.constant 0 : index
    %236 = vector.load %arg11[%c1_256, %c8_257, %c0_258] : memref<4x16x64xf32, #tpu.memory_space<vmem>>, vector<1x2x64xf32>
    %237 = vector.shape_cast %236 : vector<1x2x64xf32> to vector<2x64xf32>
    %c1_259 = arith.constant 1 : index
    %c12_260 = arith.constant 12 : index
    %c0_261 = arith.constant 0 : index
    %238 = vector.load %arg11[%c1_259, %c12_260, %c0_261] : memref<4x16x64xf32, #tpu.memory_space<vmem>>, vector<1x2x64xf32>
    %239 = vector.shape_cast %238 : vector<1x2x64xf32> to vector<2x64xf32>
    %240 = arith.maximumf %233, %235 : vector<2x64xf32>
    %241 = arith.maximumf %237, %239 : vector<2x64xf32>
    %242 = arith.maximumf %240, %241 : vector<2x64xf32>
    %c0_262 = arith.constant 0 : index
    %c0_263 = arith.constant 0 : index
    %243 = vector.load %arg4[%c0_262, %c0_263] : memref<1x64xf32, #tpu.memory_space<vmem>>, vector<1x64xf32>
    %244 = vector.broadcast %243 : vector<1x64xf32> to vector<2x64xf32>
    %245 = arith.addf %242, %244 : vector<2x64xf32>
    %cst_264 = arith.constant 0.000000e+00 : f32
    %246 = vector.broadcast %cst_264 : f32 to vector<2x64xf32>
    %247 = arith.maximumf %245, %246 : vector<2x64xf32>
    %c1_265 = arith.constant 1 : index
    %c0_266 = arith.constant 0 : index
    %c0_267 = arith.constant 0 : index
    %248 = vector.load %arg5[%c1_265, %c0_266, %c0_267] : memref<8x64x128xf32, #tpu.memory_space<vmem>>, vector<1x64x128xf32>
    %249 = vector.shape_cast %248 : vector<1x64x128xf32> to vector<64x128xf32>
    %cst_268 = arith.constant dense<0.000000e+00> : vector<2x128xf32>
    %250 = tpu.matmul %247, %249, %cst_268 {dimension_numbers = #tpu.dot_dimension_numbers<[1], [0], [0], [1], [0, 0, 1, 1], [], []>} : vector<2x64xf32>, vector<64x128xf32>, vector<2x128xf32> -> vector<2x128xf32>
    %251 = arith.addf %231, %250 : vector<2x128xf32>
    %c2_269 = arith.constant 2 : index
    %c0_270 = arith.constant 0 : index
    %c0_271 = arith.constant 0 : index
    %252 = vector.load %arg11[%c2_269, %c0_270, %c0_271] : memref<4x16x64xf32, #tpu.memory_space<vmem>>, vector<1x2x64xf32>
    %253 = vector.shape_cast %252 : vector<1x2x64xf32> to vector<2x64xf32>
    %c2_272 = arith.constant 2 : index
    %c4_273 = arith.constant 4 : index
    %c0_274 = arith.constant 0 : index
    %254 = vector.load %arg11[%c2_272, %c4_273, %c0_274] : memref<4x16x64xf32, #tpu.memory_space<vmem>>, vector<1x2x64xf32>
    %255 = vector.shape_cast %254 : vector<1x2x64xf32> to vector<2x64xf32>
    %c3_275 = arith.constant 3 : index
    %c0_276 = arith.constant 0 : index
    %c0_277 = arith.constant 0 : index
    %256 = vector.load %arg11[%c3_275, %c0_276, %c0_277] : memref<4x16x64xf32, #tpu.memory_space<vmem>>, vector<1x2x64xf32>
    %257 = vector.shape_cast %256 : vector<1x2x64xf32> to vector<2x64xf32>
    %c3_278 = arith.constant 3 : index
    %c4_279 = arith.constant 4 : index
    %c0_280 = arith.constant 0 : index
    %258 = vector.load %arg11[%c3_278, %c4_279, %c0_280] : memref<4x16x64xf32, #tpu.memory_space<vmem>>, vector<1x2x64xf32>
    %259 = vector.shape_cast %258 : vector<1x2x64xf32> to vector<2x64xf32>
    %260 = arith.maximumf %253, %255 : vector<2x64xf32>
    %261 = arith.maximumf %257, %259 : vector<2x64xf32>
    %262 = arith.maximumf %260, %261 : vector<2x64xf32>
    %c0_281 = arith.constant 0 : index
    %c0_282 = arith.constant 0 : index
    %263 = vector.load %arg4[%c0_281, %c0_282] : memref<1x64xf32, #tpu.memory_space<vmem>>, vector<1x64xf32>
    %264 = vector.broadcast %263 : vector<1x64xf32> to vector<2x64xf32>
    %265 = arith.addf %262, %264 : vector<2x64xf32>
    %cst_283 = arith.constant 0.000000e+00 : f32
    %266 = vector.broadcast %cst_283 : f32 to vector<2x64xf32>
    %267 = arith.maximumf %265, %266 : vector<2x64xf32>
    %c2_284 = arith.constant 2 : index
    %c0_285 = arith.constant 0 : index
    %c0_286 = arith.constant 0 : index
    %268 = vector.load %arg5[%c2_284, %c0_285, %c0_286] : memref<8x64x128xf32, #tpu.memory_space<vmem>>, vector<1x64x128xf32>
    %269 = vector.shape_cast %268 : vector<1x64x128xf32> to vector<64x128xf32>
    %cst_287 = arith.constant dense<0.000000e+00> : vector<2x128xf32>
    %270 = tpu.matmul %267, %269, %cst_287 {dimension_numbers = #tpu.dot_dimension_numbers<[1], [0], [0], [1], [0, 0, 1, 1], [], []>} : vector<2x64xf32>, vector<64x128xf32>, vector<2x128xf32> -> vector<2x128xf32>
    %271 = arith.addf %251, %270 : vector<2x128xf32>
    %c2_288 = arith.constant 2 : index
    %c8_289 = arith.constant 8 : index
    %c0_290 = arith.constant 0 : index
    %272 = vector.load %arg11[%c2_288, %c8_289, %c0_290] : memref<4x16x64xf32, #tpu.memory_space<vmem>>, vector<1x2x64xf32>
    %273 = vector.shape_cast %272 : vector<1x2x64xf32> to vector<2x64xf32>
    %c2_291 = arith.constant 2 : index
    %c12_292 = arith.constant 12 : index
    %c0_293 = arith.constant 0 : index
    %274 = vector.load %arg11[%c2_291, %c12_292, %c0_293] : memref<4x16x64xf32, #tpu.memory_space<vmem>>, vector<1x2x64xf32>
    %275 = vector.shape_cast %274 : vector<1x2x64xf32> to vector<2x64xf32>
    %c3_294 = arith.constant 3 : index
    %c8_295 = arith.constant 8 : index
    %c0_296 = arith.constant 0 : index
    %276 = vector.load %arg11[%c3_294, %c8_295, %c0_296] : memref<4x16x64xf32, #tpu.memory_space<vmem>>, vector<1x2x64xf32>
    %277 = vector.shape_cast %276 : vector<1x2x64xf32> to vector<2x64xf32>
    %c3_297 = arith.constant 3 : index
    %c12_298 = arith.constant 12 : index
    %c0_299 = arith.constant 0 : index
    %278 = vector.load %arg11[%c3_297, %c12_298, %c0_299] : memref<4x16x64xf32, #tpu.memory_space<vmem>>, vector<1x2x64xf32>
    %279 = vector.shape_cast %278 : vector<1x2x64xf32> to vector<2x64xf32>
    %280 = arith.maximumf %273, %275 : vector<2x64xf32>
    %281 = arith.maximumf %277, %279 : vector<2x64xf32>
    %282 = arith.maximumf %280, %281 : vector<2x64xf32>
    %c0_300 = arith.constant 0 : index
    %c0_301 = arith.constant 0 : index
    %283 = vector.load %arg4[%c0_300, %c0_301] : memref<1x64xf32, #tpu.memory_space<vmem>>, vector<1x64xf32>
    %284 = vector.broadcast %283 : vector<1x64xf32> to vector<2x64xf32>
    %285 = arith.addf %282, %284 : vector<2x64xf32>
    %cst_302 = arith.constant 0.000000e+00 : f32
    %286 = vector.broadcast %cst_302 : f32 to vector<2x64xf32>
    %287 = arith.maximumf %285, %286 : vector<2x64xf32>
    %c3_303 = arith.constant 3 : index
    %c0_304 = arith.constant 0 : index
    %c0_305 = arith.constant 0 : index
    %288 = vector.load %arg5[%c3_303, %c0_304, %c0_305] : memref<8x64x128xf32, #tpu.memory_space<vmem>>, vector<1x64x128xf32>
    %289 = vector.shape_cast %288 : vector<1x64x128xf32> to vector<64x128xf32>
    %cst_306 = arith.constant dense<0.000000e+00> : vector<2x128xf32>
    %290 = tpu.matmul %287, %289, %cst_306 {dimension_numbers = #tpu.dot_dimension_numbers<[1], [0], [0], [1], [0, 0, 1, 1], [], []>} : vector<2x64xf32>, vector<64x128xf32>, vector<2x128xf32> -> vector<2x128xf32>
    %291 = arith.addf %271, %290 : vector<2x128xf32>
    %c0_307 = arith.constant 0 : index
    %c2_308 = arith.constant 2 : index
    %c0_309 = arith.constant 0 : index
    %292 = vector.load %arg11[%c0_307, %c2_308, %c0_309] : memref<4x16x64xf32, #tpu.memory_space<vmem>>, vector<1x2x64xf32>
    %293 = vector.shape_cast %292 : vector<1x2x64xf32> to vector<2x64xf32>
    %c0_310 = arith.constant 0 : index
    %c6_311 = arith.constant 6 : index
    %c0_312 = arith.constant 0 : index
    %294 = vector.load %arg11[%c0_310, %c6_311, %c0_312] : memref<4x16x64xf32, #tpu.memory_space<vmem>>, vector<1x2x64xf32>
    %295 = vector.shape_cast %294 : vector<1x2x64xf32> to vector<2x64xf32>
    %c1_313 = arith.constant 1 : index
    %c2_314 = arith.constant 2 : index
    %c0_315 = arith.constant 0 : index
    %296 = vector.load %arg11[%c1_313, %c2_314, %c0_315] : memref<4x16x64xf32, #tpu.memory_space<vmem>>, vector<1x2x64xf32>
    %297 = vector.shape_cast %296 : vector<1x2x64xf32> to vector<2x64xf32>
    %c1_316 = arith.constant 1 : index
    %c6_317 = arith.constant 6 : index
    %c0_318 = arith.constant 0 : index
    %298 = vector.load %arg11[%c1_316, %c6_317, %c0_318] : memref<4x16x64xf32, #tpu.memory_space<vmem>>, vector<1x2x64xf32>
    %299 = vector.shape_cast %298 : vector<1x2x64xf32> to vector<2x64xf32>
    %300 = arith.maximumf %293, %295 : vector<2x64xf32>
    %301 = arith.maximumf %297, %299 : vector<2x64xf32>
    %302 = arith.maximumf %300, %301 : vector<2x64xf32>
    %c0_319 = arith.constant 0 : index
    %c0_320 = arith.constant 0 : index
    %303 = vector.load %arg4[%c0_319, %c0_320] : memref<1x64xf32, #tpu.memory_space<vmem>>, vector<1x64xf32>
    %304 = vector.broadcast %303 : vector<1x64xf32> to vector<2x64xf32>
    %305 = arith.addf %302, %304 : vector<2x64xf32>
    %cst_321 = arith.constant 0.000000e+00 : f32
    %306 = vector.broadcast %cst_321 : f32 to vector<2x64xf32>
    %307 = arith.maximumf %305, %306 : vector<2x64xf32>
    %c4_322 = arith.constant 4 : index
    %c0_323 = arith.constant 0 : index
    %c0_324 = arith.constant 0 : index
    %308 = vector.load %arg5[%c4_322, %c0_323, %c0_324] : memref<8x64x128xf32, #tpu.memory_space<vmem>>, vector<1x64x128xf32>
    %309 = vector.shape_cast %308 : vector<1x64x128xf32> to vector<64x128xf32>
    %cst_325 = arith.constant dense<0.000000e+00> : vector<2x128xf32>
    %310 = tpu.matmul %307, %309, %cst_325 {dimension_numbers = #tpu.dot_dimension_numbers<[1], [0], [0], [1], [0, 0, 1, 1], [], []>} : vector<2x64xf32>, vector<64x128xf32>, vector<2x128xf32> -> vector<2x128xf32>
    %311 = arith.addf %291, %310 : vector<2x128xf32>
    %c0_326 = arith.constant 0 : index
    %c10 = arith.constant 10 : index
    %c0_327 = arith.constant 0 : index
    %312 = vector.load %arg11[%c0_326, %c10, %c0_327] : memref<4x16x64xf32, #tpu.memory_space<vmem>>, vector<1x2x64xf32>
    %313 = vector.shape_cast %312 : vector<1x2x64xf32> to vector<2x64xf32>
    %c0_328 = arith.constant 0 : index
    %c14 = arith.constant 14 : index
    %c0_329 = arith.constant 0 : index
    %314 = vector.load %arg11[%c0_328, %c14, %c0_329] : memref<4x16x64xf32, #tpu.memory_space<vmem>>, vector<1x2x64xf32>
    %315 = vector.shape_cast %314 : vector<1x2x64xf32> to vector<2x64xf32>
    %c1_330 = arith.constant 1 : index
    %c10_331 = arith.constant 10 : index
    %c0_332 = arith.constant 0 : index
    %316 = vector.load %arg11[%c1_330, %c10_331, %c0_332] : memref<4x16x64xf32, #tpu.memory_space<vmem>>, vector<1x2x64xf32>
    %317 = vector.shape_cast %316 : vector<1x2x64xf32> to vector<2x64xf32>
    %c1_333 = arith.constant 1 : index
    %c14_334 = arith.constant 14 : index
    %c0_335 = arith.constant 0 : index
    %318 = vector.load %arg11[%c1_333, %c14_334, %c0_335] : memref<4x16x64xf32, #tpu.memory_space<vmem>>, vector<1x2x64xf32>
    %319 = vector.shape_cast %318 : vector<1x2x64xf32> to vector<2x64xf32>
    %320 = arith.maximumf %313, %315 : vector<2x64xf32>
    %321 = arith.maximumf %317, %319 : vector<2x64xf32>
    %322 = arith.maximumf %320, %321 : vector<2x64xf32>
    %c0_336 = arith.constant 0 : index
    %c0_337 = arith.constant 0 : index
    %323 = vector.load %arg4[%c0_336, %c0_337] : memref<1x64xf32, #tpu.memory_space<vmem>>, vector<1x64xf32>
    %324 = vector.broadcast %323 : vector<1x64xf32> to vector<2x64xf32>
    %325 = arith.addf %322, %324 : vector<2x64xf32>
    %cst_338 = arith.constant 0.000000e+00 : f32
    %326 = vector.broadcast %cst_338 : f32 to vector<2x64xf32>
    %327 = arith.maximumf %325, %326 : vector<2x64xf32>
    %c5_339 = arith.constant 5 : index
    %c0_340 = arith.constant 0 : index
    %c0_341 = arith.constant 0 : index
    %328 = vector.load %arg5[%c5_339, %c0_340, %c0_341] : memref<8x64x128xf32, #tpu.memory_space<vmem>>, vector<1x64x128xf32>
    %329 = vector.shape_cast %328 : vector<1x64x128xf32> to vector<64x128xf32>
    %cst_342 = arith.constant dense<0.000000e+00> : vector<2x128xf32>
    %330 = tpu.matmul %327, %329, %cst_342 {dimension_numbers = #tpu.dot_dimension_numbers<[1], [0], [0], [1], [0, 0, 1, 1], [], []>} : vector<2x64xf32>, vector<64x128xf32>, vector<2x128xf32> -> vector<2x128xf32>
    %331 = arith.addf %311, %330 : vector<2x128xf32>
    %c2_343 = arith.constant 2 : index
    %c2_344 = arith.constant 2 : index
    %c0_345 = arith.constant 0 : index
    %332 = vector.load %arg11[%c2_343, %c2_344, %c0_345] : memref<4x16x64xf32, #tpu.memory_space<vmem>>, vector<1x2x64xf32>
    %333 = vector.shape_cast %332 : vector<1x2x64xf32> to vector<2x64xf32>
    %c2_346 = arith.constant 2 : index
    %c6_347 = arith.constant 6 : index
    %c0_348 = arith.constant 0 : index
    %334 = vector.load %arg11[%c2_346, %c6_347, %c0_348] : memref<4x16x64xf32, #tpu.memory_space<vmem>>, vector<1x2x64xf32>
    %335 = vector.shape_cast %334 : vector<1x2x64xf32> to vector<2x64xf32>
    %c3_349 = arith.constant 3 : index
    %c2_350 = arith.constant 2 : index
    %c0_351 = arith.constant 0 : index
    %336 = vector.load %arg11[%c3_349, %c2_350, %c0_351] : memref<4x16x64xf32, #tpu.memory_space<vmem>>, vector<1x2x64xf32>
    %337 = vector.shape_cast %336 : vector<1x2x64xf32> to vector<2x64xf32>
    %c3_352 = arith.constant 3 : index
    %c6_353 = arith.constant 6 : index
    %c0_354 = arith.constant 0 : index
    %338 = vector.load %arg11[%c3_352, %c6_353, %c0_354] : memref<4x16x64xf32, #tpu.memory_space<vmem>>, vector<1x2x64xf32>
    %339 = vector.shape_cast %338 : vector<1x2x64xf32> to vector<2x64xf32>
    %340 = arith.maximumf %333, %335 : vector<2x64xf32>
    %341 = arith.maximumf %337, %339 : vector<2x64xf32>
    %342 = arith.maximumf %340, %341 : vector<2x64xf32>
    %c0_355 = arith.constant 0 : index
    %c0_356 = arith.constant 0 : index
    %343 = vector.load %arg4[%c0_355, %c0_356] : memref<1x64xf32, #tpu.memory_space<vmem>>, vector<1x64xf32>
    %344 = vector.broadcast %343 : vector<1x64xf32> to vector<2x64xf32>
    %345 = arith.addf %342, %344 : vector<2x64xf32>
    %cst_357 = arith.constant 0.000000e+00 : f32
    %346 = vector.broadcast %cst_357 : f32 to vector<2x64xf32>
    %347 = arith.maximumf %345, %346 : vector<2x64xf32>
    %c6_358 = arith.constant 6 : index
    %c0_359 = arith.constant 0 : index
    %c0_360 = arith.constant 0 : index
    %348 = vector.load %arg5[%c6_358, %c0_359, %c0_360] : memref<8x64x128xf32, #tpu.memory_space<vmem>>, vector<1x64x128xf32>
    %349 = vector.shape_cast %348 : vector<1x64x128xf32> to vector<64x128xf32>
    %cst_361 = arith.constant dense<0.000000e+00> : vector<2x128xf32>
    %350 = tpu.matmul %347, %349, %cst_361 {dimension_numbers = #tpu.dot_dimension_numbers<[1], [0], [0], [1], [0, 0, 1, 1], [], []>} : vector<2x64xf32>, vector<64x128xf32>, vector<2x128xf32> -> vector<2x128xf32>
    %351 = arith.addf %331, %350 : vector<2x128xf32>
    %c2_362 = arith.constant 2 : index
    %c10_363 = arith.constant 10 : index
    %c0_364 = arith.constant 0 : index
    %352 = vector.load %arg11[%c2_362, %c10_363, %c0_364] : memref<4x16x64xf32, #tpu.memory_space<vmem>>, vector<1x2x64xf32>
    %353 = vector.shape_cast %352 : vector<1x2x64xf32> to vector<2x64xf32>
    %c2_365 = arith.constant 2 : index
    %c14_366 = arith.constant 14 : index
    %c0_367 = arith.constant 0 : index
    %354 = vector.load %arg11[%c2_365, %c14_366, %c0_367] : memref<4x16x64xf32, #tpu.memory_space<vmem>>, vector<1x2x64xf32>
    %355 = vector.shape_cast %354 : vector<1x2x64xf32> to vector<2x64xf32>
    %c3_368 = arith.constant 3 : index
    %c10_369 = arith.constant 10 : index
    %c0_370 = arith.constant 0 : index
    %356 = vector.load %arg11[%c3_368, %c10_369, %c0_370] : memref<4x16x64xf32, #tpu.memory_space<vmem>>, vector<1x2x64xf32>
    %357 = vector.shape_cast %356 : vector<1x2x64xf32> to vector<2x64xf32>
    %c3_371 = arith.constant 3 : index
    %c14_372 = arith.constant 14 : index
    %c0_373 = arith.constant 0 : index
    %358 = vector.load %arg11[%c3_371, %c14_372, %c0_373] : memref<4x16x64xf32, #tpu.memory_space<vmem>>, vector<1x2x64xf32>
    %359 = vector.shape_cast %358 : vector<1x2x64xf32> to vector<2x64xf32>
    %360 = arith.maximumf %353, %355 : vector<2x64xf32>
    %361 = arith.maximumf %357, %359 : vector<2x64xf32>
    %362 = arith.maximumf %360, %361 : vector<2x64xf32>
    %c0_374 = arith.constant 0 : index
    %c0_375 = arith.constant 0 : index
    %363 = vector.load %arg4[%c0_374, %c0_375] : memref<1x64xf32, #tpu.memory_space<vmem>>, vector<1x64xf32>
    %364 = vector.broadcast %363 : vector<1x64xf32> to vector<2x64xf32>
    %365 = arith.addf %362, %364 : vector<2x64xf32>
    %cst_376 = arith.constant 0.000000e+00 : f32
    %366 = vector.broadcast %cst_376 : f32 to vector<2x64xf32>
    %367 = arith.maximumf %365, %366 : vector<2x64xf32>
    %c7_377 = arith.constant 7 : index
    %c0_378 = arith.constant 0 : index
    %c0_379 = arith.constant 0 : index
    %368 = vector.load %arg5[%c7_377, %c0_378, %c0_379] : memref<8x64x128xf32, #tpu.memory_space<vmem>>, vector<1x64x128xf32>
    %369 = vector.shape_cast %368 : vector<1x64x128xf32> to vector<64x128xf32>
    %cst_380 = arith.constant dense<0.000000e+00> : vector<2x128xf32>
    %370 = tpu.matmul %367, %369, %cst_380 {dimension_numbers = #tpu.dot_dimension_numbers<[1], [0], [0], [1], [0, 0, 1, 1], [], []>} : vector<2x64xf32>, vector<64x128xf32>, vector<2x128xf32> -> vector<2x128xf32>
    %371 = arith.addf %351, %370 : vector<2x128xf32>
    %c0_381 = arith.constant 0 : index
    %c0_382 = arith.constant 0 : index
    %372 = vector.load %arg6[%c0_381, %c0_382] : memref<1x128xf32, #tpu.memory_space<vmem>>, vector<1x128xf32>
    %373 = vector.broadcast %372 : vector<1x128xf32> to vector<2x128xf32>
    %374 = arith.addf %371, %373 : vector<2x128xf32>
    %cst_383 = arith.constant 0.000000e+00 : f32
    %375 = vector.broadcast %cst_383 : f32 to vector<2x128xf32>
    %376 = arith.maximumf %374, %375 : vector<2x128xf32>
    %c0_384 = arith.constant 0 : index
    %c0_385 = arith.constant 0 : index
    %377 = vector.load %arg7[%c0_384, %c0_385] : memref<1x128xf32, #tpu.memory_space<vmem>>, vector<1x128xf32>
    %378 = vector.broadcast %377 : vector<1x128xf32> to vector<2x128xf32>
    %379 = arith.mulf %376, %378 : vector<2x128xf32>
    %cst_386 = arith.constant dense<0.000000e+00> : vector<2xf32>
    %380 = vector.multi_reduction <add>, %379, %cst_386 [1] : vector<2x128xf32> to vector<2xf32>
    %381 = vector.shape_cast %380 : vector<2xf32> to vector<2x1xf32>
    %c0_387 = arith.constant 0 : index
    %382 = memref.load %arg8[%c0_387] : memref<1xf32, #tpu.memory_space<smem>>
    %383 = vector.broadcast %382 : f32 to vector<2x1xf32>
    %384 = arith.addf %381, %383 : vector<2x1xf32>
    %c0_388 = arith.constant 0 : index
    %c0_389 = arith.constant 0 : index
    %385 = vector.load %arg9[%c0_388, %c0_389] : memref<2x1xf32, #tpu.memory_space<vmem>>, vector<2x1xf32>
    tpu.vector_store %arg9[%c0_388, %c0_389], %384 {strides = array<i32>} : memref<2x1xf32, #tpu.memory_space<vmem>>, vector<2x1xf32>,
    return
  }
}

</mosaic_0001>

<llo_original>
// kernel: net_sharing1_forward.1
$region0: #{net_sharing1_forward.1}
  #allocation0 [shape = 'u32[]', space=smem, size = 0x4, offset = 0x4, fixed_abs, tag = 'smem constant byte address 0x4 - core index']
  #allocation1 [shape = 'u32[144,128]{1,0:T(1,128)}', space=vmem, size = 0x12000, scoped, tag = 'internal scratch']
  #allocation2 [shape = 'f32[144,32]{1,0:T(8,128)}', space=vmem, size = 0x12000, scoped, tag = 'scratch operand']
  #allocation3 [shape = 'f32[4,16,64]{2,1,0:T(8,128)}', space=vmem, size = 0x8000, scoped, tag = 'scratch operand']
  #allocation4 [shape = 'f32[1]{0:T(128)S(6)}', space=smem, size = 0x200, scoped, tag = 'scoped memory for net_sharing1_forward.1']
  %s0 = inlined_call_operand.vmem [shape: f32[4,144,9], index: 0, kind: input, shape index: {}]
  %s1 = inlined_call_operand.vmem [shape: f32[9,32], index: 1, kind: input, shape index: {}]
  %s2 = inlined_call_operand.vmem [shape: f32[1,32], index: 2, kind: input, shape index: {}]
  %s3 = inlined_call_operand.vmem [shape: f32[9,32,64], index: 3, kind: input, shape index: {}]
  %s4 = inlined_call_operand.vmem [shape: f32[1,64], index: 4, kind: input, shape index: {}]
  %s5 = inlined_call_operand.vmem [shape: f32[8,64,128], index: 5, kind: input, shape index: {}]
  %s6 = inlined_call_operand.vmem [shape: f32[1,128], index: 6, kind: input, shape index: {}]
  %s7 = inlined_call_operand.vmem [shape: f32[1,128], index: 7, kind: input, shape index: {}]
  %s8 = inlined_call_operand.<no memory space> [shape: f32[1], index: 8, kind: input, shape index: {}]
  %s9 = inlined_call_operand.vmem [shape: f32[2,1], index: 9, kind: output, shape index: {}]
  %s10 = sld [smem:[#allocation0]]
  $region46: #{net_sharing1_forward.1} parent=0
    _
  %s12 = ssub.s32 1, %s10
  %s13 = scalar_select 0, %s12, %s10
  %14 = sst [smem:[#allocation4]] %s8
  // Predicated region
  $region2: #{net_sharing1_forward.1} parent=0 // pred_check
    _
  $region3: #{net_sharing1_forward.1} parent=0 // pred_check_branch
    %16 = sbr.rel (0) target = $region5
  $region4: #{net_sharing1_forward.1} parent=0 // pred_region
    _
  $region5: #{net_sharing1_forward.1} parent=0 // pred_fallthru
    _
  // Predicated region
  $region6: #{net_sharing1_forward.1} parent=0 // pred_check
    _
  $region7: #{net_sharing1_forward.1} parent=0 // pred_check_branch
    %18 = sbr.rel (0) target = $region9
  $region8: #{net_sharing1_forward.1} parent=0 // pred_region
    _
  $region9: #{net_sharing1_forward.1} parent=0 // pred_fallthru
    _
  // Predicated region
  $region10: #{net_sharing1_forward.1} parent=0 // pred_check
    _
  $region11: #{net_sharing1_forward.1} parent=0 // pred_check_branch
    %20 = sbr.rel (0) target = $region13
  $region12: #{net_sharing1_forward.1} parent=0 // pred_region
    _
  $region13: #{net_sharing1_forward.1} parent=0 // pred_fallthru
    _
  // Predicated region
  $region14: #{net_sharing1_forward.1} parent=0 // pred_check
    _
  $region15: #{net_sharing1_forward.1} parent=0 // pred_check_branch
    %22 = sbr.rel (0) target = $region17
  $region16: #{net_sharing1_forward.1} parent=0 // pred_region
    _
  $region17: #{net_sharing1_forward.1} parent=0 // pred_fallthru
    _
  // Predicated region
  $region18: #{net_sharing1_forward.1} parent=0 // pred_check
    _
  $region19: #{net_sharing1_forward.1} parent=0 // pred_check_branch
    %24 = sbr.rel (0) target = $region21
  $region20: #{net_sharing1_forward.1} parent=0 // pred_region
    _
  $region21: #{net_sharing1_forward.1} parent=0 // pred_fallthru
    _
  // Predicated region
  $region22: #{net_sharing1_forward.1} parent=0 // pred_check
    _
  $region23: #{net_sharing1_forward.1} parent=0 // pred_check_branch
    %26 = sbr.rel (0) target = $region25
  $region24: #{net_sharing1_forward.1} parent=0 // pred_region
    _
  $region25: #{net_sharing1_forward.1} parent=0 // pred_fallthru
    _
  // Predicated region
  $region26: #{net_sharing1_forward.1} parent=0 // pred_check
    _
  $region27: #{net_sharing1_forward.1} parent=0 // pred_check_branch
    %28 = sbr.rel (0) target = $region29
  $region28: #{net_sharing1_forward.1} parent=0 // pred_region
    _
  $region29: #{net_sharing1_forward.1} parent=0 // pred_fallthru
    _
  // Predicated region
  $region30: #{net_sharing1_forward.1} parent=0 // pred_check
    _
  $region31: #{net_sharing1_forward.1} parent=0 // pred_check_branch
    %30 = sbr.rel (0) target = $region33
  $region32: #{net_sharing1_forward.1} parent=0 // pred_region
    _
  $region33: #{net_sharing1_forward.1} parent=0 // pred_fallthru
    _
  // Predicated region
  $region34: #{net_sharing1_forward.1} parent=0 // pred_check
    _
  $region35: #{net_sharing1_forward.1} parent=0 // pred_check_branch
    %32 = sbr.rel (0) target = $region37
  $region36: #{net_sharing1_forward.1} parent=0 // pred_region
    _
  $region37: #{net_sharing1_forward.1} parent=0 // pred_fallthru
    _
  %v33 = vld [vmem:[%s0] sm:$0xff]
  %v34 = vld [vmem:[%s0 + $0x8] sm:$0xff]
  %v35 = vld [vmem:[%s0 + $0x10] sm:$0xff]
  %v36 = vld [vmem:[%s0 + $0x18] sm:$0xff]
  %v37 = vld [vmem:[%s0 + $0x20] sm:$0xff]
  %v38 = vld [vmem:[%s0 + $0x28] sm:$0xff]
  %v39 = vld [vmem:[%s0 + $0x30] sm:$0xff]
  %v40 = vld [vmem:[%s0 + $0x38] sm:$0xff]
  %v41 = vld [vmem:[%s0 + $0x40] sm:$0xff]
  %v42 = vld [vmem:[%s0 + $0x48] sm:$0xff]
  %v43 = vld [vmem:[%s0 + $0x50] sm:$0xff]
  %v44 = vld [vmem:[%s0 + $0x58] sm:$0xff]
  %v45 = vld [vmem:[%s0 + $0x60] sm:$0xff]
  %v46 = vld [vmem:[%s0 + $0x68] sm:$0xff]
  %v47 = vld [vmem:[%s0 + $0x70] sm:$0xff]
  %v48 = vld [vmem:[%s0 + $0x78] sm:$0xff]
  %v49 = vld [vmem:[%s0 + $0x80] sm:$0xff]
  %v50 = vld [vmem:[%s0 + $0x88] sm:$0xff]
  %v51 = vld [vmem:[%s1] sm:$0xff]
  %v52 = vld [vmem:[%s1 + $0x8] sm:$0x1]
  %vm53 = vcmask 72704
  %v55 = vsel %vm53, %v33, 0
  %v58 = vsel %vm53, %v34, 0
  %v61 = vsel %vm53, %v35, 0
  %v64 = vsel %vm53, %v36, 0
  %v67 = vsel %vm53, %v37, 0
  %v70 = vsel %vm53, %v38, 0
  %v73 = vsel %vm53, %v39, 0
  %v76 = vsel %vm53, %v40, 0
  %v79 = vsel %vm53, %v41, 0
  %v82 = vsel %vm53, %v42, 0
  %v85 = vsel %vm53, %v43, 0
  %v88 = vsel %vm53, %v44, 0
  %v91 = vsel %vm53, %v45, 0
  %v94 = vsel %vm53, %v46, 0
  %v97 = vsel %vm53, %v47, 0
  %v100 = vsel %vm53, %v48, 0
  %v103 = vsel %vm53, %v49, 0
  %v106 = vsel %vm53, %v50, 0
  %vm108 = vcmask 1040384
  %v110 = vsel %vm108, %v52, 0
  %112 = vmatprep.subr.mxu0 0.0
  %113 = vmatpush1.msra.mxu0 %v51
  %114 = vmatprep.subr.mxu0 0.0
  %115 = vmatpush1.msra.mxu0 %v110
  %116 = vmatprep.subr.mxu0 0.0
  %117 = vmatpush1.msra.mxu0 0.0
  %118 = vmatprep.subr.mxu0 0.0
  %119 = vmatpush1.msra.mxu0 0.0
  %120 = vmatprep.subr.mxu0 0.0
  %121 = vmatpush1.msra.mxu0 0.0
  %122 = vmatprep.subr.mxu0 0.0
  %123 = vmatpush1.msra.mxu0 0.0
  %124 = vmatprep.subr.mxu0 0.0
  %125 = vmatpush1.msra.mxu0 0.0
  %126 = vmatprep.subr.mxu0 0.0
  %127 = vmatpush1.msra.mxu0 0.0
  %128 = vmatprep.subr.mxu0 0.0
  %129 = vmatpush1.msra.mxu0 0.0
  %130 = vmatprep.subr.mxu0 0.0
  %131 = vmatpush1.msra.mxu0 0.0
  %132 = vmatprep.subr.mxu0 0.0
  %133 = vmatpush1.msra.mxu0 0.0
  %134 = vmatprep.subr.mxu0 0.0
  %135 = vmatpush1.msra.mxu0 0.0
  %136 = vmatprep.subr.mxu0 0.0
  %137 = vmatpush1.msra.mxu0 0.0
  %138 = vmatprep.subr.mxu0 0.0
  %139 = vmatpush1.msra.mxu0 0.0
  %140 = vmatprep.subr.mxu0 0.0
  %141 = vmatpush1.msra.mxu0 0.0
  %142 = vmatprep.subr.mxu0 0.0
  %143 = vmatpush1.msra.mxu0 0.0
  %144 = vmatprep.subr.mxu0 0.0
  %145 = vmatpush1.msra.mxu0 0.0
  %146 = vmatprep.subr.mxu0 0.0
  %147 = vmatpush1.msra.mxu0 0.0
  %148 = vmatprep.subr.mxu0 0.0
  %149 = vmatpush1.msra.mxu0 0.0
  %150 = vmatprep.subr.mxu0 0.0
  %151 = vmatpush1.msra.mxu0 0.0
  %152 = vmatprep.subr.mxu0 0.0
  %153 = vmatpush1.msra.mxu0 0.0
  %154 = vmatprep.subr.mxu0 0.0
  %155 = vmatpush1.msra.mxu0 0.0
  %156 = vmatprep.subr.mxu0 0.0
  %157 = vmatpush1.msra.mxu0 0.0
  %158 = vmatprep.subr.mxu0 0.0
  %159 = vmatpush1.msra.mxu0 0.0
  %160 = vmatprep.subr.mxu0 0.0
  %161 = vmatpush1.msra.mxu0 0.0
  %162 = vmatprep.subr.mxu0 0.0
  %163 = vmatpush1.msra.mxu0 0.0
  %164 = vmatprep.subr.mxu0 0.0
  %165 = vmatpush1.msra.mxu0 0.0
  %166 = vmatprep.subr.mxu0 0.0
  %167 = vmatpush1.msra.mxu0 0.0
  %168 = vmatprep.subr.mxu0 0.0
  %169 = vmatpush1.msra.mxu0 0.0
  %170 = vmatprep.subr.mxu0 0.0
  %171 = vmatpush1.msra.mxu0 0.0
  %172 = vmatprep.subr.mxu0 0.0
  %173 = vmatpush1.msra.mxu0 0.0
  %174 = vmatprep.subr.mxu0 0.0
  %175 = vmatpush1.msra.mxu0 0.0
  %176 = vmatprep.mubr.f32.mxu0 0.0
  %177 = vmatmul.mubr.f32.gmra.mrb[0].mxu0 %v55
  %v178 = vpop.f32.mrb[0].mxu0
  %v179 = vadd.f32 0.0, %v178
  %v180 = vpop.f32.mrb[0].mxu0
  %181 = vmatprep.mubr.f32.mxu0 0.0
  %182 = vmatmul.mubr.f32.gmra.mrb[0].mxu0 %v58
  %v183 = vpop.f32.mrb[0].mxu0
  %v184 = vadd.f32 0.0, %v183
  %v185 = vpop.f32.mrb[0].mxu0
  %186 = vmatprep.mubr.f32.mxu0 0.0
  %187 = vmatmul.mubr.f32.gmra.mrb[0].mxu0 %v61
  %v188 = vpop.f32.mrb[0].mxu0
  %v189 = vadd.f32 0.0, %v188
  %v190 = vpop.f32.mrb[0].mxu0
  %191 = vmatprep.mubr.f32.mxu0 0.0
  %192 = vmatmul.mubr.f32.gmra.mrb[0].mxu0 %v64
  %v193 = vpop.f32.mrb[0].mxu0
  %v194 = vadd.f32 0.0, %v193
  %v195 = vpop.f32.mrb[0].mxu0
  %196 = vmatprep.mubr.f32.mxu0 0.0
  %197 = vmatmul.mubr.f32.gmra.mrb[0].mxu0 %v67
  %v198 = vpop.f32.mrb[0].mxu0
  %v199 = vadd.f32 0.0, %v198
  %v200 = vpop.f32.mrb[0].mxu0
  %201 = vmatprep.mubr.f32.mxu0 0.0
  %202 = vmatmul.mubr.f32.gmra.mrb[0].mxu0 %v70
  %v203 = vpop.f32.mrb[0].mxu0
  %v204 = vadd.f32 0.0, %v203
  %v205 = vpop.f32.mrb[0].mxu0
  %206 = vmatprep.mubr.f32.mxu0 0.0
  %207 = vmatmul.mubr.f32.gmra.mrb[0].mxu0 %v73
  %v208 = vpop.f32.mrb[0].mxu0
  %v209 = vadd.f32 0.0, %v208
  %v210 = vpop.f32.mrb[0].mxu0
  %211 = vmatprep.mubr.f32.mxu0 0.0
  %212 = vmatmul.mubr.f32.gmra.mrb[0].mxu0 %v76
  %v213 = vpop.f32.mrb[0].mxu0
  %v214 = vadd.f32 0.0, %v213
  %v215 = vpop.f32.mrb[0].mxu0
  %216 = vmatprep.mubr.f32.mxu0 0.0
  %217 = vmatmul.mubr.f32.gmra.mrb[0].mxu0 %v79
  %v218 = vpop.f32.mrb[0].mxu0
  %v219 = vadd.f32 0.0, %v218
  %v220 = vpop.f32.mrb[0].mxu0
  %221 = vmatprep.mubr.f32.mxu0 0.0
  %222 = vmatmul.mubr.f32.gmra.mrb[0].mxu0 %v82
  %v223 = vpop.f32.mrb[0].mxu0
  %v224 = vadd.f32 0.0, %v223
  %v225 = vpop.f32.mrb[0].mxu0
  %226 = vmatprep.mubr.f32.mxu0 0.0
  %227 = vmatmul.mubr.f32.gmra.mrb[0].mxu0 %v85
  %v228 = vpop.f32.mrb[0].mxu0
  %v229 = vadd.f32 0.0, %v228
  %v230 = vpop.f32.mrb[0].mxu0
  %231 = vmatprep.mubr.f32.mxu0 0.0
  %232 = vmatmul.mubr.f32.gmra.mrb[0].mxu0 %v88
  %v233 = vpop.f32.mrb[0].mxu0
  %v234 = vadd.f32 0.0, %v233
  %v235 = vpop.f32.mrb[0].mxu0
  %236 = vmatprep.mubr.f32.mxu0 0.0
  %237 = vmatmul.mubr.f32.gmra.mrb[0].mxu0 %v91
  %v238 = vpop.f32.mrb[0].mxu0
  %v239 = vadd.f32 0.0, %v238
  %v240 = vpop.f32.mrb[0].mxu0
  %241 = vmatprep.mubr.f32.mxu0 0.0
  %242 = vmatmul.mubr.f32.gmra.mrb[0].mxu0 %v94
  %v243 = vpop.f32.mrb[0].mxu0
  %v244 = vadd.f32 0.0, %v243
  %v245 = vpop.f32.mrb[0].mxu0
  %246 = vmatprep.mubr.f32.mxu0 0.0
  %247 = vmatmul.mubr.f32.gmra.mrb[0].mxu0 %v97
  %v248 = vpop.f32.mrb[0].mxu0
  %v249 = vadd.f32 0.0, %v248
  %v250 = vpop.f32.mrb[0].mxu0
  %251 = vmatprep.mubr.f32.mxu0 0.0
  %252 = vmatmul.mubr.f32.gmra.mrb[0].mxu0 %v100
  %v253 = vpop.f32.mrb[0].mxu0
  %v254 = vadd.f32 0.0, %v253
  %v255 = vpop.f32.mrb[0].mxu0
  %256 = vmatprep.mubr.f32.mxu0 0.0
  %257 = vmatmul.mubr.f32.gmra.mrb[0].mxu0 %v103
  %v258 = vpop.f32.mrb[0].mxu0
  %v259 = vadd.f32 0.0, %v258
  %v260 = vpop.f32.mrb[0].mxu0
  %261 = vmatprep.mubr.f32.mxu0 0.0
  %262 = vmatmul.mubr.f32.gmra.mrb[0].mxu0 %v106
  %v263 = vpop.f32.mrb[0].mxu0
  %v264 = vadd.f32 0.0, %v263
  %v265 = vpop.f32.mrb[0].mxu0
  %266 = vdwg.mxu0
  %s267 = scalar_lea.vmem %s0, 144
  %v268 = vld [vmem:[%s267] sm:$0xff]
  %v269 = vld [vmem:[%s267 + $0x8] sm:$0xff]
  %v270 = vld [vmem:[%s267 + $0x10] sm:$0xff]
  %v271 = vld [vmem:[%s267 + $0x18] sm:$0xff]
  %v272 = vld [vmem:[%s267 + $0x20] sm:$0xff]
  %v273 = vld [vmem:[%s267 + $0x28] sm:$0xff]
  %v274 = vld [vmem:[%s267 + $0x30] sm:$0xff]
  %v275 = vld [vmem:[%s267 + $0x38] sm:$0xff]
  %v276 = vld [vmem:[%s267 + $0x40] sm:$0xff]
  %v277 = vld [vmem:[%s267 + $0x48] sm:$0xff]
  %v278 = vld [vmem:[%s267 + $0x50] sm:$0xff]
  %v279 = vld [vmem:[%s267 + $0x58] sm:$0xff]
  %v280 = vld [vmem:[%s267 + $0x60] sm:$0xff]
  %v281 = vld [vmem:[%s267 + $0x68] sm:$0xff]
  %v282 = vld [vmem:[%s267 + $0x70] sm:$0xff]
  %v283 = vld [vmem:[%s267 + $0x78] sm:$0xff]
  %v284 = vld [vmem:[%s267 + $0x80] sm:$0xff]
  %v285 = vld [vmem:[%s267 + $0x88] sm:$0xff]
  %v287 = vsel %vm53, %v268, 0
  %v290 = vsel %vm53, %v269, 0
  %v293 = vsel %vm53, %v270, 0
  %v296 = vsel %vm53, %v271, 0
  %v299 = vsel %vm53, %v272, 0
  %v302 = vsel %vm53, %v273, 0
  %v305 = vsel %vm53, %v274, 0
  %v308 = vsel %vm53, %v275, 0
  %v311 = vsel %vm53, %v276, 0
  %v314 = vsel %vm53, %v277, 0
  %v317 = vsel %vm53, %v278, 0
  %v320 = vsel %vm53, %v279, 0
  %v323 = vsel %vm53, %v280, 0
  %v326 = vsel %vm53, %v281, 0
  %v329 = vsel %vm53, %v282, 0
  %v332 = vsel %vm53, %v283, 0
  %v335 = vsel %vm53, %v284, 0
  %v338 = vsel %vm53, %v285, 0
  %340 = vmatprep.subr.mxu0 0.0
  %341 = vmatpush1.msra.mxu0 %v51
  %342 = vmatprep.subr.mxu0 0.0
  %343 = vmatpush1.msra.mxu0 %v110
  %344 = vmatprep.subr.mxu0 0.0
  %345 = vmatpush1.msra.mxu0 0.0
  %346 = vmatprep.subr.mxu0 0.0
  %347 = vmatpush1.msra.mxu0 0.0
  %348 = vmatprep.subr.mxu0 0.0
  %349 = vmatpush1.msra.mxu0 0.0
  %350 = vmatprep.subr.mxu0 0.0
  %351 = vmatpush1.msra.mxu0 0.0
  %352 = vmatprep.subr.mxu0 0.0
  %353 = vmatpush1.msra.mxu0 0.0
  %354 = vmatprep.subr.mxu0 0.0
  %355 = vmatpush1.msra.mxu0 0.0
  %356 = vmatprep.subr.mxu0 0.0
  %357 = vmatpush1.msra.mxu0 0.0
  %358 = vmatprep.subr.mxu0 0.0
  %359 = vmatpush1.msra.mxu0 0.0
  %360 = vmatprep.subr.mxu0 0.0
  %361 = vmatpush1.msra.mxu0 0.0
  %362 = vmatprep.subr.mxu0 0.0
  %363 = vmatpush1.msra.mxu0 0.0
  %364 = vmatprep.subr.mxu0 0.0
  %365 = vmatpush1.msra.mxu0 0.0
  %366 = vmatprep.subr.mxu0 0.0
  %367 = vmatpush1.msra.mxu0 0.0
  %368 = vmatprep.subr.mxu0 0.0
  %369 = vmatpush1.msra.mxu0 0.0
  %370 = vmatprep.subr.mxu0 0.0
  %371 = vmatpush1.msra.mxu0 0.0
  %372 = vmatprep.subr.mxu0 0.0
  %373 = vmatpush1.msra.mxu0 0.0
  %374 = vmatprep.subr.mxu0 0.0
  %375 = vmatpush1.msra.mxu0 0.0
  %376 = vmatprep.subr.mxu0 0.0
  %377 = vmatpush1.msra.mxu0 0.0
  %378 = vmatprep.subr.mxu0 0.0
  %379 = vmatpush1.msra.mxu0 0.0
  %380 = vmatprep.subr.mxu0 0.0
  %381 = vmatpush1.msra.mxu0 0.0
  %382 = vmatprep.subr.mxu0 0.0
  %383 = vmatpush1.msra.mxu0 0.0
  %384 = vmatprep.subr.mxu0 0.0
  %385 = vmatpush1.msra.mxu0 0.0
  %386 = vmatprep.subr.mxu0 0.0
  %387 = vmatpush1.msra.mxu0 0.0
  %388 = vmatprep.subr.mxu0 0.0
  %389 = vmatpush1.msra.mxu0 0.0
  %390 = vmatprep.subr.mxu0 0.0
  %391 = vmatpush1.msra.mxu0 0.0
  %392 = vmatprep.subr.mxu0 0.0
  %393 = vmatpush1.msra.mxu0 0.0
  %394 = vmatprep.subr.mxu0 0.0
  %395 = vmatpush1.msra.mxu0 0.0
  %396 = vmatprep.subr.mxu0 0.0
  %397 = vmatpush1.msra.mxu0 0.0
  %398 = vmatprep.subr.mxu0 0.0
  %399 = vmatpush1.msra.mxu0 0.0
  %400 = vmatprep.subr.mxu0 0.0
  %401 = vmatpush1.msra.mxu0 0.0
  %402 = vmatprep.subr.mxu0 0.0
  %403 = vmatpush1.msra.mxu0 0.0
  %404 = vmatprep.mubr.f32.mxu0 0.0
  %405 = vmatmul.mubr.f32.gmra.mrb[0].mxu0 %v287
  %v406 = vpop.f32.mrb[0].mxu0
  %v407 = vadd.f32 0.0, %v406
  %v408 = vpop.f32.mrb[0].mxu0
  %409 = vmatprep.mubr.f32.mxu0 0.0
  %410 = vmatmul.mubr.f32.gmra.mrb[0].mxu0 %v290
  %v411 = vpop.f32.mrb[0].mxu0
  %v412 = vadd.f32 0.0, %v411
  %v413 = vpop.f32.mrb[0].mxu0
  %414 = vmatprep.mubr.f32.mxu0 0.0
  %415 = vmatmul.mubr.f32.gmra.mrb[0].mxu0 %v293
  %v416 = vpop.f32.mrb[0].mxu0
  %v417 = vadd.f32 0.0, %v416
  %v418 = vpop.f32.mrb[0].mxu0
  %419 = vmatprep.mubr.f32.mxu0 0.0
  %420 = vmatmul.mubr.f32.gmra.mrb[0].mxu0 %v296
  %v421 = vpop.f32.mrb[0].mxu0
  %v422 = vadd.f32 0.0, %v421
  %v423 = vpop.f32.mrb[0].mxu0
  %424 = vmatprep.mubr.f32.mxu0 0.0
  %425 = vmatmul.mubr.f32.gmra.mrb[0].mxu0 %v299
  %v426 = vpop.f32.mrb[0].mxu0
  %v427 = vadd.f32 0.0, %v426
  %v428 = vpop.f32.mrb[0].mxu0
  %429 = vmatprep.mubr.f32.mxu0 0.0
  %430 = vmatmul.mubr.f32.gmra.mrb[0].mxu0 %v302
  %v431 = vpop.f32.mrb[0].mxu0
  %v432 = vadd.f32 0.0, %v431
  %v433 = vpop.f32.mrb[0].mxu0
  %434 = vmatprep.mubr.f32.mxu0 0.0
  %435 = vmatmul.mubr.f32.gmra.mrb[0].mxu0 %v305
  %v436 = vpop.f32.mrb[0].mxu0
  %v437 = vadd.f32 0.0, %v436
  %v438 = vpop.f32.mrb[0].mxu0
  %439 = vmatprep.mubr.f32.mxu0 0.0
  %440 = vmatmul.mubr.f32.gmra.mrb[0].mxu0 %v308
  %v441 = vpop.f32.mrb[0].mxu0
  %v442 = vadd.f32 0.0, %v441
  %v443 = vpop.f32.mrb[0].mxu0
  %444 = vmatprep.mubr.f32.mxu0 0.0
  %445 = vmatmul.mubr.f32.gmra.mrb[0].mxu0 %v311
  %v446 = vpop.f32.mrb[0].mxu0
  %v447 = vadd.f32 0.0, %v446
  %v448 = vpop.f32.mrb[0].mxu0
  %449 = vmatprep.mubr.f32.mxu0 0.0
  %450 = vmatmul.mubr.f32.gmra.mrb[0].mxu0 %v314
  %v451 = vpop.f32.mrb[0].mxu0
  %v452 = vadd.f32 0.0, %v451
  %v453 = vpop.f32.mrb[0].mxu0
  %454 = vmatprep.mubr.f32.mxu0 0.0
  %455 = vmatmul.mubr.f32.gmra.mrb[0].mxu0 %v317
  %v456 = vpop.f32.mrb[0].mxu0
  %v457 = vadd.f32 0.0, %v456
  %v458 = vpop.f32.mrb[0].mxu0
  %459 = vmatprep.mubr.f32.mxu0 0.0
  %460 = vmatmul.mubr.f32.gmra.mrb[0].mxu0 %v320
  %v461 = vpop.f32.mrb[0].mxu0
  %v462 = vadd.f32 0.0, %v461
  %v463 = vpop.f32.mrb[0].mxu0
  %464 = vmatprep.mubr.f32.mxu0 0.0
  %465 = vmatmul.mubr.f32.gmra.mrb[0].mxu0 %v323
  %v466 = vpop.f32.mrb[0].mxu0
  %v467 = vadd.f32 0.0, %v466
  %v468 = vpop.f32.mrb[0].mxu0
  %469 = vmatprep.mubr.f32.mxu0 0.0
  %470 = vmatmul.mubr.f32.gmra.mrb[0].mxu0 %v326
  %v471 = vpop.f32.mrb[0].mxu0
  %v472 = vadd.f32 0.0, %v471
  %v473 = vpop.f32.mrb[0].mxu0
  %474 = vmatprep.mubr.f32.mxu0 0.0
  %475 = vmatmul.mubr.f32.gmra.mrb[0].mxu0 %v329
  %v476 = vpop.f32.mrb[0].mxu0
  %v477 = vadd.f32 0.0, %v476
  %v478 = vpop.f32.mrb[0].mxu0
  %479 = vmatprep.mubr.f32.mxu0 0.0
  %480 = vmatmul.mubr.f32.gmra.mrb[0].mxu0 %v332
  %v481 = vpop.f32.mrb[0].mxu0
  %v482 = vadd.f32 0.0, %v481
  %v483 = vpop.f32.mrb[0].mxu0
  %484 = vmatprep.mubr.f32.mxu0 0.0
  %485 = vmatmul.mubr.f32.gmra.mrb[0].mxu0 %v335
  %v486 = vpop.f32.mrb[0].mxu0
  %v487 = vadd.f32 0.0, %v486
  %v488 = vpop.f32.mrb[0].mxu0
  %489 = vmatprep.mubr.f32.mxu0 0.0
  %490 = vmatmul.mubr.f32.gmra.mrb[0].mxu0 %v338
  %v491 = vpop.f32.mrb[0].mxu0
  %v492 = vadd.f32 0.0, %v491
  %v493 = vpop.f32.mrb[0].mxu0
  %494 = vdwg.mxu0
  %s495 = scalar_lea.vmem %s0, 288
  %v496 = vld [vmem:[%s495] sm:$0xff]
  %v497 = vld [vmem:[%s495 + $0x8] sm:$0xff]
  %v498 = vld [vmem:[%s495 + $0x10] sm:$0xff]
  %v499 = vld [vmem:[%s495 + $0x18] sm:$0xff]
  %v500 = vld [vmem:[%s495 + $0x20] sm:$0xff]
  %v501 = vld [vmem:[%s495 + $0x28] sm:$0xff]
  %v502 = vld [vmem:[%s495 + $0x30] sm:$0xff]
  %v503 = vld [vmem:[%s495 + $0x38] sm:$0xff]
  %v504 = vld [vmem:[%s495 + $0x40] sm:$0xff]
  %v505 = vld [vmem:[%s495 + $0x48] sm:$0xff]
  %v506 = vld [vmem:[%s495 + $0x50] sm:$0xff]
  %v507 = vld [vmem:[%s495 + $0x58] sm:$0xff]
  %v508 = vld [vmem:[%s495 + $0x60] sm:$0xff]
  %v509 = vld [vmem:[%s495 + $0x68] sm:$0xff]
  %v510 = vld [vmem:[%s495 + $0x70] sm:$0xff]
  %v511 = vld [vmem:[%s495 + $0x78] sm:$0xff]
  %v512 = vld [vmem:[%s495 + $0x80] sm:$0xff]
  %v513 = vld [vmem:[%s495 + $0x88] sm:$0xff]
  %v515 = vsel %vm53, %v496, 0
  %v518 = vsel %vm53, %v497, 0
  %v521 = vsel %vm53, %v498, 0
  %v524 = vsel %vm53, %v499, 0
  %v527 = vsel %vm53, %v500, 0
  %v530 = vsel %vm53, %v501, 0
  %v533 = vsel %vm53, %v502, 0
  %v536 = vsel %vm53, %v503, 0
  %v539 = vsel %vm53, %v504, 0
  %v542 = vsel %vm53, %v505, 0
  %v545 = vsel %vm53, %v506, 0
  %v548 = vsel %vm53, %v507, 0
  %v551 = vsel %vm53, %v508, 0
  %v554 = vsel %vm53, %v509, 0
  %v557 = vsel %vm53, %v510, 0
  %v560 = vsel %vm53, %v511, 0
  %v563 = vsel %vm53, %v512, 0
  %v566 = vsel %vm53, %v513, 0
  %568 = vmatprep.subr.mxu0 0.0
  %569 = vmatpush1.msra.mxu0 %v51
  %570 = vmatprep.subr.mxu0 0.0
  %571 = vmatpush1.msra.mxu0 %v110
  %572 = vmatprep.subr.mxu0 0.0
  %573 = vmatpush1.msra.mxu0 0.0
  %574 = vmatprep.subr.mxu0 0.0
  %575 = vmatpush1.msra.mxu0 0.0
  %576 = vmatprep.subr.mxu0 0.0
  %577 = vmatpush1.msra.mxu0 0.0
  %578 = vmatprep.subr.mxu0 0.0
  %579 = vmatpush1.msra.mxu0 0.0
  %580 = vmatprep.subr.mxu0 0.0
  %581 = vmatpush1.msra.mxu0 0.0
  %582 = vmatprep.subr.mxu0 0.0
  %583 = vmatpush1.msra.mxu0 0.0
  %584 = vmatprep.subr.mxu0 0.0
  %585 = vmatpush1.msra.mxu0 0.0
  %586 = vmatprep.subr.mxu0 0.0
  %587 = vmatpush1.msra.mxu0 0.0
  %588 = vmatprep.subr.mxu0 0.0
  %589 = vmatpush1.msra.mxu0 0.0
  %590 = vmatprep.subr.mxu0 0.0
  %591 = vmatpush1.msra.mxu0 0.0
  %592 = vmatprep.subr.mxu0 0.0
  %593 = vmatpush1.msra.mxu0 0.0
  %594 = vmatprep.subr.mxu0 0.0
  %595 = vmatpush1.msra.mxu0 0.0
  %596 = vmatprep.subr.mxu0 0.0
  %597 = vmatpush1.msra.mxu0 0.0
  %598 = vmatprep.subr.mxu0 0.0
  %599 = vmatpush1.msra.mxu0 0.0
  %600 = vmatprep.subr.mxu0 0.0
  %601 = vmatpush1.msra.mxu0 0.0
  %602 = vmatprep.subr.mxu0 0.0
  %603 = vmatpush1.msra.mxu0 0.0
  %604 = vmatprep.subr.mxu0 0.0
  %605 = vmatpush1.msra.mxu0 0.0
  %606 = vmatprep.subr.mxu0 0.0
  %607 = vmatpush1.msra.mxu0 0.0
  %608 = vmatprep.subr.mxu0 0.0
  %609 = vmatpush1.msra.mxu0 0.0
  %610 = vmatprep.subr.mxu0 0.0
  %611 = vmatpush1.msra.mxu0 0.0
  %612 = vmatprep.subr.mxu0 0.0
  %613 = vmatpush1.msra.mxu0 0.0
  %614 = vmatprep.subr.mxu0 0.0
  %615 = vmatpush1.msra.mxu0 0.0
  %616 = vmatprep.subr.mxu0 0.0
  %617 = vmatpush1.msra.mxu0 0.0
  %618 = vmatprep.subr.mxu0 0.0
  %619 = vmatpush1.msra.mxu0 0.0
  %620 = vmatprep.subr.mxu0 0.0
  %621 = vmatpush1.msra.mxu0 0.0
  %622 = vmatprep.subr.mxu0 0.0
  %623 = vmatpush1.msra.mxu0 0.0
  %624 = vmatprep.subr.mxu0 0.0
  %625 = vmatpush1.msra.mxu0 0.0
  %626 = vmatprep.subr.mxu0 0.0
  %627 = vmatpush1.msra.mxu0 0.0
  %628 = vmatprep.subr.mxu0 0.0
  %629 = vmatpush1.msra.mxu0 0.0
  %630 = vmatprep.subr.mxu0 0.0
  %631 = vmatpush1.msra.mxu0 0.0
  %632 = vmatprep.mubr.f32.mxu0 0.0
  %633 = vmatmul.mubr.f32.gmra.mrb[0].mxu0 %v515
  %v634 = vpop.f32.mrb[0].mxu0
  %v635 = vadd.f32 0.0, %v634
  %v636 = vpop.f32.mrb[0].mxu0
  %637 = vmatprep.mubr.f32.mxu0 0.0
  %638 = vmatmul.mubr.f32.gmra.mrb[0].mxu0 %v518
  %v639 = vpop.f32.mrb[0].mxu0
  %v640 = vadd.f32 0.0, %v639
  %v641 = vpop.f32.mrb[0].mxu0
  %642 = vmatprep.mubr.f32.mxu0 0.0
  %643 = vmatmul.mubr.f32.gmra.mrb[0].mxu0 %v521
  %v644 = vpop.f32.mrb[0].mxu0
  %v645 = vadd.f32 0.0, %v644
  %v646 = vpop.f32.mrb[0].mxu0
  %647 = vmatprep.mubr.f32.mxu0 0.0
  %648 = vmatmul.mubr.f32.gmra.mrb[0].mxu0 %v524
  %v649 = vpop.f32.mrb[0].mxu0
  %v650 = vadd.f32 0.0, %v649
  %v651 = vpop.f32.mrb[0].mxu0
  %652 = vmatprep.mubr.f32.mxu0 0.0
  %653 = vmatmul.mubr.f32.gmra.mrb[0].mxu0 %v527
  %v654 = vpop.f32.mrb[0].mxu0
  %v655 = vadd.f32 0.0, %v654
  %v656 = vpop.f32.mrb[0].mxu0
  %657 = vmatprep.mubr.f32.mxu0 0.0
  %658 = vmatmul.mubr.f32.gmra.mrb[0].mxu0 %v530
  %v659 = vpop.f32.mrb[0].mxu0
  %v660 = vadd.f32 0.0, %v659
  %v661 = vpop.f32.mrb[0].mxu0
  %662 = vmatprep.mubr.f32.mxu0 0.0
  %663 = vmatmul.mubr.f32.gmra.mrb[0].mxu0 %v533
  %v664 = vpop.f32.mrb[0].mxu0
  %v665 = vadd.f32 0.0, %v664
  %v666 = vpop.f32.mrb[0].mxu0
  %667 = vmatprep.mubr.f32.mxu0 0.0
  %668 = vmatmul.mubr.f32.gmra.mrb[0].mxu0 %v536
  %v669 = vpop.f32.mrb[0].mxu0
  %v670 = vadd.f32 0.0, %v669
  %v671 = vpop.f32.mrb[0].mxu0
  %672 = vmatprep.mubr.f32.mxu0 0.0
  %673 = vmatmul.mubr.f32.gmra.mrb[0].mxu0 %v539
  %v674 = vpop.f32.mrb[0].mxu0
  %v675 = vadd.f32 0.0, %v674
  %v676 = vpop.f32.mrb[0].mxu0
  %677 = vmatprep.mubr.f32.mxu0 0.0
  %678 = vmatmul.mubr.f32.gmra.mrb[0].mxu0 %v542
  %v679 = vpop.f32.mrb[0].mxu0
  %v680 = vadd.f32 0.0, %v679
  %v681 = vpop.f32.mrb[0].mxu0
  %682 = vmatprep.mubr.f32.mxu0 0.0
  %683 = vmatmul.mubr.f32.gmra.mrb[0].mxu0 %v545
  %v684 = vpop.f32.mrb[0].mxu0
  %v685 = vadd.f32 0.0, %v684
  %v686 = vpop.f32.mrb[0].mxu0
  %687 = vmatprep.mubr.f32.mxu0 0.0
  %688 = vmatmul.mubr.f32.gmra.mrb[0].mxu0 %v548
  %v689 = vpop.f32.mrb[0].mxu0
  %v690 = vadd.f32 0.0, %v689
  %v691 = vpop.f32.mrb[0].mxu0
  %692 = vmatprep.mubr.f32.mxu0 0.0
  %693 = vmatmul.mubr.f32.gmra.mrb[0].mxu0 %v551
  %v694 = vpop.f32.mrb[0].mxu0
  %v695 = vadd.f32 0.0, %v694
  %v696 = vpop.f32.mrb[0].mxu0
  %697 = vmatprep.mubr.f32.mxu0 0.0
  %698 = vmatmul.mubr.f32.gmra.mrb[0].mxu0 %v554
  %v699 = vpop.f32.mrb[0].mxu0
  %v700 = vadd.f32 0.0, %v699
  %v701 = vpop.f32.mrb[0].mxu0
  %702 = vmatprep.mubr.f32.mxu0 0.0
  %703 = vmatmul.mubr.f32.gmra.mrb[0].mxu0 %v557
  %v704 = vpop.f32.mrb[0].mxu0
  %v705 = vadd.f32 0.0, %v704
  %v706 = vpop.f32.mrb[0].mxu0
  %707 = vmatprep.mubr.f32.mxu0 0.0
  %708 = vmatmul.mubr.f32.gmra.mrb[0].mxu0 %v560
  %v709 = vpop.f32.mrb[0].mxu0
  %v710 = vadd.f32 0.0, %v709
  %v711 = vpop.f32.mrb[0].mxu0
  %712 = vmatprep.mubr.f32.mxu0 0.0
  %713 = vmatmul.mubr.f32.gmra.mrb[0].mxu0 %v563
  %v714 = vpop.f32.mrb[0].mxu0
  %v715 = vadd.f32 0.0, %v714
  %v716 = vpop.f32.mrb[0].mxu0
  %717 = vmatprep.mubr.f32.mxu0 0.0
  %718 = vmatmul.mubr.f32.gmra.mrb[0].mxu0 %v566
  %v719 = vpop.f32.mrb[0].mxu0
  %v720 = vadd.f32 0.0, %v719
  %v721 = vpop.f32.mrb[0].mxu0
  %722 = vdwg.mxu0
  %s723 = scalar_lea.vmem %s0, 432
  %v724 = vld [vmem:[%s723] sm:$0xff]
  %v725 = vld [vmem:[%s723 + $0x8] sm:$0xff]
  %v726 = vld [vmem:[%s723 + $0x10] sm:$0xff]
  %v727 = vld [vmem:[%s723 + $0x18] sm:$0xff]
  %v728 = vld [vmem:[%s723 + $0x20] sm:$0xff]
  %v729 = vld [vmem:[%s723 + $0x28] sm:$0xff]
  %v730 = vld [vmem:[%s723 + $0x30] sm:$0xff]
  %v731 = vld [vmem:[%s723 + $0x38] sm:$0xff]
  %v732 = vld [vmem:[%s723 + $0x40] sm:$0xff]
  %v733 = vld [vmem:[%s723 + $0x48] sm:$0xff]
  %v734 = vld [vmem:[%s723 + $0x50] sm:$0xff]
  %v735 = vld [vmem:[%s723 + $0x58] sm:$0xff]
  %v736 = vld [vmem:[%s723 + $0x60] sm:$0xff]
  %v737 = vld [vmem:[%s723 + $0x68] sm:$0xff]
  %v738 = vld [vmem:[%s723 + $0x70] sm:$0xff]
  %v739 = vld [vmem:[%s723 + $0x78] sm:$0xff]
  %v740 = vld [vmem:[%s723 + $0x80] sm:$0xff]
  %v741 = vld [vmem:[%s723 + $0x88] sm:$0xff]
  %v743 = vsel %vm53, %v724, 0
  %v746 = vsel %vm53, %v725, 0
  %v749 = vsel %vm53, %v726, 0
  %v752 = vsel %vm53, %v727, 0
  %v755 = vsel %vm53, %v728, 0
  %v758 = vsel %vm53, %v729, 0
  %v761 = vsel %vm53, %v730, 0
  %v764 = vsel %vm53, %v731, 0
  %v767 = vsel %vm53, %v732, 0
  %v770 = vsel %vm53, %v733, 0
  %v773 = vsel %vm53, %v734, 0
  %v776 = vsel %vm53, %v735, 0
  %v779 = vsel %vm53, %v736, 0
  %v782 = vsel %vm53, %v737, 0
  %v785 = vsel %vm53, %v738, 0
  %v788 = vsel %vm53, %v739, 0
  %v791 = vsel %vm53, %v740, 0
  %v794 = vsel %vm53, %v741, 0
  %796 = vmatprep.subr.mxu0 0.0
  %797 = vmatpush1.msra.mxu0 %v51
  %798 = vmatprep.subr.mxu0 0.0
  %799 = vmatpush1.msra.mxu0 %v110
  %800 = vmatprep.subr.mxu0 0.0
  %801 = vmatpush1.msra.mxu0 0.0
  %802 = vmatprep.subr.mxu0 0.0
  %803 = vmatpush1.msra.mxu0 0.0
  %804 = vmatprep.subr.mxu0 0.0
  %805 = vmatpush1.msra.mxu0 0.0
  %806 = vmatprep.subr.mxu0 0.0
  %807 = vmatpush1.msra.mxu0 0.0
  %808 = vmatprep.subr.mxu0 0.0
  %809 = vmatpush1.msra.mxu0 0.0
  %810 = vmatprep.subr.mxu0 0.0
  %811 = vmatpush1.msra.mxu0 0.0
  %812 = vmatprep.subr.mxu0 0.0
  %813 = vmatpush1.msra.mxu0 0.0
  %814 = vmatprep.subr.mxu0 0.0
  %815 = vmatpush1.msra.mxu0 0.0
  %816 = vmatprep.subr.mxu0 0.0
  %817 = vmatpush1.msra.mxu0 0.0
  %818 = vmatprep.subr.mxu0 0.0
  %819 = vmatpush1.msra.mxu0 0.0
  %820 = vmatprep.subr.mxu0 0.0
  %821 = vmatpush1.msra.mxu0 0.0
  %822 = vmatprep.subr.mxu0 0.0
  %823 = vmatpush1.msra.mxu0 0.0
  %824 = vmatprep.subr.mxu0 0.0
  %825 = vmatpush1.msra.mxu0 0.0
  %826 = vmatprep.subr.mxu0 0.0
  %827 = vmatpush1.msra.mxu0 0.0
  %828 = vmatprep.subr.mxu0 0.0
  %829 = vmatpush1.msra.mxu0 0.0
  %830 = vmatprep.subr.mxu0 0.0
  %831 = vmatpush1.msra.mxu0 0.0
  %832 = vmatprep.subr.mxu0 0.0
  %833 = vmatpush1.msra.mxu0 0.0
  %834 = vmatprep.subr.mxu0 0.0
  %835 = vmatpush1.msra.mxu0 0.0
  %836 = vmatprep.subr.mxu0 0.0
  %837 = vmatpush1.msra.mxu0 0.0
  %838 = vmatprep.subr.mxu0 0.0
  %839 = vmatpush1.msra.mxu0 0.0
  %840 = vmatprep.subr.mxu0 0.0
  %841 = vmatpush1.msra.mxu0 0.0
  %842 = vmatprep.subr.mxu0 0.0
  %843 = vmatpush1.msra.mxu0 0.0
  %844 = vmatprep.subr.mxu0 0.0
  %845 = vmatpush1.msra.mxu0 0.0
  %846 = vmatprep.subr.mxu0 0.0
  %847 = vmatpush1.msra.mxu0 0.0
  %848 = vmatprep.subr.mxu0 0.0
  %849 = vmatpush1.msra.mxu0 0.0
  %850 = vmatprep.subr.mxu0 0.0
  %851 = vmatpush1.msra.mxu0 0.0
  %852 = vmatprep.subr.mxu0 0.0
  %853 = vmatpush1.msra.mxu0 0.0
  %854 = vmatprep.subr.mxu0 0.0
  %855 = vmatpush1.msra.mxu0 0.0
  %856 = vmatprep.subr.mxu0 0.0
  %857 = vmatpush1.msra.mxu0 0.0
  %858 = vmatprep.subr.mxu0 0.0
  %859 = vmatpush1.msra.mxu0 0.0
  %860 = vmatprep.mubr.f32.mxu0 0.0
  %861 = vmatmul.mubr.f32.gmra.mrb[0].mxu0 %v743
  %v862 = vpop.f32.mrb[0].mxu0
  %v863 = vadd.f32 0.0, %v862
  %v864 = vpop.f32.mrb[0].mxu0
  %865 = vmatprep.mubr.f32.mxu0 0.0
  %866 = vmatmul.mubr.f32.gmra.mrb[0].mxu0 %v746
  %v867 = vpop.f32.mrb[0].mxu0
  %v868 = vadd.f32 0.0, %v867
  %v869 = vpop.f32.mrb[0].mxu0
  %870 = vmatprep.mubr.f32.mxu0 0.0
  %871 = vmatmul.mubr.f32.gmra.mrb[0].mxu0 %v749
  %v872 = vpop.f32.mrb[0].mxu0
  %v873 = vadd.f32 0.0, %v872
  %v874 = vpop.f32.mrb[0].mxu0
  %875 = vmatprep.mubr.f32.mxu0 0.0
  %876 = vmatmul.mubr.f32.gmra.mrb[0].mxu0 %v752
  %v877 = vpop.f32.mrb[0].mxu0
  %v878 = vadd.f32 0.0, %v877
  %v879 = vpop.f32.mrb[0].mxu0
  %880 = vmatprep.mubr.f32.mxu0 0.0
  %881 = vmatmul.mubr.f32.gmra.mrb[0].mxu0 %v755
  %v882 = vpop.f32.mrb[0].mxu0
  %v883 = vadd.f32 0.0, %v882
  %v884 = vpop.f32.mrb[0].mxu0
  %885 = vmatprep.mubr.f32.mxu0 0.0
  %886 = vmatmul.mubr.f32.gmra.mrb[0].mxu0 %v758
  %v887 = vpop.f32.mrb[0].mxu0
  %v888 = vadd.f32 0.0, %v887
  %v889 = vpop.f32.mrb[0].mxu0
  %890 = vmatprep.mubr.f32.mxu0 0.0
  %891 = vmatmul.mubr.f32.gmra.mrb[0].mxu0 %v761
  %v892 = vpop.f32.mrb[0].mxu0
  %v893 = vadd.f32 0.0, %v892
  %v894 = vpop.f32.mrb[0].mxu0
  %895 = vmatprep.mubr.f32.mxu0 0.0
  %896 = vmatmul.mubr.f32.gmra.mrb[0].mxu0 %v764
  %v897 = vpop.f32.mrb[0].mxu0
  %v898 = vadd.f32 0.0, %v897
  %v899 = vpop.f32.mrb[0].mxu0
  %900 = vmatprep.mubr.f32.mxu0 0.0
  %901 = vmatmul.mubr.f32.gmra.mrb[0].mxu0 %v767
  %v902 = vpop.f32.mrb[0].mxu0
  %v903 = vadd.f32 0.0, %v902
  %v904 = vpop.f32.mrb[0].mxu0
  %905 = vmatprep.mubr.f32.mxu0 0.0
  %906 = vmatmul.mubr.f32.gmra.mrb[0].mxu0 %v770
  %v907 = vpop.f32.mrb[0].mxu0
  %v908 = vadd.f32 0.0, %v907
  %v909 = vpop.f32.mrb[0].mxu0
  %910 = vmatprep.mubr.f32.mxu0 0.0
  %911 = vmatmul.mubr.f32.gmra.mrb[0].mxu0 %v773
  %v912 = vpop.f32.mrb[0].mxu0
  %v913 = vadd.f32 0.0, %v912
  %v914 = vpop.f32.mrb[0].mxu0
  %915 = vmatprep.mubr.f32.mxu0 0.0
  %916 = vmatmul.mubr.f32.gmra.mrb[0].mxu0 %v776
  %v917 = vpop.f32.mrb[0].mxu0
  %v918 = vadd.f32 0.0, %v917
  %v919 = vpop.f32.mrb[0].mxu0
  %920 = vmatprep.mubr.f32.mxu0 0.0
  %921 = vmatmul.mubr.f32.gmra.mrb[0].mxu0 %v779
  %v922 = vpop.f32.mrb[0].mxu0
  %v923 = vadd.f32 0.0, %v922
  %v924 = vpop.f32.mrb[0].mxu0
  %925 = vmatprep.mubr.f32.mxu0 0.0
  %926 = vmatmul.mubr.f32.gmra.mrb[0].mxu0 %v782
  %v927 = vpop.f32.mrb[0].mxu0
  %v928 = vadd.f32 0.0, %v927
  %v929 = vpop.f32.mrb[0].mxu0
  %930 = vmatprep.mubr.f32.mxu0 0.0
  %931 = vmatmul.mubr.f32.gmra.mrb[0].mxu0 %v785
  %v932 = vpop.f32.mrb[0].mxu0
  %v933 = vadd.f32 0.0, %v932
  %v934 = vpop.f32.mrb[0].mxu0
  %935 = vmatprep.mubr.f32.mxu0 0.0
  %936 = vmatmul.mubr.f32.gmra.mrb[0].mxu0 %v788
  %v937 = vpop.f32.mrb[0].mxu0
  %v938 = vadd.f32 0.0, %v937
  %v939 = vpop.f32.mrb[0].mxu0
  %940 = vmatprep.mubr.f32.mxu0 0.0
  %941 = vmatmul.mubr.f32.gmra.mrb[0].mxu0 %v791
  %v942 = vpop.f32.mrb[0].mxu0
  %v943 = vadd.f32 0.0, %v942
  %v944 = vpop.f32.mrb[0].mxu0
  %945 = vmatprep.mubr.f32.mxu0 0.0
  %946 = vmatmul.mubr.f32.gmra.mrb[0].mxu0 %v794
  %v947 = vpop.f32.mrb[0].mxu0
  %v948 = vadd.f32 0.0, %v947
  %v949 = vpop.f32.mrb[0].mxu0
  %950 = vdwg.mxu0
  %v951 = vmax.f32 %v179, %v407
  %v952 = vmax.f32 %v184, %v412
  %v953 = vmax.f32 %v189, %v417
  %v954 = vmax.f32 %v194, %v422
  %v955 = vmax.f32 %v199, %v427
  %v956 = vmax.f32 %v204, %v432
  %v957 = vmax.f32 %v209, %v437
  %v958 = vmax.f32 %v214, %v442
  %v959 = vmax.f32 %v219, %v447
  %v960 = vmax.f32 %v224, %v452
  %v961 = vmax.f32 %v229, %v457
  %v962 = vmax.f32 %v234, %v462
  %v963 = vmax.f32 %v239, %v467
  %v964 = vmax.f32 %v244, %v472
  %v965 = vmax.f32 %v249, %v477
  %v966 = vmax.f32 %v254, %v482
  %v967 = vmax.f32 %v259, %v487
  %v968 = vmax.f32 %v264, %v492
  %v969 = vmax.f32 %v635, %v863
  %v970 = vmax.f32 %v640, %v868
  %v971 = vmax.f32 %v645, %v873
  %v972 = vmax.f32 %v650, %v878
  %v973 = vmax.f32 %v655, %v883
  %v974 = vmax.f32 %v660, %v888
  %v975 = vmax.f32 %v665, %v893
  %v976 = vmax.f32 %v670, %v898
  %v977 = vmax.f32 %v675, %v903
  %v978 = vmax.f32 %v680, %v908
  %v979 = vmax.f32 %v685, %v913
  %v980 = vmax.f32 %v690, %v918
  %v981 = vmax.f32 %v695, %v923
  %v982 = vmax.f32 %v700, %v928
  %v983 = vmax.f32 %v705, %v933
  %v984 = vmax.f32 %v710, %v938
  %v985 = vmax.f32 %v715, %v943
  %v986 = vmax.f32 %v720, %v948
  %v987 = vmax.f32 %v951, %v969
  %v988 = vmax.f32 %v952, %v970
  %v989 = vmax.f32 %v953, %v971
  %v990 = vmax.f32 %v954, %v972
  %v991 = vmax.f32 %v955, %v973
  %v992 = vmax.f32 %v956, %v974
  %v993 = vmax.f32 %v957, %v975
  %v994 = vmax.f32 %v958, %v976
  %v995 = vmax.f32 %v959, %v977
  %v996 = vmax.f32 %v960, %v978
  %v997 = vmax.f32 %v961, %v979
  %v998 = vmax.f32 %v962, %v980
  %v999 = vmax.f32 %v963, %v981
  %v1000 = vmax.f32 %v964, %v982
  %v1001 = vmax.f32 %v965, %v983
  %v1002 = vmax.f32 %v966, %v984
  %v1003 = vmax.f32 %v967, %v985
  %v1004 = vmax.f32 %v968, %v986
  %v1005 = vld [vmem:[%s2] sm:$0x1]
  %v1007 = vlaneseq
  %v1008 = vshrl.u32 %v1007, 7
  %v1009 = vsub.s32 0, %v1008
  %v1010 = vrot.slane %v1005, %v1009
  %v1012 = vadd.f32 %v987, %v1010
  %v1013 = vadd.f32 %v988, %v1010
  %v1014 = vadd.f32 %v989, %v1010
  %v1015 = vadd.f32 %v990, %v1010
  %v1016 = vadd.f32 %v991, %v1010
  %v1017 = vadd.f32 %v992, %v1010
  %v1018 = vadd.f32 %v993, %v1010
  %v1019 = vadd.f32 %v994, %v1010
  %v1020 = vadd.f32 %v995, %v1010
  %v1021 = vadd.f32 %v996, %v1010
  %v1022 = vadd.f32 %v997, %v1010
  %v1023 = vadd.f32 %v998, %v1010
  %v1024 = vadd.f32 %v999, %v1010
  %v1025 = vadd.f32 %v1000, %v1010
  %v1026 = vadd.f32 %v1001, %v1010
  %v1027 = vadd.f32 %v1002, %v1010
  %v1028 = vadd.f32 %v1003, %v1010
  %v1029 = vadd.f32 %v1004, %v1010
  %v1030 = vmax.f32 %v1012, 0.0
  %v1031 = vmax.f32 %v1013, 0.0
  %v1032 = vmax.f32 %v1014, 0.0
  %v1033 = vmax.f32 %v1015, 0.0
  %v1034 = vmax.f32 %v1016, 0.0
  %v1035 = vmax.f32 %v1017, 0.0
  %v1036 = vmax.f32 %v1018, 0.0
  %v1037 = vmax.f32 %v1019, 0.0
  %v1038 = vmax.f32 %v1020, 0.0
  %v1039 = vmax.f32 %v1021, 0.0
  %v1040 = vmax.f32 %v1022, 0.0
  %v1041 = vmax.f32 %v1023, 0.0
  %v1042 = vmax.f32 %v1024, 0.0
  %v1043 = vmax.f32 %v1025, 0.0
  %v1044 = vmax.f32 %v1026, 0.0
  %v1045 = vmax.f32 %v1027, 0.0
  %v1046 = vmax.f32 %v1028, 0.0
  %v1047 = vmax.f32 %v1029, 0.0
  %vm1048 = vcmask 261120
  %1049 = vst.msk [vmem:[#allocation2] sm:$0xff] %vm1048, %v1030
  %1050 = vst.msk [vmem:[#allocation2 + $0x8] sm:$0xff] %vm1048, %v1031
  %1051 = vst.msk [vmem:[#allocation2 + $0x10] sm:$0xff] %vm1048, %v1032
  %1052 = vst.msk [vmem:[#allocation2 + $0x18] sm:$0xff] %vm1048, %v1033
  %1053 = vst.msk [vmem:[#allocation2 + $0x20] sm:$0xff] %vm1048, %v1034
  %1054 = vst.msk [vmem:[#allocation2 + $0x28] sm:$0xff] %vm1048, %v1035
  %1055 = vst.msk [vmem:[#allocation2 + $0x30] sm:$0xff] %vm1048, %v1036
  %1056 = vst.msk [vmem:[#allocation2 + $0x38] sm:$0xff] %vm1048, %v1037
  %1057 = vst.msk [vmem:[#allocation2 + $0x40] sm:$0xff] %vm1048, %v1038
  %1058 = vst.msk [vmem:[#allocation2 + $0x48] sm:$0xff] %vm1048, %v1039
  %1059 = vst.msk [vmem:[#allocation2 + $0x50] sm:$0xff] %vm1048, %v1040
  %1060 = vst.msk [vmem:[#allocation2 + $0x58] sm:$0xff] %vm1048, %v1041
  %1061 = vst.msk [vmem:[#allocation2 + $0x60] sm:$0xff] %vm1048, %v1042
  %1062 = vst.msk [vmem:[#allocation2 + $0x68] sm:$0xff] %vm1048, %v1043
  %1063 = vst.msk [vmem:[#allocation2 + $0x70] sm:$0xff] %vm1048, %v1044
  %1064 = vst.msk [vmem:[#allocation2 + $0x78] sm:$0xff] %vm1048, %v1045
  %1065 = vst.msk [vmem:[#allocation2 + $0x80] sm:$0xff] %vm1048, %v1046
  %1066 = vst.msk [vmem:[#allocation2 + $0x88] sm:$0xff] %vm1048, %v1047
  %v1067 = vld [vmem:[#allocation2] sm:$0xff]
  %v1068 = vld [vmem:[#allocation2 + $0x8] sm:$0xff]
  %v1069 = vld [vmem:[%s3] sm:$0xff]
  %v1070 = vld [vmem:[%s3 + $0x8] sm:$0xff]
  %v1071 = vld [vmem:[%s3 + $0x10] sm:$0xff]
  %v1072 = vld [vmem:[%s3 + $0x18] sm:$0xff]
  %v1073 = vld [vmem:[#allocation2 + $0x4] sm:$0xff]
  %v1074 = vld [vmem:[#allocation2 + $0xc] sm:$0xff]
  %s1075 = scalar_lea.vmem %s3, 32
  %v1076 = vld [vmem:[%s1075] sm:$0xff]
  %v1077 = vld [vmem:[%s1075 + $0x8] sm:$0xff]
  %v1078 = vld [vmem:[%s1075 + $0x10] sm:$0xff]
  %v1079 = vld [vmem:[%s1075 + $0x18] sm:$0xff]
  %v1081 = vsel %vm1048, %v1073, 0
  %v1084 = vsel %vm1048, %v1074, 0
  %1086 = vmatprep.subr.mxu0 0.0
  %1087 = vmatpush1.msra.mxu0 %v1076
  %1088 = vmatprep.subr.mxu0 0.0
  %1089 = vmatpush1.msra.mxu0 %v1077
  %1090 = vmatprep.subr.mxu0 0.0
  %1091 = vmatpush1.msra.mxu0 %v1078
  %1092 = vmatprep.subr.mxu0 0.0
  %1093 = vmatpush1.msra.mxu0 %v1079
  %1094 = vmatprep.subr.mxu0 0.0
  %1095 = vmatpush1.msra.mxu0 0.0
  %1096 = vmatprep.subr.mxu0 0.0
  %1097 = vmatpush1.msra.mxu0 0.0
  %1098 = vmatprep.subr.mxu0 0.0
  %1099 = vmatpush1.msra.mxu0 0.0
  %1100 = vmatprep.subr.mxu0 0.0
  %1101 = vmatpush1.msra.mxu0 0.0
  %1102 = vmatprep.subr.mxu0 0.0
  %1103 = vmatpush1.msra.mxu0 0.0
  %1104 = vmatprep.subr.mxu0 0.0
  %1105 = vmatpush1.msra.mxu0 0.0
  %1106 = vmatprep.subr.mxu0 0.0
  %1107 = vmatpush1.msra.mxu0 0.0
  %1108 = vmatprep.subr.mxu0 0.0
  %1109 = vmatpush1.msra.mxu0 0.0
  %1110 = vmatprep.subr.mxu0 0.0
  %1111 = vmatpush1.msra.mxu0 0.0
  %1112 = vmatprep.subr.mxu0 0.0
  %1113 = vmatpush1.msra.mxu0 0.0
  %1114 = vmatprep.subr.mxu0 0.0
  %1115 = vmatpush1.msra.mxu0 0.0
  %1116 = vmatprep.subr.mxu0 0.0
  %1117 = vmatpush1.msra.mxu0 0.0
  %1118 = vmatprep.subr.mxu0 0.0
  %1119 = vmatpush1.msra.mxu0 0.0
  %1120 = vmatprep.subr.mxu0 0.0
  %1121 = vmatpush1.msra.mxu0 0.0
  %1122 = vmatprep.subr.mxu0 0.0
  %1123 = vmatpush1.msra.mxu0 0.0
  %1124 = vmatprep.subr.mxu0 0.0
  %1125 = vmatpush1.msra.mxu0 0.0
  %1126 = vmatprep.subr.mxu0 0.0
  %1127 = vmatpush1.msra.mxu0 0.0
  %1128 = vmatprep.subr.mxu0 0.0
  %1129 = vmatpush1.msra.mxu0 0.0
  %1130 = vmatprep.subr.mxu0 0.0
  %1131 = vmatpush1.msra.mxu0 0.0
  %1132 = vmatprep.subr.mxu0 0.0
  %1133 = vmatpush1.msra.mxu0 0.0
  %1134 = vmatprep.subr.mxu0 0.0
  %1135 = vmatpush1.msra.mxu0 0.0
  %1136 = vmatprep.subr.mxu0 0.0
  %1137 = vmatpush1.msra.mxu0 0.0
  %1138 = vmatprep.subr.mxu0 0.0
  %1139 = vmatpush1.msra.mxu0 0.0
  %1140 = vmatprep.subr.mxu0 0.0
  %1141 = vmatpush1.msra.mxu0 0.0
  %1142 = vmatprep.subr.mxu0 0.0
  %1143 = vmatpush1.msra.mxu0 0.0
  %1144 = vmatprep.subr.mxu0 0.0
  %1145 = vmatpush1.msra.mxu0 0.0
  %1146 = vmatprep.subr.mxu0 0.0
  %1147 = vmatpush1.msra.mxu0 0.0
  %1148 = vmatprep.subr.mxu0 0.0
  %1149 = vmatpush1.msra.mxu0 0.0
  %1150 = vmatprep.mubr.f32.mxu0 0.0
  %1151 = vmatmul.mubr.f32.gmra.mrb[0].mxu0 %v1081
  %v1152 = vpop.f32.mrb[0].mxu0
  %v1153 = vadd.f32 0.0, %v1152
  %v1154 = vpop.f32.mrb[0].mxu0
  %1155 = vmatprep.mubr.f32.mxu0 0.0
  %1156 = vmatmul.mubr.f32.gmra.mrb[0].mxu0 %v1084
  %v1157 = vpop.f32.mrb[0].mxu0
  %v1158 = vadd.f32 0.0, %v1157
  %v1159 = vpop.f32.mrb[0].mxu0
  %1160 = vdwg.mxu0
  %v1162 = vsel %vm1048, %v1067, 0
  %v1165 = vsel %vm1048, %v1068, 0
  %1167 = vmatprep.subr.mxu0 0.0
  %1168 = vmatpush1.msra.mxu0 %v1069
  %1169 = vmatprep.subr.mxu0 0.0
  %1170 = vmatpush1.msra.mxu0 %v1070
  %1171 = vmatprep.subr.mxu0 0.0
  %1172 = vmatpush1.msra.mxu0 %v1071
  %1173 = vmatprep.subr.mxu0 0.0
  %1174 = vmatpush1.msra.mxu0 %v1072
  %1175 = vmatprep.subr.mxu0 0.0
  %1176 = vmatpush1.msra.mxu0 0.0
  %1177 = vmatprep.subr.mxu0 0.0
  %1178 = vmatpush1.msra.mxu0 0.0
  %1179 = vmatprep.subr.mxu0 0.0
  %1180 = vmatpush1.msra.mxu0 0.0
  %1181 = vmatprep.subr.mxu0 0.0
  %1182 = vmatpush1.msra.mxu0 0.0
  %1183 = vmatprep.subr.mxu0 0.0
  %1184 = vmatpush1.msra.mxu0 0.0
  %1185 = vmatprep.subr.mxu0 0.0
  %1186 = vmatpush1.msra.mxu0 0.0
  %1187 = vmatprep.subr.mxu0 0.0
  %1188 = vmatpush1.msra.mxu0 0.0
  %1189 = vmatprep.subr.mxu0 0.0
  %1190 = vmatpush1.msra.mxu0 0.0
  %1191 = vmatprep.subr.mxu0 0.0
  %1192 = vmatpush1.msra.mxu0 0.0
  %1193 = vmatprep.subr.mxu0 0.0
  %1194 = vmatpush1.msra.mxu0 0.0
  %1195 = vmatprep.subr.mxu0 0.0
  %1196 = vmatpush1.msra.mxu0 0.0
  %1197 = vmatprep.subr.mxu0 0.0
  %1198 = vmatpush1.msra.mxu0 0.0
  %1199 = vmatprep.subr.mxu0 0.0
  %1200 = vmatpush1.msra.mxu0 0.0
  %1201 = vmatprep.subr.mxu0 0.0
  %1202 = vmatpush1.msra.mxu0 0.0
  %1203 = vmatprep.subr.mxu0 0.0
  %1204 = vmatpush1.msra.mxu0 0.0
  %1205 = vmatprep.subr.mxu0 0.0
  %1206 = vmatpush1.msra.mxu0 0.0
  %1207 = vmatprep.subr.mxu0 0.0
  %1208 = vmatpush1.msra.mxu0 0.0
  %1209 = vmatprep.subr.mxu0 0.0
  %1210 = vmatpush1.msra.mxu0 0.0
  %1211 = vmatprep.subr.mxu0 0.0
  %1212 = vmatpush1.msra.mxu0 0.0
  %1213 = vmatprep.subr.mxu0 0.0
  %1214 = vmatpush1.msra.mxu0 0.0
  %1215 = vmatprep.subr.mxu0 0.0
  %1216 = vmatpush1.msra.mxu0 0.0
  %1217 = vmatprep.subr.mxu0 0.0
  %1218 = vmatpush1.msra.mxu0 0.0
  %1219 = vmatprep.subr.mxu0 0.0
  %1220 = vmatpush1.msra.mxu0 0.0
  %1221 = vmatprep.subr.mxu0 0.0
  %1222 = vmatpush1.msra.mxu0 0.0
  %1223 = vmatprep.subr.mxu0 0.0
  %1224 = vmatpush1.msra.mxu0 0.0
  %1225 = vmatprep.subr.mxu0 0.0
  %1226 = vmatpush1.msra.mxu0 0.0
  %1227 = vmatprep.subr.mxu0 0.0
  %1228 = vmatpush1.msra.mxu0 0.0
  %1229 = vmatprep.subr.mxu0 0.0
  %1230 = vmatpush1.msra.mxu0 0.0
  %1231 = vmatprep.mubr.f32.mxu0 0.0
  %1232 = vmatmul.mubr.f32.gmra.mrb[0].mxu0 %v1162
  %v1233 = vpop.f32.mrb[0].mxu0
  %v1234 = vadd.f32 %v1153, %v1233
  %v1235 = vpop.f32.mrb[0].mxu0
  %1236 = vmatprep.mubr.f32.mxu0 0.0
  %1237 = vmatmul.mubr.f32.gmra.mrb[0].mxu0 %v1165
  %v1238 = vpop.f32.mrb[0].mxu0
  %v1239 = vadd.f32 %v1158, %v1238
  %v1240 = vpop.f32.mrb[0].mxu0
  %1241 = vdwg.mxu0
  %v1242 = vld [vmem:[#allocation2 + $0x8] sm:$0xff]
  %v1243 = vld [vmem:[#allocation2 + $0x10] sm:$0xff]
  %s1244 = scalar_lea.vmem %s3, 64
  %v1245 = vld [vmem:[%s1244] sm:$0xff]
  %v1246 = vld [vmem:[%s1244 + $0x8] sm:$0xff]
  %v1247 = vld [vmem:[%s1244 + $0x10] sm:$0xff]
  %v1248 = vld [vmem:[%s1244 + $0x18] sm:$0xff]
  %v1250 = vsel %vm1048, %v1242, 0
  %v1253 = vsel %vm1048, %v1243, 0
  %1255 = vmatprep.subr.mxu0 0.0
  %1256 = vmatpush1.msra.mxu0 %v1245
  %1257 = vmatprep.subr.mxu0 0.0
  %1258 = vmatpush1.msra.mxu0 %v1246
  %1259 = vmatprep.subr.mxu0 0.0
  %1260 = vmatpush1.msra.mxu0 %v1247
  %1261 = vmatprep.subr.mxu0 0.0
  %1262 = vmatpush1.msra.mxu0 %v1248
  %1263 = vmatprep.subr.mxu0 0.0
  %1264 = vmatpush1.msra.mxu0 0.0
  %1265 = vmatprep.subr.mxu0 0.0
  %1266 = vmatpush1.msra.mxu0 0.0
  %1267 = vmatprep.subr.mxu0 0.0
  %1268 = vmatpush1.msra.mxu0 0.0
  %1269 = vmatprep.subr.mxu0 0.0
  %1270 = vmatpush1.msra.mxu0 0.0
  %1271 = vmatprep.subr.mxu0 0.0
  %1272 = vmatpush1.msra.mxu0 0.0
  %1273 = vmatprep.subr.mxu0 0.0
  %1274 = vmatpush1.msra.mxu0 0.0
  %1275 = vmatprep.subr.mxu0 0.0
  %1276 = vmatpush1.msra.mxu0 0.0
  %1277 = vmatprep.subr.mxu0 0.0
  %1278 = vmatpush1.msra.mxu0 0.0
  %1279 = vmatprep.subr.mxu0 0.0
  %1280 = vmatpush1.msra.mxu0 0.0
  %1281 = vmatprep.subr.mxu0 0.0
  %1282 = vmatpush1.msra.mxu0 0.0
  %1283 = vmatprep.subr.mxu0 0.0
  %1284 = vmatpush1.msra.mxu0 0.0
  %1285 = vmatprep.subr.mxu0 0.0
  %1286 = vmatpush1.msra.mxu0 0.0
  %1287 = vmatprep.subr.mxu0 0.0
  %1288 = vmatpush1.msra.mxu0 0.0
  %1289 = vmatprep.subr.mxu0 0.0
  %1290 = vmatpush1.msra.mxu0 0.0
  %1291 = vmatprep.subr.mxu0 0.0
  %1292 = vmatpush1.msra.mxu0 0.0
  %1293 = vmatprep.subr.mxu0 0.0
  %1294 = vmatpush1.msra.mxu0 0.0
  %1295 = vmatprep.subr.mxu0 0.0
  %1296 = vmatpush1.msra.mxu0 0.0
  %1297 = vmatprep.subr.mxu0 0.0
  %1298 = vmatpush1.msra.mxu0 0.0
  %1299 = vmatprep.subr.mxu0 0.0
  %1300 = vmatpush1.msra.mxu0 0.0
  %1301 = vmatprep.subr.mxu0 0.0
  %1302 = vmatpush1.msra.mxu0 0.0
  %1303 = vmatprep.subr.mxu0 0.0
  %1304 = vmatpush1.msra.mxu0 0.0
  %1305 = vmatprep.subr.mxu0 0.0
  %1306 = vmatpush1.msra.mxu0 0.0
  %1307 = vmatprep.subr.mxu0 0.0
  %1308 = vmatpush1.msra.mxu0 0.0
  %1309 = vmatprep.subr.mxu0 0.0
  %1310 = vmatpush1.msra.mxu0 0.0
  %1311 = vmatprep.subr.mxu0 0.0
  %1312 = vmatpush1.msra.mxu0 0.0
  %1313 = vmatprep.subr.mxu0 0.0
  %1314 = vmatpush1.msra.mxu0 0.0
  %1315 = vmatprep.subr.mxu0 0.0
  %1316 = vmatpush1.msra.mxu0 0.0
  %1317 = vmatprep.subr.mxu0 0.0
  %1318 = vmatpush1.msra.mxu0 0.0
  %1319 = vmatprep.mubr.f32.mxu0 0.0
  %1320 = vmatmul.mubr.f32.gmra.mrb[0].mxu0 %v1250
  %v1321 = vpop.f32.mrb[0].mxu0
  %v1322 = vadd.f32 0.0, %v1321
  %v1323 = vpop.f32.mrb[0].mxu0
  %1324 = vmatprep.mubr.f32.mxu0 0.0
  %1325 = vmatmul.mubr.f32.gmra.mrb[0].mxu0 %v1253
  %v1326 = vpop.f32.mrb[0].mxu0
  %v1327 = vadd.f32 0.0, %v1326
  %v1328 = vpop.f32.mrb[0].mxu0
  %1329 = vdwg.mxu0
  %v1330 = vadd.f32 %v1234, %v1322
  %v1331 = vadd.f32 %v1239, %v1327
  %v1332 = vld [vmem:[#allocation2 + $0x18] sm:$0xff]
  %v1333 = vld [vmem:[#allocation2 + $0x20] sm:$0xff]
  %s1334 = scalar_lea.vmem %s3, 96
  %v1335 = vld [vmem:[%s1334] sm:$0xff]
  %v1336 = vld [vmem:[%s1334 + $0x8] sm:$0xff]
  %v1337 = vld [vmem:[%s1334 + $0x10] sm:$0xff]
  %v1338 = vld [vmem:[%s1334 + $0x18] sm:$0xff]
  %v1340 = vsel %vm1048, %v1332, 0
  %v1343 = vsel %vm1048, %v1333, 0
  %1345 = vmatprep.subr.mxu0 0.0
  %1346 = vmatpush1.msra.mxu0 %v1335
  %1347 = vmatprep.subr.mxu0 0.0
  %1348 = vmatpush1.msra.mxu0 %v1336
  %1349 = vmatprep.subr.mxu0 0.0
  %1350 = vmatpush1.msra.mxu0 %v1337
  %1351 = vmatprep.subr.mxu0 0.0
  %1352 = vmatpush1.msra.mxu0 %v1338
  %1353 = vmatprep.subr.mxu0 0.0
  %1354 = vmatpush1.msra.mxu0 0.0
  %1355 = vmatprep.subr.mxu0 0.0
  %1356 = vmatpush1.msra.mxu0 0.0
  %1357 = vmatprep.subr.mxu0 0.0
  %1358 = vmatpush1.msra.mxu0 0.0
  %1359 = vmatprep.subr.mxu0 0.0
  %1360 = vmatpush1.msra.mxu0 0.0
  %1361 = vmatprep.subr.mxu0 0.0
  %1362 = vmatpush1.msra.mxu0 0.0
  %1363 = vmatprep.subr.mxu0 0.0
  %1364 = vmatpush1.msra.mxu0 0.0
  %1365 = vmatprep.subr.mxu0 0.0
  %1366 = vmatpush1.msra.mxu0 0.0
  %1367 = vmatprep.subr.mxu0 0.0
  %1368 = vmatpush1.msra.mxu0 0.0
  %1369 = vmatprep.subr.mxu0 0.0
  %1370 = vmatpush1.msra.mxu0 0.0
  %1371 = vmatprep.subr.mxu0 0.0
  %1372 = vmatpush1.msra.mxu0 0.0
  %1373 = vmatprep.subr.mxu0 0.0
  %1374 = vmatpush1.msra.mxu0 0.0
  %1375 = vmatprep.subr.mxu0 0.0
  %1376 = vmatpush1.msra.mxu0 0.0
  %1377 = vmatprep.subr.mxu0 0.0
  %1378 = vmatpush1.msra.mxu0 0.0
  %1379 = vmatprep.subr.mxu0 0.0
  %1380 = vmatpush1.msra.mxu0 0.0
  %1381 = vmatprep.subr.mxu0 0.0
  %1382 = vmatpush1.msra.mxu0 0.0
  %1383 = vmatprep.subr.mxu0 0.0
  %1384 = vmatpush1.msra.mxu0 0.0
  %1385 = vmatprep.subr.mxu0 0.0
  %1386 = vmatpush1.msra.mxu0 0.0
  %1387 = vmatprep.subr.mxu0 0.0
  %1388 = vmatpush1.msra.mxu0 0.0
  %1389 = vmatprep.subr.mxu0 0.0
  %1390 = vmatpush1.msra.mxu0 0.0
  %1391 = vmatprep.subr.mxu0 0.0
  %1392 = vmatpush1.msra.mxu0 0.0
  %1393 = vmatprep.subr.mxu0 0.0
  %1394 = vmatpush1.msra.mxu0 0.0
  %1395 = vmatprep.subr.mxu0 0.0
  %1396 = vmatpush1.msra.mxu0 0.0
  %1397 = vmatprep.subr.mxu0 0.0
  %1398 = vmatpush1.msra.mxu0 0.0
  %1399 = vmatprep.subr.mxu0 0.0
  %1400 = vmatpush1.msra.mxu0 0.0
  %1401 = vmatprep.subr.mxu0 0.0
  %1402 = vmatpush1.msra.mxu0 0.0
  %1403 = vmatprep.subr.mxu0 0.0
  %1404 = vmatpush1.msra.mxu0 0.0
  %1405 = vmatprep.subr.mxu0 0.0
  %1406 = vmatpush1.msra.mxu0 0.0
  %1407 = vmatprep.subr.mxu0 0.0
  %1408 = vmatpush1.msra.mxu0 0.0
  %1409 = vmatprep.mubr.f32.mxu0 0.0
  %1410 = vmatmul.mubr.f32.gmra.mrb[0].mxu0 %v1340
  %v1411 = vpop.f32.mrb[0].mxu0
  %v1412 = vadd.f32 0.0, %v1411
  %v1413 = vpop.f32.mrb[0].mxu0
  %1414 = vmatprep.mubr.f32.mxu0 0.0
  %1415 = vmatmul.mubr.f32.gmra.mrb[0].mxu0 %v1343
  %v1416 = vpop.f32.mrb[0].mxu0
  %v1417 = vadd.f32 0.0, %v1416
  %v1418 = vpop.f32.mrb[0].mxu0
  %1419 = vdwg.mxu0
  %v1420 = vadd.f32 %v1330, %v1412
  %v1421 = vadd.f32 %v1331, %v1417
  %v1422 = vld [vmem:[#allocation2 + $0x1c] sm:$0xff]
  %v1423 = vld [vmem:[#allocation2 + $0x24] sm:$0xff]
  %s1424 = scalar_lea.vmem %s3, 128
  %v1425 = vld [vmem:[%s1424] sm:$0xff]
  %v1426 = vld [vmem:[%s1424 + $0x8] sm:$0xff]
  %v1427 = vld [vmem:[%s1424 + $0x10] sm:$0xff]
  %v1428 = vld [vmem:[%s1424 + $0x18] sm:$0xff]
  %v1430 = vsel %vm1048, %v1422, 0
  %v1433 = vsel %vm1048, %v1423, 0
  %1435 = vmatprep.subr.mxu0 0.0
  %1436 = vmatpush1.msra.mxu0 %v1425
  %1437 = vmatprep.subr.mxu0 0.0
  %1438 = vmatpush1.msra.mxu0 %v1426
  %1439 = vmatprep.subr.mxu0 0.0
  %1440 = vmatpush1.msra.mxu0 %v1427
  %1441 = vmatprep.subr.mxu0 0.0
  %1442 = vmatpush1.msra.mxu0 %v1428
  %1443 = vmatprep.subr.mxu0 0.0
  %1444 = vmatpush1.msra.mxu0 0.0
  %1445 = vmatprep.subr.mxu0 0.0
  %1446 = vmatpush1.msra.mxu0 0.0
  %1447 = vmatprep.subr.mxu0 0.0
  %1448 = vmatpush1.msra.mxu0 0.0
  %1449 = vmatprep.subr.mxu0 0.0
  %1450 = vmatpush1.msra.mxu0 0.0
  %1451 = vmatprep.subr.mxu0 0.0
  %1452 = vmatpush1.msra.mxu0 0.0
  %1453 = vmatprep.subr.mxu0 0.0
  %1454 = vmatpush1.msra.mxu0 0.0
  %1455 = vmatprep.subr.mxu0 0.0
  %1456 = vmatpush1.msra.mxu0 0.0
  %1457 = vmatprep.subr.mxu0 0.0
  %1458 = vmatpush1.msra.mxu0 0.0
  %1459 = vmatprep.subr.mxu0 0.0
  %1460 = vmatpush1.msra.mxu0 0.0
  %1461 = vmatprep.subr.mxu0 0.0
  %1462 = vmatpush1.msra.mxu0 0.0
  %1463 = vmatprep.subr.mxu0 0.0
  %1464 = vmatpush1.msra.mxu0 0.0
  %1465 = vmatprep.subr.mxu0 0.0
  %1466 = vmatpush1.msra.mxu0 0.0
  %1467 = vmatprep.subr.mxu0 0.0
  %1468 = vmatpush1.msra.mxu0 0.0
  %1469 = vmatprep.subr.mxu0 0.0
  %1470 = vmatpush1.msra.mxu0 0.0
  %1471 = vmatprep.subr.mxu0 0.0
  %1472 = vmatpush1.msra.mxu0 0.0
  %1473 = vmatprep.subr.mxu0 0.0
  %1474 = vmatpush1.msra.mxu0 0.0
  %1475 = vmatprep.subr.mxu0 0.0
  %1476 = vmatpush1.msra.mxu0 0.0
  %1477 = vmatprep.subr.mxu0 0.0
  %1478 = vmatpush1.msra.mxu0 0.0
  %1479 = vmatprep.subr.mxu0 0.0
  %1480 = vmatpush1.msra.mxu0 0.0
  %1481 = vmatprep.subr.mxu0 0.0
  %1482 = vmatpush1.msra.mxu0 0.0
  %1483 = vmatprep.subr.mxu0 0.0
  %1484 = vmatpush1.msra.mxu0 0.0
  %1485 = vmatprep.subr.mxu0 0.0
  %1486 = vmatpush1.msra.mxu0 0.0
  %1487 = vmatprep.subr.mxu0 0.0
  %1488 = vmatpush1.msra.mxu0 0.0
  %1489 = vmatprep.subr.mxu0 0.0
  %1490 = vmatpush1.msra.mxu0 0.0
  %1491 = vmatprep.subr.mxu0 0.0
  %1492 = vmatpush1.msra.mxu0 0.0
  %1493 = vmatprep.subr.mxu0 0.0
  %1494 = vmatpush1.msra.mxu0 0.0
  %1495 = vmatprep.subr.mxu0 0.0
  %1496 = vmatpush1.msra.mxu0 0.0
  %1497 = vmatprep.subr.mxu0 0.0
  %1498 = vmatpush1.msra.mxu0 0.0
  %1499 = vmatprep.mubr.f32.mxu0 0.0
  %1500 = vmatmul.mubr.f32.gmra.mrb[0].mxu0 %v1430
  %v1501 = vpop.f32.mrb[0].mxu0
  %v1502 = vadd.f32 0.0, %v1501
  %v1503 = vpop.f32.mrb[0].mxu0
  %1504 = vmatprep.mubr.f32.mxu0 0.0
  %1505 = vmatmul.mubr.f32.gmra.mrb[0].mxu0 %v1433
  %v1506 = vpop.f32.mrb[0].mxu0
  %v1507 = vadd.f32 0.0, %v1506
  %v1508 = vpop.f32.mrb[0].mxu0
  %1509 = vdwg.mxu0
  %v1510 = vadd.f32 %v1420, %v1502
  %v1511 = vadd.f32 %v1421, %v1507
  %v1512 = vld [vmem:[#allocation2 + $0x20] sm:$0xff]
  %v1513 = vld [vmem:[#allocation2 + $0x28] sm:$0xff]
  %s1514 = scalar_lea.vmem %s3, 160
  %v1515 = vld [vmem:[%s1514] sm:$0xff]
  %v1516 = vld [vmem:[%s1514 + $0x8] sm:$0xff]
  %v1517 = vld [vmem:[%s1514 + $0x10] sm:$0xff]
  %v1518 = vld [vmem:[%s1514 + $0x18] sm:$0xff]
  %v1520 = vsel %vm1048, %v1512, 0
  %v1523 = vsel %vm1048, %v1513, 0
  %1525 = vmatprep.subr.mxu0 0.0
  %1526 = vmatpush1.msra.mxu0 %v1515
  %1527 = vmatprep.subr.mxu0 0.0
  %1528 = vmatpush1.msra.mxu0 %v1516
  %1529 = vmatprep.subr.mxu0 0.0
  %1530 = vmatpush1.msra.mxu0 %v1517
  %1531 = vmatprep.subr.mxu0 0.0
  %1532 = vmatpush1.msra.mxu0 %v1518
  %1533 = vmatprep.subr.mxu0 0.0
  %1534 = vmatpush1.msra.mxu0 0.0
  %1535 = vmatprep.subr.mxu0 0.0
  %1536 = vmatpush1.msra.mxu0 0.0
  %1537 = vmatprep.subr.mxu0 0.0
  %1538 = vmatpush1.msra.mxu0 0.0
  %1539 = vmatprep.subr.mxu0 0.0
  %1540 = vmatpush1.msra.mxu0 0.0
  %1541 = vmatprep.subr.mxu0 0.0
  %1542 = vmatpush1.msra.mxu0 0.0
  %1543 = vmatprep.subr.mxu0 0.0
  %1544 = vmatpush1.msra.mxu0 0.0
  %1545 = vmatprep.subr.mxu0 0.0
  %1546 = vmatpush1.msra.mxu0 0.0
  %1547 = vmatprep.subr.mxu0 0.0
  %1548 = vmatpush1.msra.mxu0 0.0
  %1549 = vmatprep.subr.mxu0 0.0
  %1550 = vmatpush1.msra.mxu0 0.0
  %1551 = vmatprep.subr.mxu0 0.0
  %1552 = vmatpush1.msra.mxu0 0.0
  %1553 = vmatprep.subr.mxu0 0.0
  %1554 = vmatpush1.msra.mxu0 0.0
  %1555 = vmatprep.subr.mxu0 0.0
  %1556 = vmatpush1.msra.mxu0 0.0
  %1557 = vmatprep.subr.mxu0 0.0
  %1558 = vmatpush1.msra.mxu0 0.0
  %1559 = vmatprep.subr.mxu0 0.0
  %1560 = vmatpush1.msra.mxu0 0.0
  %1561 = vmatprep.subr.mxu0 0.0
  %1562 = vmatpush1.msra.mxu0 0.0
  %1563 = vmatprep.subr.mxu0 0.0
  %1564 = vmatpush1.msra.mxu0 0.0
  %1565 = vmatprep.subr.mxu0 0.0
  %1566 = vmatpush1.msra.mxu0 0.0
  %1567 = vmatprep.subr.mxu0 0.0
  %1568 = vmatpush1.msra.mxu0 0.0
  %1569 = vmatprep.subr.mxu0 0.0
  %1570 = vmatpush1.msra.mxu0 0.0
  %1571 = vmatprep.subr.mxu0 0.0
  %1572 = vmatpush1.msra.mxu0 0.0
  %1573 = vmatprep.subr.mxu0 0.0
  %1574 = vmatpush1.msra.mxu0 0.0
  %1575 = vmatprep.subr.mxu0 0.0
  %1576 = vmatpush1.msra.mxu0 0.0
  %1577 = vmatprep.subr.mxu0 0.0
  %1578 = vmatpush1.msra.mxu0 0.0
  %1579 = vmatprep.subr.mxu0 0.0
  %1580 = vmatpush1.msra.mxu0 0.0
  %1581 = vmatprep.subr.mxu0 0.0
  %1582 = vmatpush1.msra.mxu0 0.0
  %1583 = vmatprep.subr.mxu0 0.0
  %1584 = vmatpush1.msra.mxu0 0.0
  %1585 = vmatprep.subr.mxu0 0.0
  %1586 = vmatpush1.msra.mxu0 0.0
  %1587 = vmatprep.subr.mxu0 0.0
  %1588 = vmatpush1.msra.mxu0 0.0
  %1589 = vmatprep.mubr.f32.mxu0 0.0
  %1590 = vmatmul.mubr.f32.gmra.mrb[0].mxu0 %v1520
  %v1591 = vpop.f32.mrb[0].mxu0
  %v1592 = vadd.f32 0.0, %v1591
  %v1593 = vpop.f32.mrb[0].mxu0
  %1594 = vmatprep.mubr.f32.mxu0 0.0
  %1595 = vmatmul.mubr.f32.gmra.mrb[0].mxu0 %v1523
  %v1596 = vpop.f32.mrb[0].mxu0
  %v1597 = vadd.f32 0.0, %v1596
  %v1598 = vpop.f32.mrb[0].mxu0
  %1599 = vdwg.mxu0
  %v1600 = vadd.f32 %v1510, %v1592
  %v1601 = vadd.f32 %v1511, %v1597
  %v1602 = vld [vmem:[#allocation2 + $0x30] sm:$0xff]
  %v1603 = vld [vmem:[#allocation2 + $0x38] sm:$0xff]
  %s1604 = scalar_lea.vmem %s3, 192
  %v1605 = vld [vmem:[%s1604] sm:$0xff]
  %v1606 = vld [vmem:[%s1604 + $0x8] sm:$0xff]
  %v1607 = vld [vmem:[%s1604 + $0x10] sm:$0xff]
  %v1608 = vld [vmem:[%s1604 + $0x18] sm:$0xff]
  %v1610 = vsel %vm1048, %v1602, 0
  %v1613 = vsel %vm1048, %v1603, 0
  %1615 = vmatprep.subr.mxu0 0.0
  %1616 = vmatpush1.msra.mxu0 %v1605
  %1617 = vmatprep.subr.mxu0 0.0
  %1618 = vmatpush1.msra.mxu0 %v1606
  %1619 = vmatprep.subr.mxu0 0.0
  %1620 = vmatpush1.msra.mxu0 %v1607
  %1621 = vmatprep.subr.mxu0 0.0
  %1622 = vmatpush1.msra.mxu0 %v1608
  %1623 = vmatprep.subr.mxu0 0.0
  %1624 = vmatpush1.msra.mxu0 0.0
  %1625 = vmatprep.subr.mxu0 0.0
  %1626 = vmatpush1.msra.mxu0 0.0
  %1627 = vmatprep.subr.mxu0 0.0
  %1628 = vmatpush1.msra.mxu0 0.0
  %1629 = vmatprep.subr.mxu0 0.0
  %1630 = vmatpush1.msra.mxu0 0.0
  %1631 = vmatprep.subr.mxu0 0.0
  %1632 = vmatpush1.msra.mxu0 0.0
  %1633 = vmatprep.subr.mxu0 0.0
  %1634 = vmatpush1.msra.mxu0 0.0
  %1635 = vmatprep.subr.mxu0 0.0
  %1636 = vmatpush1.msra.mxu0 0.0
  %1637 = vmatprep.subr.mxu0 0.0
  %1638 = vmatpush1.msra.mxu0 0.0
  %1639 = vmatprep.subr.mxu0 0.0
  %1640 = vmatpush1.msra.mxu0 0.0
  %1641 = vmatprep.subr.mxu0 0.0
  %1642 = vmatpush1.msra.mxu0 0.0
  %1643 = vmatprep.subr.mxu0 0.0
  %1644 = vmatpush1.msra.mxu0 0.0
  %1645 = vmatprep.subr.mxu0 0.0
  %1646 = vmatpush1.msra.mxu0 0.0
  %1647 = vmatprep.subr.mxu0 0.0
  %1648 = vmatpush1.msra.mxu0 0.0
  %1649 = vmatprep.subr.mxu0 0.0
  %1650 = vmatpush1.msra.mxu0 0.0
  %1651 = vmatprep.subr.mxu0 0.0
  %1652 = vmatpush1.msra.mxu0 0.0
  %1653 = vmatprep.subr.mxu0 0.0
  %1654 = vmatpush1.msra.mxu0 0.0
  %1655 = vmatprep.subr.mxu0 0.0
  %1656 = vmatpush1.msra.mxu0 0.0
  %1657 = vmatprep.subr.mxu0 0.0
  %1658 = vmatpush1.msra.mxu0 0.0
  %1659 = vmatprep.subr.mxu0 0.0
  %1660 = vmatpush1.msra.mxu0 0.0
  %1661 = vmatprep.subr.mxu0 0.0
  %1662 = vmatpush1.msra.mxu0 0.0
  %1663 = vmatprep.subr.mxu0 0.0
  %1664 = vmatpush1.msra.mxu0 0.0
  %1665 = vmatprep.subr.mxu0 0.0
  %1666 = vmatpush1.msra.mxu0 0.0
  %1667 = vmatprep.subr.mxu0 0.0
  %1668 = vmatpush1.msra.mxu0 0.0
  %1669 = vmatprep.subr.mxu0 0.0
  %1670 = vmatpush1.msra.mxu0 0.0
  %1671 = vmatprep.subr.mxu0 0.0
  %1672 = vmatpush1.msra.mxu0 0.0
  %1673 = vmatprep.subr.mxu0 0.0
  %1674 = vmatpush1.msra.mxu0 0.0
  %1675 = vmatprep.subr.mxu0 0.0
  %1676 = vmatpush1.msra.mxu0 0.0
  %1677 = vmatprep.subr.mxu0 0.0
  %1678 = vmatpush1.msra.mxu0 0.0
  %1679 = vmatprep.mubr.f32.mxu0 0.0
  %1680 = vmatmul.mubr.f32.gmra.mrb[0].mxu0 %v1610
  %v1681 = vpop.f32.mrb[0].mxu0
  %v1682 = vadd.f32 0.0, %v1681
  %v1683 = vpop.f32.mrb[0].mxu0
  %1684 = vmatprep.mubr.f32.mxu0 0.0
  %1685 = vmatmul.mubr.f32.gmra.mrb[0].mxu0 %v1613
  %v1686 = vpop.f32.mrb[0].mxu0
  %v1687 = vadd.f32 0.0, %v1686
  %v1688 = vpop.f32.mrb[0].mxu0
  %1689 = vdwg.mxu0
  %v1690 = vadd.f32 %v1600, %v1682
  %v1691 = vadd.f32 %v1601, %v1687
  %v1692 = vld [vmem:[#allocation2 + $0x34] sm:$0xff]
  %v1693 = vld [vmem:[#allocation2 + $0x3c] sm:$0xff]
  %s1694 = scalar_lea.vmem %s3, 224
  %v1695 = vld [vmem:[%s1694] sm:$0xff]
  %v1696 = vld [vmem:[%s1694 + $0x8] sm:$0xff]
  %v1697 = vld [vmem:[%s1694 + $0x10] sm:$0xff]
  %v1698 = vld [vmem:[%s1694 + $0x18] sm:$0xff]
  %v1700 = vsel %vm1048, %v1692, 0
  %v1703 = vsel %vm1048, %v1693, 0
  %1705 = vmatprep.subr.mxu0 0.0
  %1706 = vmatpush1.msra.mxu0 %v1695
  %1707 = vmatprep.subr.mxu0 0.0
  %1708 = vmatpush1.msra.mxu0 %v1696
  %1709 = vmatprep.subr.mxu0 0.0
  %1710 = vmatpush1.msra.mxu0 %v1697
  %1711 = vmatprep.subr.mxu0 0.0
  %1712 = vmatpush1.msra.mxu0 %v1698
  %1713 = vmatprep.subr.mxu0 0.0
  %1714 = vmatpush1.msra.mxu0 0.0
  %1715 = vmatprep.subr.mxu0 0.0
  %1716 = vmatpush1.msra.mxu0 0.0
  %1717 = vmatprep.subr.mxu0 0.0
  %1718 = vmatpush1.msra.mxu0 0.0
  %1719 = vmatprep.subr.mxu0 0.0
  %1720 = vmatpush1.msra.mxu0 0.0
  %1721 = vmatprep.subr.mxu0 0.0
  %1722 = vmatpush1.msra.mxu0 0.0
  %1723 = vmatprep.subr.mxu0 0.0
  %1724 = vmatpush1.msra.mxu0 0.0
  %1725 = vmatprep.subr.mxu0 0.0
  %1726 = vmatpush1.msra.mxu0 0.0
  %1727 = vmatprep.subr.mxu0 0.0
  %1728 = vmatpush1.msra.mxu0 0.0
  %1729 = vmatprep.subr.mxu0 0.0
  %1730 = vmatpush1.msra.mxu0 0.0
  %1731 = vmatprep.subr.mxu0 0.0
  %1732 = vmatpush1.msra.mxu0 0.0
  %1733 = vmatprep.subr.mxu0 0.0
  %1734 = vmatpush1.msra.mxu0 0.0
  %1735 = vmatprep.subr.mxu0 0.0
  %1736 = vmatpush1.msra.mxu0 0.0
  %1737 = vmatprep.subr.mxu0 0.0
  %1738 = vmatpush1.msra.mxu0 0.0
  %1739 = vmatprep.subr.mxu0 0.0
  %1740 = vmatpush1.msra.mxu0 0.0
  %1741 = vmatprep.subr.mxu0 0.0
  %1742 = vmatpush1.msra.mxu0 0.0
  %1743 = vmatprep.subr.mxu0 0.0
  %1744 = vmatpush1.msra.mxu0 0.0
  %1745 = vmatprep.subr.mxu0 0.0
  %1746 = vmatpush1.msra.mxu0 0.0
  %1747 = vmatprep.subr.mxu0 0.0
  %1748 = vmatpush1.msra.mxu0 0.0
  %1749 = vmatprep.subr.mxu0 0.0
  %1750 = vmatpush1.msra.mxu0 0.0
  %1751 = vmatprep.subr.mxu0 0.0
  %1752 = vmatpush1.msra.mxu0 0.0
  %1753 = vmatprep.subr.mxu0 0.0
  %1754 = vmatpush1.msra.mxu0 0.0
  %1755 = vmatprep.subr.mxu0 0.0
  %1756 = vmatpush1.msra.mxu0 0.0
  %1757 = vmatprep.subr.mxu0 0.0
  %1758 = vmatpush1.msra.mxu0 0.0
  %1759 = vmatprep.subr.mxu0 0.0
  %1760 = vmatpush1.msra.mxu0 0.0
  %1761 = vmatprep.subr.mxu0 0.0
  %1762 = vmatpush1.msra.mxu0 0.0
  %1763 = vmatprep.subr.mxu0 0.0
  %1764 = vmatpush1.msra.mxu0 0.0
  %1765 = vmatprep.subr.mxu0 0.0
  %1766 = vmatpush1.msra.mxu0 0.0
  %1767 = vmatprep.subr.mxu0 0.0
  %1768 = vmatpush1.msra.mxu0 0.0
  %1769 = vmatprep.mubr.f32.mxu0 0.0
  %1770 = vmatmul.mubr.f32.gmra.mrb[0].mxu0 %v1700
  %v1771 = vpop.f32.mrb[0].mxu0
  %v1772 = vadd.f32 0.0, %v1771
  %v1773 = vpop.f32.mrb[0].mxu0
  %1774 = vmatprep.mubr.f32.mxu0 0.0
  %1775 = vmatmul.mubr.f32.gmra.mrb[0].mxu0 %v1703
  %v1776 = vpop.f32.mrb[0].mxu0
  %v1777 = vadd.f32 0.0, %v1776
  %v1778 = vpop.f32.mrb[0].mxu0
  %1779 = vdwg.mxu0
  %v1780 = vadd.f32 %v1690, %v1772
  %v1781 = vadd.f32 %v1691, %v1777
  %v1782 = vld [vmem:[#allocation2 + $0x38] sm:$0xff]
  %v1783 = vld [vmem:[#allocation2 + $0x40] sm:$0xff]
  %s1784 = scalar_lea.vmem %s3, 256
  %v1785 = vld [vmem:[%s1784] sm:$0xff]
  %v1786 = vld [vmem:[%s1784 + $0x8] sm:$0xff]
  %v1787 = vld [vmem:[%s1784 + $0x10] sm:$0xff]
  %v1788 = vld [vmem:[%s1784 + $0x18] sm:$0xff]
  %v1790 = vsel %vm1048, %v1782, 0
  %v1793 = vsel %vm1048, %v1783, 0
  %1795 = vmatprep.subr.mxu0 0.0
  %1796 = vmatpush1.msra.mxu0 %v1785
  %1797 = vmatprep.subr.mxu0 0.0
  %1798 = vmatpush1.msra.mxu0 %v1786
  %1799 = vmatprep.subr.mxu0 0.0
  %1800 = vmatpush1.msra.mxu0 %v1787
  %1801 = vmatprep.subr.mxu0 0.0
  %1802 = vmatpush1.msra.mxu0 %v1788
  %1803 = vmatprep.subr.mxu0 0.0
  %1804 = vmatpush1.msra.mxu0 0.0
  %1805 = vmatprep.subr.mxu0 0.0
  %1806 = vmatpush1.msra.mxu0 0.0
  %1807 = vmatprep.subr.mxu0 0.0
  %1808 = vmatpush1.msra.mxu0 0.0
  %1809 = vmatprep.subr.mxu0 0.0
  %1810 = vmatpush1.msra.mxu0 0.0
  %1811 = vmatprep.subr.mxu0 0.0
  %1812 = vmatpush1.msra.mxu0 0.0
  %1813 = vmatprep.subr.mxu0 0.0
  %1814 = vmatpush1.msra.mxu0 0.0
  %1815 = vmatprep.subr.mxu0 0.0
  %1816 = vmatpush1.msra.mxu0 0.0
  %1817 = vmatprep.subr.mxu0 0.0
  %1818 = vmatpush1.msra.mxu0 0.0
  %1819 = vmatprep.subr.mxu0 0.0
  %1820 = vmatpush1.msra.mxu0 0.0
  %1821 = vmatprep.subr.mxu0 0.0
  %1822 = vmatpush1.msra.mxu0 0.0
  %1823 = vmatprep.subr.mxu0 0.0
  %1824 = vmatpush1.msra.mxu0 0.0
  %1825 = vmatprep.subr.mxu0 0.0
  %1826 = vmatpush1.msra.mxu0 0.0
  %1827 = vmatprep.subr.mxu0 0.0
  %1828 = vmatpush1.msra.mxu0 0.0
  %1829 = vmatprep.subr.mxu0 0.0
  %1830 = vmatpush1.msra.mxu0 0.0
  %1831 = vmatprep.subr.mxu0 0.0
  %1832 = vmatpush1.msra.mxu0 0.0
  %1833 = vmatprep.subr.mxu0 0.0
  %1834 = vmatpush1.msra.mxu0 0.0
  %1835 = vmatprep.subr.mxu0 0.0
  %1836 = vmatpush1.msra.mxu0 0.0
  %1837 = vmatprep.subr.mxu0 0.0
  %1838 = vmatpush1.msra.mxu0 0.0
  %1839 = vmatprep.subr.mxu0 0.0
  %1840 = vmatpush1.msra.mxu0 0.0
  %1841 = vmatprep.subr.mxu0 0.0
  %1842 = vmatpush1.msra.mxu0 0.0
  %1843 = vmatprep.subr.mxu0 0.0
  %1844 = vmatpush1.msra.mxu0 0.0
  %1845 = vmatprep.subr.mxu0 0.0
  %1846 = vmatpush1.msra.mxu0 0.0
  %1847 = vmatprep.subr.mxu0 0.0
  %1848 = vmatpush1.msra.mxu0 0.0
  %1849 = vmatprep.subr.mxu0 0.0
  %1850 = vmatpush1.msra.mxu0 0.0
  %1851 = vmatprep.subr.mxu0 0.0
  %1852 = vmatpush1.msra.mxu0 0.0
  %1853 = vmatprep.subr.mxu0 0.0
  %1854 = vmatpush1.msra.mxu0 0.0
  %1855 = vmatprep.subr.mxu0 0.0
  %1856 = vmatpush1.msra.mxu0 0.0
  %1857 = vmatprep.subr.mxu0 0.0
  %1858 = vmatpush1.msra.mxu0 0.0
  %1859 = vmatprep.mubr.f32.mxu0 0.0
  %1860 = vmatmul.mubr.f32.gmra.mrb[0].mxu0 %v1790
  %v1861 = vpop.f32.mrb[0].mxu0
  %v1862 = vadd.f32 0.0, %v1861
  %v1863 = vpop.f32.mrb[0].mxu0
  %1864 = vmatprep.mubr.f32.mxu0 0.0
  %1865 = vmatmul.mubr.f32.gmra.mrb[0].mxu0 %v1793
  %v1866 = vpop.f32.mrb[0].mxu0
  %v1867 = vadd.f32 0.0, %v1866
  %v1868 = vpop.f32.mrb[0].mxu0
  %1869 = vdwg.mxu0
  %v1870 = vadd.f32 %v1780, %v1862
  %v1871 = vadd.f32 %v1781, %v1867
  %vm1872 = vcmask 523264
  %1873 = vst.msk [vmem:[#allocation3] sm:$0xff] %vm1872, %v1870
  %1874 = vst.msk [vmem:[#allocation3 + $0x8] sm:$0xff] %vm1872, %v1871
  %v1875 = vld [vmem:[#allocation2 + $0x18] sm:$0xff]
  %v1876 = vld [vmem:[#allocation2 + $0x20] sm:$0xff]
  %v1877 = vld [vmem:[%s3] sm:$0xff]
  %v1878 = vld [vmem:[%s3 + $0x8] sm:$0xff]
  %v1879 = vld [vmem:[%s3 + $0x10] sm:$0xff]
  %v1880 = vld [vmem:[%s3 + $0x18] sm:$0xff]
  %v1881 = vld [vmem:[#allocation2 + $0x1c] sm:$0xff]
  %v1882 = vld [vmem:[#allocation2 + $0x24] sm:$0xff]
  %v1883 = vld [vmem:[%s1075] sm:$0xff]
  %v1884 = vld [vmem:[%s1075 + $0x8] sm:$0xff]
  %v1885 = vld [vmem:[%s1075 + $0x10] sm:$0xff]
  %v1886 = vld [vmem:[%s1075 + $0x18] sm:$0xff]
  %v1888 = vsel %vm1048, %v1881, 0
  %v1891 = vsel %vm1048, %v1882, 0
  %1893 = vmatprep.subr.mxu0 0.0
  %1894 = vmatpush1.msra.mxu0 %v1883
  %1895 = vmatprep.subr.mxu0 0.0
  %1896 = vmatpush1.msra.mxu0 %v1884
  %1897 = vmatprep.subr.mxu0 0.0
  %1898 = vmatpush1.msra.mxu0 %v1885
  %1899 = vmatprep.subr.mxu0 0.0
  %1900 = vmatpush1.msra.mxu0 %v1886
  %1901 = vmatprep.subr.mxu0 0.0
  %1902 = vmatpush1.msra.mxu0 0.0
  %1903 = vmatprep.subr.mxu0 0.0
  %1904 = vmatpush1.msra.mxu0 0.0
  %1905 = vmatprep.subr.mxu0 0.0
  %1906 = vmatpush1.msra.mxu0 0.0
  %1907 = vmatprep.subr.mxu0 0.0
  %1908 = vmatpush1.msra.mxu0 0.0
  %1909 = vmatprep.subr.mxu0 0.0
  %1910 = vmatpush1.msra.mxu0 0.0
  %1911 = vmatprep.subr.mxu0 0.0
  %1912 = vmatpush1.msra.mxu0 0.0
  %1913 = vmatprep.subr.mxu0 0.0
  %1914 = vmatpush1.msra.mxu0 0.0
  %1915 = vmatprep.subr.mxu0 0.0
  %1916 = vmatpush1.msra.mxu0 0.0
  %1917 = vmatprep.subr.mxu0 0.0
  %1918 = vmatpush1.msra.mxu0 0.0
  %1919 = vmatprep.subr.mxu0 0.0
  %1920 = vmatpush1.msra.mxu0 0.0
  %1921 = vmatprep.subr.mxu0 0.0
  %1922 = vmatpush1.msra.mxu0 0.0
  %1923 = vmatprep.subr.mxu0 0.0
  %1924 = vmatpush1.msra.mxu0 0.0
  %1925 = vmatprep.subr.mxu0 0.0
  %1926 = vmatpush1.msra.mxu0 0.0
  %1927 = vmatprep.subr.mxu0 0.0
  %1928 = vmatpush1.msra.mxu0 0.0
  %1929 = vmatprep.subr.mxu0 0.0
  %1930 = vmatpush1.msra.mxu0 0.0
  %1931 = vmatprep.subr.mxu0 0.0
  %1932 = vmatpush1.msra.mxu0 0.0
  %1933 = vmatprep.subr.mxu0 0.0
  %1934 = vmatpush1.msra.mxu0 0.0
  %1935 = vmatprep.subr.mxu0 0.0
  %1936 = vmatpush1.msra.mxu0 0.0
  %1937 = vmatprep.subr.mxu0 0.0
  %1938 = vmatpush1.msra.mxu0 0.0
  %1939 = vmatprep.subr.mxu0 0.0
  %1940 = vmatpush1.msra.mxu0 0.0
  %1941 = vmatprep.subr.mxu0 0.0
  %1942 = vmatpush1.msra.mxu0 0.0
  %1943 = vmatprep.subr.mxu0 0.0
  %1944 = vmatpush1.msra.mxu0 0.0
  %1945 = vmatprep.subr.mxu0 0.0
  %1946 = vmatpush1.msra.mxu0 0.0
  %1947 = vmatprep.subr.mxu0 0.0
  %1948 = vmatpush1.msra.mxu0 0.0
  %1949 = vmatprep.subr.mxu0 0.0
  %1950 = vmatpush1.msra.mxu0 0.0
  %1951 = vmatprep.subr.mxu0 0.0
  %1952 = vmatpush1.msra.mxu0 0.0
  %1953 = vmatprep.subr.mxu0 0.0
  %1954 = vmatpush1.msra.mxu0 0.0
  %1955 = vmatprep.subr.mxu0 0.0
  %1956 = vmatpush1.msra.mxu0 0.0
  %1957 = vmatprep.mubr.f32.mxu0 0.0
  %1958 = vmatmul.mubr.f32.gmra.mrb[0].mxu0 %v1888
  %v1959 = vpop.f32.mrb[0].mxu0
  %v1960 = vadd.f32 0.0, %v1959
  %v1961 = vpop.f32.mrb[0].mxu0
  %1962 = vmatprep.mubr.f32.mxu0 0.0
  %1963 = vmatmul.mubr.f32.gmra.mrb[0].mxu0 %v1891
  %v1964 = vpop.f32.mrb[0].mxu0
  %v1965 = vadd.f32 0.0, %v1964
  %v1966 = vpop.f32.mrb[0].mxu0
  %1967 = vdwg.mxu0
  %v1969 = vsel %vm1048, %v1875, 0
  %v1972 = vsel %vm1048, %v1876, 0
  %1974 = vmatprep.subr.mxu0 0.0
  %1975 = vmatpush1.msra.mxu0 %v1877
  %1976 = vmatprep.subr.mxu0 0.0
  %1977 = vmatpush1.msra.mxu0 %v1878
  %1978 = vmatprep.subr.mxu0 0.0
  %1979 = vmatpush1.msra.mxu0 %v1879
  %1980 = vmatprep.subr.mxu0 0.0
  %1981 = vmatpush1.msra.mxu0 %v1880
  %1982 = vmatprep.subr.mxu0 0.0
  %1983 = vmatpush1.msra.mxu0 0.0
  %1984 = vmatprep.subr.mxu0 0.0
  %1985 = vmatpush1.msra.mxu0 0.0
  %1986 = vmatprep.subr.mxu0 0.0
  %1987 = vmatpush1.msra.mxu0 0.0
  %1988 = vmatprep.subr.mxu0 0.0
  %1989 = vmatpush1.msra.mxu0 0.0
  %1990 = vmatprep.subr.mxu0 0.0
  %1991 = vmatpush1.msra.mxu0 0.0
  %1992 = vmatprep.subr.mxu0 0.0
  %1993 = vmatpush1.msra.mxu0 0.0
  %1994 = vmatprep.subr.mxu0 0.0
  %1995 = vmatpush1.msra.mxu0 0.0
  %1996 = vmatprep.subr.mxu0 0.0
  %1997 = vmatpush1.msra.mxu0 0.0
  %1998 = vmatprep.subr.mxu0 0.0
  %1999 = vmatpush1.msra.mxu0 0.0
  %2000 = vmatprep.subr.mxu0 0.0
  %2001 = vmatpush1.msra.mxu0 0.0
  %2002 = vmatprep.subr.mxu0 0.0
  %2003 = vmatpush1.msra.mxu0 0.0
  %2004 = vmatprep.subr.mxu0 0.0
  %2005 = vmatpush1.msra.mxu0 0.0
  %2006 = vmatprep.subr.mxu0 0.0
  %2007 = vmatpush1.msra.mxu0 0.0
  %2008 = vmatprep.subr.mxu0 0.0
  %2009 = vmatpush1.msra.mxu0 0.0
  %2010 = vmatprep.subr.mxu0 0.0
  %2011 = vmatpush1.msra.mxu0 0.0
  %2012 = vmatprep.subr.mxu0 0.0
  %2013 = vmatpush1.msra.mxu0 0.0
  %2014 = vmatprep.subr.mxu0 0.0
  %2015 = vmatpush1.msra.mxu0 0.0
  %2016 = vmatprep.subr.mxu0 0.0
  %2017 = vmatpush1.msra.mxu0 0.0
  %2018 = vmatprep.subr.mxu0 0.0
  %2019 = vmatpush1.msra.mxu0 0.0
  %2020 = vmatprep.subr.mxu0 0.0
  %2021 = vmatpush1.msra.mxu0 0.0
  %2022 = vmatprep.subr.mxu0 0.0
  %2023 = vmatpush1.msra.mxu0 0.0
  %2024 = vmatprep.subr.mxu0 0.0
  %2025 = vmatpush1.msra.mxu0 0.0
  %2026 = vmatprep.subr.mxu0 0.0
  %2027 = vmatpush1.msra.mxu0 0.0
  %2028 = vmatprep.subr.mxu0 0.0
  %2029 = vmatpush1.msra.mxu0 0.0
  %2030 = vmatprep.subr.mxu0 0.0
  %2031 = vmatpush1.msra.mxu0 0.0
  %2032 = vmatprep.subr.mxu0 0.0
  %2033 = vmatpush1.msra.mxu0 0.0
  %2034 = vmatprep.subr.mxu0 0.0
  %2035 = vmatpush1.msra.mxu0 0.0
  %2036 = vmatprep.subr.mxu0 0.0
  %2037 = vmatpush1.msra.mxu0 0.0
  %2038 = vmatprep.mubr.f32.mxu0 0.0
  %2039 = vmatmul.mubr.f32.gmra.mrb[0].mxu0 %v1969
  %v2040 = vpop.f32.mrb[0].mxu0
  %v2041 = vadd.f32 %v1960, %v2040
  %v2042 = vpop.f32.mrb[0].mxu0
  %2043 = vmatprep.mubr.f32.mxu0 0.0
  %2044 = vmatmul.mubr.f32.gmra.mrb[0].mxu0 %v1972
  %v2045 = vpop.f32.mrb[0].mxu0
  %v2046 = vadd.f32 %v1965, %v2045
  %v2047 = vpop.f32.mrb[0].mxu0
  %2048 = vdwg.mxu0
  %v2049 = vld [vmem:[#allocation2 + $0x20] sm:$0xff]
  %v2050 = vld [vmem:[#allocation2 + $0x28] sm:$0xff]
  %v2051 = vld [vmem:[%s1244] sm:$0xff]
  %v2052 = vld [vmem:[%s1244 + $0x8] sm:$0xff]
  %v2053 = vld [vmem:[%s1244 + $0x10] sm:$0xff]
  %v2054 = vld [vmem:[%s1244 + $0x18] sm:$0xff]
  %v2056 = vsel %vm1048, %v2049, 0
  %v2059 = vsel %vm1048, %v2050, 0
  %2061 = vmatprep.subr.mxu0 0.0
  %2062 = vmatpush1.msra.mxu0 %v2051
  %2063 = vmatprep.subr.mxu0 0.0
  %2064 = vmatpush1.msra.mxu0 %v2052
  %2065 = vmatprep.subr.mxu0 0.0
  %2066 = vmatpush1.msra.mxu0 %v2053
  %2067 = vmatprep.subr.mxu0 0.0
  %2068 = vmatpush1.msra.mxu0 %v2054
  %2069 = vmatprep.subr.mxu0 0.0
  %2070 = vmatpush1.msra.mxu0 0.0
  %2071 = vmatprep.subr.mxu0 0.0
  %2072 = vmatpush1.msra.mxu0 0.0
  %2073 = vmatprep.subr.mxu0 0.0
  %2074 = vmatpush1.msra.mxu0 0.0
  %2075 = vmatprep.subr.mxu0 0.0
  %2076 = vmatpush1.msra.mxu0 0.0
  %2077 = vmatprep.subr.mxu0 0.0
  %2078 = vmatpush1.msra.mxu0 0.0
  %2079 = vmatprep.subr.mxu0 0.0
  %2080 = vmatpush1.msra.mxu0 0.0
  %2081 = vmatprep.subr.mxu0 0.0
  %2082 = vmatpush1.msra.mxu0 0.0
  %2083 = vmatprep.subr.mxu0 0.0
  %2084 = vmatpush1.msra.mxu0 0.0
  %2085 = vmatprep.subr.mxu0 0.0
  %2086 = vmatpush1.msra.mxu0 0.0
  %2087 = vmatprep.subr.mxu0 0.0
  %2088 = vmatpush1.msra.mxu0 0.0
  %2089 = vmatprep.subr.mxu0 0.0
  %2090 = vmatpush1.msra.mxu0 0.0
  %2091 = vmatprep.subr.mxu0 0.0
  %2092 = vmatpush1.msra.mxu0 0.0
  %2093 = vmatprep.subr.mxu0 0.0
  %2094 = vmatpush1.msra.mxu0 0.0
  %2095 = vmatprep.subr.mxu0 0.0
  %2096 = vmatpush1.msra.mxu0 0.0
  %2097 = vmatprep.subr.mxu0 0.0
  %2098 = vmatpush1.msra.mxu0 0.0
  %2099 = vmatprep.subr.mxu0 0.0
  %2100 = vmatpush1.msra.mxu0 0.0
  %2101 = vmatprep.subr.mxu0 0.0
  %2102 = vmatpush1.msra.mxu0 0.0
  %2103 = vmatprep.subr.mxu0 0.0
  %2104 = vmatpush1.msra.mxu0 0.0
  %2105 = vmatprep.subr.mxu0 0.0
  %2106 = vmatpush1.msra.mxu0 0.0
  %2107 = vmatprep.subr.mxu0 0.0
  %2108 = vmatpush1.msra.mxu0 0.0
  %2109 = vmatprep.subr.mxu0 0.0
  %2110 = vmatpush1.msra.mxu0 0.0
  %2111 = vmatprep.subr.mxu0 0.0
  %2112 = vmatpush1.msra.mxu0 0.0
  %2113 = vmatprep.subr.mxu0 0.0
  %2114 = vmatpush1.msra.mxu0 0.0
  %2115 = vmatprep.subr.mxu0 0.0
  %2116 = vmatpush1.msra.mxu0 0.0
  %2117 = vmatprep.subr.mxu0 0.0
  %2118 = vmatpush1.msra.mxu0 0.0
  %2119 = vmatprep.subr.mxu0 0.0
  %2120 = vmatpush1.msra.mxu0 0.0
  %2121 = vmatprep.subr.mxu0 0.0
  %2122 = vmatpush1.msra.mxu0 0.0
  %2123 = vmatprep.subr.mxu0 0.0
  %2124 = vmatpush1.msra.mxu0 0.0
  %2125 = vmatprep.mubr.f32.mxu0 0.0
  %2126 = vmatmul.mubr.f32.gmra.mrb[0].mxu0 %v2056
  %v2127 = vpop.f32.mrb[0].mxu0
  %v2128 = vadd.f32 0.0, %v2127
  %v2129 = vpop.f32.mrb[0].mxu0
  %2130 = vmatprep.mubr.f32.mxu0 0.0
  %2131 = vmatmul.mubr.f32.gmra.mrb[0].mxu0 %v2059
  %v2132 = vpop.f32.mrb[0].mxu0
  %v2133 = vadd.f32 0.0, %v2132
  %v2134 = vpop.f32.mrb[0].mxu0
  %2135 = vdwg.mxu0
  %v2136 = vadd.f32 %v2041, %v2128
  %v2137 = vadd.f32 %v2046, %v2133
  %v2138 = vld [vmem:[#allocation2 + $0x30] sm:$0xff]
  %v2139 = vld [vmem:[#allocation2 + $0x38] sm:$0xff]
  %v2140 = vld [vmem:[%s1334] sm:$0xff]
  %v2141 = vld [vmem:[%s1334 + $0x8] sm:$0xff]
  %v2142 = vld [vmem:[%s1334 + $0x10] sm:$0xff]
  %v2143 = vld [vmem:[%s1334 + $0x18] sm:$0xff]
  %v2145 = vsel %vm1048, %v2138, 0
  %v2148 = vsel %vm1048, %v2139, 0
  %2150 = vmatprep.subr.mxu0 0.0
  %2151 = vmatpush1.msra.mxu0 %v2140
  %2152 = vmatprep.subr.mxu0 0.0
  %2153 = vmatpush1.msra.mxu0 %v2141
  %2154 = vmatprep.subr.mxu0 0.0
  %2155 = vmatpush1.msra.mxu0 %v2142
  %2156 = vmatprep.subr.mxu0 0.0
  %2157 = vmatpush1.msra.mxu0 %v2143
  %2158 = vmatprep.subr.mxu0 0.0
  %2159 = vmatpush1.msra.mxu0 0.0
  %2160 = vmatprep.subr.mxu0 0.0
  %2161 = vmatpush1.msra.mxu0 0.0
  %2162 = vmatprep.subr.mxu0 0.0
  %2163 = vmatpush1.msra.mxu0 0.0
  %2164 = vmatprep.subr.mxu0 0.0
  %2165 = vmatpush1.msra.mxu0 0.0
  %2166 = vmatprep.subr.mxu0 0.0
  %2167 = vmatpush1.msra.mxu0 0.0
  %2168 = vmatprep.subr.mxu0 0.0
  %2169 = vmatpush1.msra.mxu0 0.0
  %2170 = vmatprep.subr.mxu0 0.0
  %2171 = vmatpush1.msra.mxu0 0.0
  %2172 = vmatprep.subr.mxu0 0.0
  %2173 = vmatpush1.msra.mxu0 0.0
  %2174 = vmatprep.subr.mxu0 0.0
  %2175 = vmatpush1.msra.mxu0 0.0
  %2176 = vmatprep.subr.mxu0 0.0
  %2177 = vmatpush1.msra.mxu0 0.0
  %2178 = vmatprep.subr.mxu0 0.0
  %2179 = vmatpush1.msra.mxu0 0.0
  %2180 = vmatprep.subr.mxu0 0.0
  %2181 = vmatpush1.msra.mxu0 0.0
  %2182 = vmatprep.subr.mxu0 0.0
  %2183 = vmatpush1.msra.mxu0 0.0
  %2184 = vmatprep.subr.mxu0 0.0
  %2185 = vmatpush1.msra.mxu0 0.0
  %2186 = vmatprep.subr.mxu0 0.0
  %2187 = vmatpush1.msra.mxu0 0.0
  %2188 = vmatprep.subr.mxu0 0.0
  %2189 = vmatpush1.msra.mxu0 0.0
  %2190 = vmatprep.subr.mxu0 0.0
  %2191 = vmatpush1.msra.mxu0 0.0
  %2192 = vmatprep.subr.mxu0 0.0
  %2193 = vmatpush1.msra.mxu0 0.0
  %2194 = vmatprep.subr.mxu0 0.0
  %2195 = vmatpush1.msra.mxu0 0.0
  %2196 = vmatprep.subr.mxu0 0.0
  %2197 = vmatpush1.msra.mxu0 0.0
  %2198 = vmatprep.subr.mxu0 0.0
  %2199 = vmatpush1.msra.mxu0 0.0
  %2200 = vmatprep.subr.mxu0 0.0
  %2201 = vmatpush1.msra.mxu0 0.0
  %2202 = vmatprep.subr.mxu0 0.0
  %2203 = vmatpush1.msra.mxu0 0.0
  %2204 = vmatprep.subr.mxu0 0.0
  %2205 = vmatpush1.msra.mxu0 0.0
  %2206 = vmatprep.subr.mxu0 0.0
  %2207 = vmatpush1.msra.mxu0 0.0
  %2208 = vmatprep.subr.mxu0 0.0
  %2209 = vmatpush1.msra.mxu0 0.0
  %2210 = vmatprep.subr.mxu0 0.0
  %2211 = vmatpush1.msra.mxu0 0.0
  %2212 = vmatprep.subr.mxu0 0.0
  %2213 = vmatpush1.msra.mxu0 0.0
  %2214 = vmatprep.mubr.f32.mxu0 0.0
  %2215 = vmatmul.mubr.f32.gmra.mrb[0].mxu0 %v2145
  %v2216 = vpop.f32.mrb[0].mxu0
  %v2217 = vadd.f32 0.0, %v2216
  %v2218 = vpop.f32.mrb[0].mxu0
  %2219 = vmatprep.mubr.f32.mxu0 0.0
  %2220 = vmatmul.mubr.f32.gmra.mrb[0].mxu0 %v2148
  %v2221 = vpop.f32.mrb[0].mxu0
  %v2222 = vadd.f32 0.0, %v2221
  %v2223 = vpop.f32.mrb[0].mxu0
  %2224 = vdwg.mxu0
  %v2225 = vadd.f32 %v2136, %v2217
  %v2226 = vadd.f32 %v2137, %v2222
  %v2227 = vld [vmem:[#allocation2 + $0x34] sm:$0xff]
  %v2228 = vld [vmem:[#allocation2 + $0x3c] sm:$0xff]
  %v2229 = vld [vmem:[%s1424] sm:$0xff]
  %v2230 = vld [vmem:[%s1424 + $0x8] sm:$0xff]
  %v2231 = vld [vmem:[%s1424 + $0x10] sm:$0xff]
  %v2232 = vld [vmem:[%s1424 + $0x18] sm:$0xff]
  %v2234 = vsel %vm1048, %v2227, 0
  %v2237 = vsel %vm1048, %v2228, 0
  %2239 = vmatprep.subr.mxu0 0.0
  %2240 = vmatpush1.msra.mxu0 %v2229
  %2241 = vmatprep.subr.mxu0 0.0
  %2242 = vmatpush1.msra.mxu0 %v2230
  %2243 = vmatprep.subr.mxu0 0.0
  %2244 = vmatpush1.msra.mxu0 %v2231
  %2245 = vmatprep.subr.mxu0 0.0
  %2246 = vmatpush1.msra.mxu0 %v2232
  %2247 = vmatprep.subr.mxu0 0.0
  %2248 = vmatpush1.msra.mxu0 0.0
  %2249 = vmatprep.subr.mxu0 0.0
  %2250 = vmatpush1.msra.mxu0 0.0
  %2251 = vmatprep.subr.mxu0 0.0
  %2252 = vmatpush1.msra.mxu0 0.0
  %2253 = vmatprep.subr.mxu0 0.0
  %2254 = vmatpush1.msra.mxu0 0.0
  %2255 = vmatprep.subr.mxu0 0.0
  %2256 = vmatpush1.msra.mxu0 0.0
  %2257 = vmatprep.subr.mxu0 0.0
  %2258 = vmatpush1.msra.mxu0 0.0
  %2259 = vmatprep.subr.mxu0 0.0
  %2260 = vmatpush1.msra.mxu0 0.0
  %2261 = vmatprep.subr.mxu0 0.0
  %2262 = vmatpush1.msra.mxu0 0.0
  %2263 = vmatprep.subr.mxu0 0.0
  %2264 = vmatpush1.msra.mxu0 0.0
  %2265 = vmatprep.subr.mxu0 0.0
  %2266 = vmatpush1.msra.mxu0 0.0
  %2267 = vmatprep.subr.mxu0 0.0
  %2268 = vmatpush1.msra.mxu0 0.0
  %2269 = vmatprep.subr.mxu0 0.0
  %2270 = vmatpush1.msra.mxu0 0.0
  %2271 = vmatprep.subr.mxu0 0.0
  %2272 = vmatpush1.msra.mxu0 0.0
  %2273 = vmatprep.subr.mxu0 0.0
  %2274 = vmatpush1.msra.mxu0 0.0
  %2275 = vmatprep.subr.mxu0 0.0
  %2276 = vmatpush1.msra.mxu0 0.0
  %2277 = vmatprep.subr.mxu0 0.0
  %2278 = vmatpush1.msra.mxu0 0.0
  %2279 = vmatprep.subr.mxu0 0.0
  %2280 = vmatpush1.msra.mxu0 0.0
  %2281 = vmatprep.subr.mxu0 0.0
  %2282 = vmatpush1.msra.mxu0 0.0
  %2283 = vmatprep.subr.mxu0 0.0
  %2284 = vmatpush1.msra.mxu0 0.0
  %2285 = vmatprep.subr.mxu0 0.0
  %2286 = vmatpush1.msra.mxu0 0.0
  %2287 = vmatprep.subr.mxu0 0.0
  %2288 = vmatpush1.msra.mxu0 0.0
  %2289 = vmatprep.subr.mxu0 0.0
  %2290 = vmatpush1.msra.mxu0 0.0
  %2291 = vmatprep.subr.mxu0 0.0
  %2292 = vmatpush1.msra.mxu0 0.0
  %2293 = vmatprep.subr.mxu0 0.0
  %2294 = vmatpush1.msra.mxu0 0.0
  %2295 = vmatprep.subr.mxu0 0.0
  %2296 = vmatpush1.msra.mxu0 0.0
  %2297 = vmatprep.subr.mxu0 0.0
  %2298 = vmatpush1.msra.mxu0 0.0
  %2299 = vmatprep.subr.mxu0 0.0
  %2300 = vmatpush1.msra.mxu0 0.0
  %2301 = vmatprep.subr.mxu0 0.0
  %2302 = vmatpush1.msra.mxu0 0.0
  %2303 = vmatprep.mubr.f32.mxu0 0.0
  %2304 = vmatmul.mubr.f32.gmra.mrb[0].mxu0 %v2234
  %v2305 = vpop.f32.mrb[0].mxu0
  %v2306 = vadd.f32 0.0, %v2305
  %v2307 = vpop.f32.mrb[0].mxu0
  %2308 = vmatprep.mubr.f32.mxu0 0.0
  %2309 = vmatmul.mubr.f32.gmra.mrb[0].mxu0 %v2237
  %v2310 = vpop.f32.mrb[0].mxu0
  %v2311 = vadd.f32 0.0, %v2310
  %v2312 = vpop.f32.mrb[0].mxu0
  %2313 = vdwg.mxu0
  %v2314 = vadd.f32 %v2225, %v2306
  %v2315 = vadd.f32 %v2226, %v2311
  %v2316 = vld [vmem:[#allocation2 + $0x38] sm:$0xff]
  %v2317 = vld [vmem:[#allocation2 + $0x40] sm:$0xff]
  %v2318 = vld [vmem:[%s1514] sm:$0xff]
  %v2319 = vld [vmem:[%s1514 + $0x8] sm:$0xff]
  %v2320 = vld [vmem:[%s1514 + $0x10] sm:$0xff]
  %v2321 = vld [vmem:[%s1514 + $0x18] sm:$0xff]
  %v2323 = vsel %vm1048, %v2316, 0
  %v2326 = vsel %vm1048, %v2317, 0
  %2328 = vmatprep.subr.mxu0 0.0
  %2329 = vmatpush1.msra.mxu0 %v2318
  %2330 = vmatprep.subr.mxu0 0.0
  %2331 = vmatpush1.msra.mxu0 %v2319
  %2332 = vmatprep.subr.mxu0 0.0
  %2333 = vmatpush1.msra.mxu0 %v2320
  %2334 = vmatprep.subr.mxu0 0.0
  %2335 = vmatpush1.msra.mxu0 %v2321
  %2336 = vmatprep.subr.mxu0 0.0
  %2337 = vmatpush1.msra.mxu0 0.0
  %2338 = vmatprep.subr.mxu0 0.0
  %2339 = vmatpush1.msra.mxu0 0.0
  %2340 = vmatprep.subr.mxu0 0.0
  %2341 = vmatpush1.msra.mxu0 0.0
  %2342 = vmatprep.subr.mxu0 0.0
  %2343 = vmatpush1.msra.mxu0 0.0
  %2344 = vmatprep.subr.mxu0 0.0
  %2345 = vmatpush1.msra.mxu0 0.0
  %2346 = vmatprep.subr.mxu0 0.0
  %2347 = vmatpush1.msra.mxu0 0.0
  %2348 = vmatprep.subr.mxu0 0.0
  %2349 = vmatpush1.msra.mxu0 0.0
  %2350 = vmatprep.subr.mxu0 0.0
  %2351 = vmatpush1.msra.mxu0 0.0
  %2352 = vmatprep.subr.mxu0 0.0
  %2353 = vmatpush1.msra.mxu0 0.0
  %2354 = vmatprep.subr.mxu0 0.0
  %2355 = vmatpush1.msra.mxu0 0.0
  %2356 = vmatprep.subr.mxu0 0.0
  %2357 = vmatpush1.msra.mxu0 0.0
  %2358 = vmatprep.subr.mxu0 0.0
  %2359 = vmatpush1.msra.mxu0 0.0
  %2360 = vmatprep.subr.mxu0 0.0
  %2361 = vmatpush1.msra.mxu0 0.0
  %2362 = vmatprep.subr.mxu0 0.0
  %2363 = vmatpush1.msra.mxu0 0.0
  %2364 = vmatprep.subr.mxu0 0.0
  %2365 = vmatpush1.msra.mxu0 0.0
  %2366 = vmatprep.subr.mxu0 0.0
  %2367 = vmatpush1.msra.mxu0 0.0
  %2368 = vmatprep.subr.mxu0 0.0
  %2369 = vmatpush1.msra.mxu0 0.0
  %2370 = vmatprep.subr.mxu0 0.0
  %2371 = vmatpush1.msra.mxu0 0.0
  %2372 = vmatprep.subr.mxu0 0.0
  %2373 = vmatpush1.msra.mxu0 0.0
  %2374 = vmatprep.subr.mxu0 0.0
  %2375 = vmatpush1.msra.mxu0 0.0
  %2376 = vmatprep.subr.mxu0 0.0
  %2377 = vmatpush1.msra.mxu0 0.0
  %2378 = vmatprep.subr.mxu0 0.0
  %2379 = vmatpush1.msra.mxu0 0.0
  %2380 = vmatprep.subr.mxu0 0.0
  %2381 = vmatpush1.msra.mxu0 0.0
  %2382 = vmatprep.subr.mxu0 0.0
  %2383 = vmatpush1.msra.mxu0 0.0
  %2384 = vmatprep.subr.mxu0 0.0
  %2385 = vmatpush1.msra.mxu0 0.0
  %2386 = vmatprep.subr.mxu0 0.0
  %2387 = vmatpush1.msra.mxu0 0.0
  %2388 = vmatprep.subr.mxu0 0.0
  %2389 = vmatpush1.msra.mxu0 0.0
  %2390 = vmatprep.subr.mxu0 0.0
  %2391 = vmatpush1.msra.mxu0 0.0
  %2392 = vmatprep.mubr.f32.mxu0 0.0
  %2393 = vmatmul.mubr.f32.gmra.mrb[0].mxu0 %v2323
  %v2394 = vpop.f32.mrb[0].mxu0
  %v2395 = vadd.f32 0.0, %v2394
  %v2396 = vpop.f32.mrb[0].mxu0
  %2397 = vmatprep.mubr.f32.mxu0 0.0
  %2398 = vmatmul.mubr.f32.gmra.mrb[0].mxu0 %v2326
  %v2399 = vpop.f32.mrb[0].mxu0
  %v2400 = vadd.f32 0.0, %v2399
  %v2401 = vpop.f32.mrb[0].mxu0
  %2402 = vdwg.mxu0
  %v2403 = vadd.f32 %v2314, %v2395
  %v2404 = vadd.f32 %v2315, %v2400
  %v2405 = vld [vmem:[#allocation2 + $0x48] sm:$0xff]
  %v2406 = vld [vmem:[#allocation2 + $0x50] sm:$0xff]
  %v2407 = vld [vmem:[%s1604] sm:$0xff]
  %v2408 = vld [vmem:[%s1604 + $0x8] sm:$0xff]
  %v2409 = vld [vmem:[%s1604 + $0x10] sm:$0xff]
  %v2410 = vld [vmem:[%s1604 + $0x18] sm:$0xff]
  %v2412 = vsel %vm1048, %v2405, 0
  %v2415 = vsel %vm1048, %v2406, 0
  %2417 = vmatprep.subr.mxu0 0.0
  %2418 = vmatpush1.msra.mxu0 %v2407
  %2419 = vmatprep.subr.mxu0 0.0
  %2420 = vmatpush1.msra.mxu0 %v2408
  %2421 = vmatprep.subr.mxu0 0.0
  %2422 = vmatpush1.msra.mxu0 %v2409
  %2423 = vmatprep.subr.mxu0 0.0
  %2424 = vmatpush1.msra.mxu0 %v2410
  %2425 = vmatprep.subr.mxu0 0.0
  %2426 = vmatpush1.msra.mxu0 0.0
  %2427 = vmatprep.subr.mxu0 0.0
  %2428 = vmatpush1.msra.mxu0 0.0
  %2429 = vmatprep.subr.mxu0 0.0
  %2430 = vmatpush1.msra.mxu0 0.0
  %2431 = vmatprep.subr.mxu0 0.0
  %2432 = vmatpush1.msra.mxu0 0.0
  %2433 = vmatprep.subr.mxu0 0.0
  %2434 = vmatpush1.msra.mxu0 0.0
  %2435 = vmatprep.subr.mxu0 0.0
  %2436 = vmatpush1.msra.mxu0 0.0
  %2437 = vmatprep.subr.mxu0 0.0
  %2438 = vmatpush1.msra.mxu0 0.0
  %2439 = vmatprep.subr.mxu0 0.0
  %2440 = vmatpush1.msra.mxu0 0.0
  %2441 = vmatprep.subr.mxu0 0.0
  %2442 = vmatpush1.msra.mxu0 0.0
  %2443 = vmatprep.subr.mxu0 0.0
  %2444 = vmatpush1.msra.mxu0 0.0
  %2445 = vmatprep.subr.mxu0 0.0
  %2446 = vmatpush1.msra.mxu0 0.0
  %2447 = vmatprep.subr.mxu0 0.0
  %2448 = vmatpush1.msra.mxu0 0.0
  %2449 = vmatprep.subr.mxu0 0.0
  %2450 = vmatpush1.msra.mxu0 0.0
  %2451 = vmatprep.subr.mxu0 0.0
  %2452 = vmatpush1.msra.mxu0 0.0
  %2453 = vmatprep.subr.mxu0 0.0
  %2454 = vmatpush1.msra.mxu0 0.0
  %2455 = vmatprep.subr.mxu0 0.0
  %2456 = vmatpush1.msra.mxu0 0.0
  %2457 = vmatprep.subr.mxu0 0.0
  %2458 = vmatpush1.msra.mxu0 0.0
  %2459 = vmatprep.subr.mxu0 0.0
  %2460 = vmatpush1.msra.mxu0 0.0
  %2461 = vmatprep.subr.mxu0 0.0
  %2462 = vmatpush1.msra.mxu0 0.0
  %2463 = vmatprep.subr.mxu0 0.0
  %2464 = vmatpush1.msra.mxu0 0.0
  %2465 = vmatprep.subr.mxu0 0.0
  %2466 = vmatpush1.msra.mxu0 0.0
  %2467 = vmatprep.subr.mxu0 0.0
  %2468 = vmatpush1.msra.mxu0 0.0
  %2469 = vmatprep.subr.mxu0 0.0
  %2470 = vmatpush1.msra.mxu0 0.0
  %2471 = vmatprep.subr.mxu0 0.0
  %2472 = vmatpush1.msra.mxu0 0.0
  %2473 = vmatprep.subr.mxu0 0.0
  %2474 = vmatpush1.msra.mxu0 0.0
  %2475 = vmatprep.subr.mxu0 0.0
  %2476 = vmatpush1.msra.mxu0 0.0
  %2477 = vmatprep.subr.mxu0 0.0
  %2478 = vmatpush1.msra.mxu0 0.0
  %2479 = vmatprep.subr.mxu0 0.0
  %2480 = vmatpush1.msra.mxu0 0.0
  %2481 = vmatprep.mubr.f32.mxu0 0.0
  %2482 = vmatmul.mubr.f32.gmra.mrb[0].mxu0 %v2412
  %v2483 = vpop.f32.mrb[0].mxu0
  %v2484 = vadd.f32 0.0, %v2483
  %v2485 = vpop.f32.mrb[0].mxu0
  %2486 = vmatprep.mubr.f32.mxu0 0.0
  %2487 = vmatmul.mubr.f32.gmra.mrb[0].mxu0 %v2415
  %v2488 = vpop.f32.mrb[0].mxu0
  %v2489 = vadd.f32 0.0, %v2488
  %v2490 = vpop.f32.mrb[0].mxu0
  %2491 = vdwg.mxu0
  %v2492 = vadd.f32 %v2403, %v2484
  %v2493 = vadd.f32 %v2404, %v2489
  %v2494 = vld [vmem:[#allocation2 + $0x4c] sm:$0xff]
  %v2495 = vld [vmem:[#allocation2 + $0x54] sm:$0xff]
  %v2496 = vld [vmem:[%s1694] sm:$0xff]
  %v2497 = vld [vmem:[%s1694 + $0x8] sm:$0xff]
  %v2498 = vld [vmem:[%s1694 + $0x10] sm:$0xff]
  %v2499 = vld [vmem:[%s1694 + $0x18] sm:$0xff]
  %v2501 = vsel %vm1048, %v2494, 0
  %v2504 = vsel %vm1048, %v2495, 0
  %2506 = vmatprep.subr.mxu0 0.0
  %2507 = vmatpush1.msra.mxu0 %v2496
  %2508 = vmatprep.subr.mxu0 0.0
  %2509 = vmatpush1.msra.mxu0 %v2497
  %2510 = vmatprep.subr.mxu0 0.0
  %2511 = vmatpush1.msra.mxu0 %v2498
  %2512 = vmatprep.subr.mxu0 0.0
  %2513 = vmatpush1.msra.mxu0 %v2499
  %2514 = vmatprep.subr.mxu0 0.0
  %2515 = vmatpush1.msra.mxu0 0.0
  %2516 = vmatprep.subr.mxu0 0.0
  %2517 = vmatpush1.msra.mxu0 0.0
  %2518 = vmatprep.subr.mxu0 0.0
  %2519 = vmatpush1.msra.mxu0 0.0
  %2520 = vmatprep.subr.mxu0 0.0
  %2521 = vmatpush1.msra.mxu0 0.0
  %2522 = vmatprep.subr.mxu0 0.0
  %2523 = vmatpush1.msra.mxu0 0.0
  %2524 = vmatprep.subr.mxu0 0.0
  %2525 = vmatpush1.msra.mxu0 0.0
  %2526 = vmatprep.subr.mxu0 0.0
  %2527 = vmatpush1.msra.mxu0 0.0
  %2528 = vmatprep.subr.mxu0 0.0
  %2529 = vmatpush1.msra.mxu0 0.0
  %2530 = vmatprep.subr.mxu0 0.0
  %2531 = vmatpush1.msra.mxu0 0.0
  %2532 = vmatprep.subr.mxu0 0.0
  %2533 = vmatpush1.msra.mxu0 0.0
  %2534 = vmatprep.subr.mxu0 0.0
  %2535 = vmatpush1.msra.mxu0 0.0
  %2536 = vmatprep.subr.mxu0 0.0
  %2537 = vmatpush1.msra.mxu0 0.0
  %2538 = vmatprep.subr.mxu0 0.0
  %2539 = vmatpush1.msra.mxu0 0.0
  %2540 = vmatprep.subr.mxu0 0.0
  %2541 = vmatpush1.msra.mxu0 0.0
  %2542 = vmatprep.subr.mxu0 0.0
  %2543 = vmatpush1.msra.mxu0 0.0
  %2544 = vmatprep.subr.mxu0 0.0
  %2545 = vmatpush1.msra.mxu0 0.0
  %2546 = vmatprep.subr.mxu0 0.0
  %2547 = vmatpush1.msra.mxu0 0.0
  %2548 = vmatprep.subr.mxu0 0.0
  %2549 = vmatpush1.msra.mxu0 0.0
  %2550 = vmatprep.subr.mxu0 0.0
  %2551 = vmatpush1.msra.mxu0 0.0
  %2552 = vmatprep.subr.mxu0 0.0
  %2553 = vmatpush1.msra.mxu0 0.0
  %2554 = vmatprep.subr.mxu0 0.0
  %2555 = vmatpush1.msra.mxu0 0.0
  %2556 = vmatprep.subr.mxu0 0.0
  %2557 = vmatpush1.msra.mxu0 0.0
  %2558 = vmatprep.subr.mxu0 0.0
  %2559 = vmatpush1.msra.mxu0 0.0
  %2560 = vmatprep.subr.mxu0 0.0
  %2561 = vmatpush1.msra.mxu0 0.0
  %2562 = vmatprep.subr.mxu0 0.0
  %2563 = vmatpush1.msra.mxu0 0.0
  %2564 = vmatprep.subr.mxu0 0.0
  %2565 = vmatpush1.msra.mxu0 0.0
  %2566 = vmatprep.subr.mxu0 0.0
  %2567 = vmatpush1.msra.mxu0 0.0
  %2568 = vmatprep.subr.mxu0 0.0
  %2569 = vmatpush1.msra.mxu0 0.0
  %2570 = vmatprep.mubr.f32.mxu0 0.0
  %2571 = vmatmul.mubr.f32.gmra.mrb[0].mxu0 %v2501
  %v2572 = vpop.f32.mrb[0].mxu0
  %v2573 = vadd.f32 0.0, %v2572
  %v2574 = vpop.f32.mrb[0].mxu0
  %2575 = vmatprep.mubr.f32.mxu0 0.0
  %2576 = vmatmul.mubr.f32.gmra.mrb[0].mxu0 %v2504
  %v2577 = vpop.f32.mrb[0].mxu0
  %v2578 = vadd.f32 0.0, %v2577
  %v2579 = vpop.f32.mrb[0].mxu0
  %2580 = vdwg.mxu0
  %v2581 = vadd.f32 %v2492, %v2573
  %v2582 = vadd.f32 %v2493, %v2578
  %v2583 = vld [vmem:[#allocation2 + $0x50] sm:$0xff]
  %v2584 = vld [vmem:[#allocation2 + $0x58] sm:$0xff]
  %v2585 = vld [vmem:[%s1784] sm:$0xff]
  %v2586 = vld [vmem:[%s1784 + $0x8] sm:$0xff]
  %v2587 = vld [vmem:[%s1784 + $0x10] sm:$0xff]
  %v2588 = vld [vmem:[%s1784 + $0x18] sm:$0xff]
  %v2590 = vsel %vm1048, %v2583, 0
  %v2593 = vsel %vm1048, %v2584, 0
  %2595 = vmatprep.subr.mxu0 0.0
  %2596 = vmatpush1.msra.mxu0 %v2585
  %2597 = vmatprep.subr.mxu0 0.0
  %2598 = vmatpush1.msra.mxu0 %v2586
  %2599 = vmatprep.subr.mxu0 0.0
  %2600 = vmatpush1.msra.mxu0 %v2587
  %2601 = vmatprep.subr.mxu0 0.0
  %2602 = vmatpush1.msra.mxu0 %v2588
  %2603 = vmatprep.subr.mxu0 0.0
  %2604 = vmatpush1.msra.mxu0 0.0
  %2605 = vmatprep.subr.mxu0 0.0
  %2606 = vmatpush1.msra.mxu0 0.0
  %2607 = vmatprep.subr.mxu0 0.0
  %2608 = vmatpush1.msra.mxu0 0.0
  %2609 = vmatprep.subr.mxu0 0.0
  %2610 = vmatpush1.msra.mxu0 0.0
  %2611 = vmatprep.subr.mxu0 0.0
  %2612 = vmatpush1.msra.mxu0 0.0
  %2613 = vmatprep.subr.mxu0 0.0
  %2614 = vmatpush1.msra.mxu0 0.0
  %2615 = vmatprep.subr.mxu0 0.0
  %2616 = vmatpush1.msra.mxu0 0.0
  %2617 = vmatprep.subr.mxu0 0.0
  %2618 = vmatpush1.msra.mxu0 0.0
  %2619 = vmatprep.subr.mxu0 0.0
  %2620 = vmatpush1.msra.mxu0 0.0
  %2621 = vmatprep.subr.mxu0 0.0
  %2622 = vmatpush1.msra.mxu0 0.0
  %2623 = vmatprep.subr.mxu0 0.0
  %2624 = vmatpush1.msra.mxu0 0.0
  %2625 = vmatprep.subr.mxu0 0.0
  %2626 = vmatpush1.msra.mxu0 0.0
  %2627 = vmatprep.subr.mxu0 0.0
  %2628 = vmatpush1.msra.mxu0 0.0
  %2629 = vmatprep.subr.mxu0 0.0
  %2630 = vmatpush1.msra.mxu0 0.0
  %2631 = vmatprep.subr.mxu0 0.0
  %2632 = vmatpush1.msra.mxu0 0.0
  %2633 = vmatprep.subr.mxu0 0.0
  %2634 = vmatpush1.msra.mxu0 0.0
  %2635 = vmatprep.subr.mxu0 0.0
  %2636 = vmatpush1.msra.mxu0 0.0
  %2637 = vmatprep.subr.mxu0 0.0
  %2638 = vmatpush1.msra.mxu0 0.0
  %2639 = vmatprep.subr.mxu0 0.0
  %2640 = vmatpush1.msra.mxu0 0.0
  %2641 = vmatprep.subr.mxu0 0.0
  %2642 = vmatpush1.msra.mxu0 0.0
  %2643 = vmatprep.subr.mxu0 0.0
  %2644 = vmatpush1.msra.mxu0 0.0
  %2645 = vmatprep.subr.mxu0 0.0
  %2646 = vmatpush1.msra.mxu0 0.0
  %2647 = vmatprep.subr.mxu0 0.0
  %2648 = vmatpush1.msra.mxu0 0.0
  %2649 = vmatprep.subr.mxu0 0.0
  %2650 = vmatpush1.msra.mxu0 0.0
  %2651 = vmatprep.subr.mxu0 0.0
  %2652 = vmatpush1.msra.mxu0 0.0
  %2653 = vmatprep.subr.mxu0 0.0
  %2654 = vmatpush1.msra.mxu0 0.0
  %2655 = vmatprep.subr.mxu0 0.0
  %2656 = vmatpush1.msra.mxu0 0.0
  %2657 = vmatprep.subr.mxu0 0.0
  %2658 = vmatpush1.msra.mxu0 0.0
  %2659 = vmatprep.mubr.f32.mxu0 0.0
  %2660 = vmatmul.mubr.f32.gmra.mrb[0].mxu0 %v2590
  %v2661 = vpop.f32.mrb[0].mxu0
  %v2662 = vadd.f32 0.0, %v2661
  %v2663 = vpop.f32.mrb[0].mxu0
  %2664 = vmatprep.mubr.f32.mxu0 0.0
  %2665 = vmatmul.mubr.f32.gmra.mrb[0].mxu0 %v2593
  %v2666 = vpop.f32.mrb[0].mxu0
  %v2667 = vadd.f32 0.0, %v2666
  %v2668 = vpop.f32.mrb[0].mxu0
  %2669 = vdwg.mxu0
  %v2670 = vadd.f32 %v2581, %v2662
  %v2671 = vadd.f32 %v2582, %v2667
  %s2672 = scalar_lea.vmem [#allocation3], 16
  %2673 = vst.msk [vmem:[%s2672] sm:$0xff] %vm1872, %v2670
  %2674 = vst.msk [vmem:[%s2672 + $0x8] sm:$0xff] %vm1872, %v2671
  %v2675 = vld [vmem:[#allocation2 + $0x30] sm:$0xff]
  %v2676 = vld [vmem:[#allocation2 + $0x38] sm:$0xff]
  %v2677 = vld [vmem:[%s3] sm:$0xff]
  %v2678 = vld [vmem:[%s3 + $0x8] sm:$0xff]
  %v2679 = vld [vmem:[%s3 + $0x10] sm:$0xff]
  %v2680 = vld [vmem:[%s3 + $0x18] sm:$0xff]
  %v2681 = vld [vmem:[#allocation2 + $0x34] sm:$0xff]
  %v2682 = vld [vmem:[#allocation2 + $0x3c] sm:$0xff]
  %v2683 = vld [vmem:[%s1075] sm:$0xff]
  %v2684 = vld [vmem:[%s1075 + $0x8] sm:$0xff]
  %v2685 = vld [vmem:[%s1075 + $0x10] sm:$0xff]
  %v2686 = vld [vmem:[%s1075 + $0x18] sm:$0xff]
  %v2688 = vsel %vm1048, %v2681, 0
  %v2691 = vsel %vm1048, %v2682, 0
  %2693 = vmatprep.subr.mxu0 0.0
  %2694 = vmatpush1.msra.mxu0 %v2683
  %2695 = vmatprep.subr.mxu0 0.0
  %2696 = vmatpush1.msra.mxu0 %v2684
  %2697 = vmatprep.subr.mxu0 0.0
  %2698 = vmatpush1.msra.mxu0 %v2685
  %2699 = vmatprep.subr.mxu0 0.0
  %2700 = vmatpush1.msra.mxu0 %v2686
  %2701 = vmatprep.subr.mxu0 0.0
  %2702 = vmatpush1.msra.mxu0 0.0
  %2703 = vmatprep.subr.mxu0 0.0
  %2704 = vmatpush1.msra.mxu0 0.0
  %2705 = vmatprep.subr.mxu0 0.0
  %2706 = vmatpush1.msra.mxu0 0.0
  %2707 = vmatprep.subr.mxu0 0.0
  %2708 = vmatpush1.msra.mxu0 0.0
  %2709 = vmatprep.subr.mxu0 0.0
  %2710 = vmatpush1.msra.mxu0 0.0
  %2711 = vmatprep.subr.mxu0 0.0
  %2712 = vmatpush1.msra.mxu0 0.0
  %2713 = vmatprep.subr.mxu0 0.0
  %2714 = vmatpush1.msra.mxu0 0.0
  %2715 = vmatprep.subr.mxu0 0.0
  %2716 = vmatpush1.msra.mxu0 0.0
  %2717 = vmatprep.subr.mxu0 0.0
  %2718 = vmatpush1.msra.mxu0 0.0
  %2719 = vmatprep.subr.mxu0 0.0
  %2720 = vmatpush1.msra.mxu0 0.0
  %2721 = vmatprep.subr.mxu0 0.0
  %2722 = vmatpush1.msra.mxu0 0.0
  %2723 = vmatprep.subr.mxu0 0.0
  %2724 = vmatpush1.msra.mxu0 0.0
  %2725 = vmatprep.subr.mxu0 0.0
  %2726 = vmatpush1.msra.mxu0 0.0
  %2727 = vmatprep.subr.mxu0 0.0
  %2728 = vmatpush1.msra.mxu0 0.0
  %2729 = vmatprep.subr.mxu0 0.0
  %2730 = vmatpush1.msra.mxu0 0.0
  %2731 = vmatprep.subr.mxu0 0.0
  %2732 = vmatpush1.msra.mxu0 0.0
  %2733 = vmatprep.subr.mxu0 0.0
  %2734 = vmatpush1.msra.mxu0 0.0
  %2735 = vmatprep.subr.mxu0 0.0
  %2736 = vmatpush1.msra.mxu0 0.0
  %2737 = vmatprep.subr.mxu0 0.0
  %2738 = vmatpush1.msra.mxu0 0.0
  %2739 = vmatprep.subr.mxu0 0.0
  %2740 = vmatpush1.msra.mxu0 0.0
  %2741 = vmatprep.subr.mxu0 0.0
  %2742 = vmatpush1.msra.mxu0 0.0
  %2743 = vmatprep.subr.mxu0 0.0
  %2744 = vmatpush1.msra.mxu0 0.0
  %2745 = vmatprep.subr.mxu0 0.0
  %2746 = vmatpush1.msra.mxu0 0.0
  %2747 = vmatprep.subr.mxu0 0.0
  %2748 = vmatpush1.msra.mxu0 0.0
  %2749 = vmatprep.subr.mxu0 0.0
  %2750 = vmatpush1.msra.mxu0 0.0
  %2751 = vmatprep.subr.mxu0 0.0
  %2752 = vmatpush1.msra.mxu0 0.0
  %2753 = vmatprep.subr.mxu0 0.0
  %2754 = vmatpush1.msra.mxu0 0.0
  %2755 = vmatprep.subr.mxu0 0.0
  %2756 = vmatpush1.msra.mxu0 0.0
  %2757 = vmatprep.mubr.f32.mxu0 0.0
  %2758 = vmatmul.mubr.f32.gmra.mrb[0].mxu0 %v2688
  %v2759 = vpop.f32.mrb[0].mxu0
  %v2760 = vadd.f32 0.0, %v2759
  %v2761 = vpop.f32.mrb[0].mxu0
  %2762 = vmatprep.mubr.f32.mxu0 0.0
  %2763 = vmatmul.mubr.f32.gmra.mrb[0].mxu0 %v2691
  %v2764 = vpop.f32.mrb[0].mxu0
  %v2765 = vadd.f32 0.0, %v2764
  %v2766 = vpop.f32.mrb[0].mxu0
  %2767 = vdwg.mxu0
  %v2769 = vsel %vm1048, %v2675, 0
  %v2772 = vsel %vm1048, %v2676, 0
  %2774 = vmatprep.subr.mxu0 0.0
  %2775 = vmatpush1.msra.mxu0 %v2677
  %2776 = vmatprep.subr.mxu0 0.0
  %2777 = vmatpush1.msra.mxu0 %v2678
  %2778 = vmatprep.subr.mxu0 0.0
  %2779 = vmatpush1.msra.mxu0 %v2679
  %2780 = vmatprep.subr.mxu0 0.0
  %2781 = vmatpush1.msra.mxu0 %v2680
  %2782 = vmatprep.subr.mxu0 0.0
  %2783 = vmatpush1.msra.mxu0 0.0
  %2784 = vmatprep.subr.mxu0 0.0
  %2785 = vmatpush1.msra.mxu0 0.0
  %2786 = vmatprep.subr.mxu0 0.0
  %2787 = vmatpush1.msra.mxu0 0.0
  %2788 = vmatprep.subr.mxu0 0.0
  %2789 = vmatpush1.msra.mxu0 0.0
  %2790 = vmatprep.subr.mxu0 0.0
  %2791 = vmatpush1.msra.mxu0 0.0
  %2792 = vmatprep.subr.mxu0 0.0
  %2793 = vmatpush1.msra.mxu0 0.0
  %2794 = vmatprep.subr.mxu0 0.0
  %2795 = vmatpush1.msra.mxu0 0.0
  %2796 = vmatprep.subr.mxu0 0.0
  %2797 = vmatpush1.msra.mxu0 0.0
  %2798 = vmatprep.subr.mxu0 0.0
  %2799 = vmatpush1.msra.mxu0 0.0
  %2800 = vmatprep.subr.mxu0 0.0
  %2801 = vmatpush1.msra.mxu0 0.0
  %2802 = vmatprep.subr.mxu0 0.0
  %2803 = vmatpush1.msra.mxu0 0.0
  %2804 = vmatprep.subr.mxu0 0.0
  %2805 = vmatpush1.msra.mxu0 0.0
  %2806 = vmatprep.subr.mxu0 0.0
  %2807 = vmatpush1.msra.mxu0 0.0
  %2808 = vmatprep.subr.mxu0 0.0
  %2809 = vmatpush1.msra.mxu0 0.0
  %2810 = vmatprep.subr.mxu0 0.0
  %2811 = vmatpush1.msra.mxu0 0.0
  %2812 = vmatprep.subr.mxu0 0.0
  %2813 = vmatpush1.msra.mxu0 0.0
  %2814 = vmatprep.subr.mxu0 0.0
  %2815 = vmatpush1.msra.mxu0 0.0
  %2816 = vmatprep.subr.mxu0 0.0
  %2817 = vmatpush1.msra.mxu0 0.0
  %2818 = vmatprep.subr.mxu0 0.0
  %2819 = vmatpush1.msra.mxu0 0.0
  %2820 = vmatprep.subr.mxu0 0.0
  %2821 = vmatpush1.msra.mxu0 0.0
  %2822 = vmatprep.subr.mxu0 0.0
  %2823 = vmatpush1.msra.mxu0 0.0
  %2824 = vmatprep.subr.mxu0 0.0
  %2825 = vmatpush1.msra.mxu0 0.0
  %2826 = vmatprep.subr.mxu0 0.0
  %2827 = vmatpush1.msra.mxu0 0.0
  %2828 = vmatprep.subr.mxu0 0.0
  %2829 = vmatpush1.msra.mxu0 0.0
  %2830 = vmatprep.subr.mxu0 0.0
  %2831 = vmatpush1.msra.mxu0 0.0
  %2832 = vmatprep.subr.mxu0 0.0
  %2833 = vmatpush1.msra.mxu0 0.0
  %2834 = vmatprep.subr.mxu0 0.0
  %2835 = vmatpush1.msra.mxu0 0.0
  %2836 = vmatprep.subr.mxu0 0.0
  %2837 = vmatpush1.msra.mxu0 0.0
  %2838 = vmatprep.mubr.f32.mxu0 0.0
  %2839 = vmatmul.mubr.f32.gmra.mrb[0].mxu0 %v2769
  %v2840 = vpop.f32.mrb[0].mxu0
  %v2841 = vadd.f32 %v2760, %v2840
  %v2842 = vpop.f32.mrb[0].mxu0
  %2843 = vmatprep.mubr.f32.mxu0 0.0
  %2844 = vmatmul.mubr.f32.gmra.mrb[0].mxu0 %v2772
  %v2845 = vpop.f32.mrb[0].mxu0
  %v2846 = vadd.f32 %v2765, %v2845
  %v2847 = vpop.f32.mrb[0].mxu0
  %2848 = vdwg.mxu0
  %v2849 = vld [vmem:[#allocation2 + $0x38] sm:$0xff]
  %v2850 = vld [vmem:[#allocation2 + $0x40] sm:$0xff]
  %v2851 = vld [vmem:[%s1244] sm:$0xff]
  %v2852 = vld [vmem:[%s1244 + $0x8] sm:$0xff]
  %v2853 = vld [vmem:[%s1244 + $0x10] sm:$0xff]
  %v2854 = vld [vmem:[%s1244 + $0x18] sm:$0xff]
  %v2856 = vsel %vm1048, %v2849, 0
  %v2859 = vsel %vm1048, %v2850, 0
  %2861 = vmatprep.subr.mxu0 0.0
  %2862 = vmatpush1.msra.mxu0 %v2851
  %2863 = vmatprep.subr.mxu0 0.0
  %2864 = vmatpush1.msra.mxu0 %v2852
  %2865 = vmatprep.subr.mxu0 0.0
  %2866 = vmatpush1.msra.mxu0 %v2853
  %2867 = vmatprep.subr.mxu0 0.0
  %2868 = vmatpush1.msra.mxu0 %v2854
  %2869 = vmatprep.subr.mxu0 0.0
  %2870 = vmatpush1.msra.mxu0 0.0
  %2871 = vmatprep.subr.mxu0 0.0
  %2872 = vmatpush1.msra.mxu0 0.0
  %2873 = vmatprep.subr.mxu0 0.0
  %2874 = vmatpush1.msra.mxu0 0.0
  %2875 = vmatprep.subr.mxu0 0.0
  %2876 = vmatpush1.msra.mxu0 0.0
  %2877 = vmatprep.subr.mxu0 0.0
  %2878 = vmatpush1.msra.mxu0 0.0
  %2879 = vmatprep.subr.mxu0 0.0
  %2880 = vmatpush1.msra.mxu0 0.0
  %2881 = vmatprep.subr.mxu0 0.0
  %2882 = vmatpush1.msra.mxu0 0.0
  %2883 = vmatprep.subr.mxu0 0.0
  %2884 = vmatpush1.msra.mxu0 0.0
  %2885 = vmatprep.subr.mxu0 0.0
  %2886 = vmatpush1.msra.mxu0 0.0
  %2887 = vmatprep.subr.mxu0 0.0
  %2888 = vmatpush1.msra.mxu0 0.0
  %2889 = vmatprep.subr.mxu0 0.0
  %2890 = vmatpush1.msra.mxu0 0.0
  %2891 = vmatprep.subr.mxu0 0.0
  %2892 = vmatpush1.msra.mxu0 0.0
  %2893 = vmatprep.subr.mxu0 0.0
  %2894 = vmatpush1.msra.mxu0 0.0
  %2895 = vmatprep.subr.mxu0 0.0
  %2896 = vmatpush1.msra.mxu0 0.0
  %2897 = vmatprep.subr.mxu0 0.0
  %2898 = vmatpush1.msra.mxu0 0.0
  %2899 = vmatprep.subr.mxu0 0.0
  %2900 = vmatpush1.msra.mxu0 0.0
  %2901 = vmatprep.subr.mxu0 0.0
  %2902 = vmatpush1.msra.mxu0 0.0
  %2903 = vmatprep.subr.mxu0 0.0
  %2904 = vmatpush1.msra.mxu0 0.0
  %2905 = vmatprep.subr.mxu0 0.0
  %2906 = vmatpush1.msra.mxu0 0.0
  %2907 = vmatprep.subr.mxu0 0.0
  %2908 = vmatpush1.msra.mxu0 0.0
  %2909 = vmatprep.subr.mxu0 0.0
  %2910 = vmatpush1.msra.mxu0 0.0
  %2911 = vmatprep.subr.mxu0 0.0
  %2912 = vmatpush1.msra.mxu0 0.0
  %2913 = vmatprep.subr.mxu0 0.0
  %2914 = vmatpush1.msra.mxu0 0.0
  %2915 = vmatprep.subr.mxu0 0.0
  %2916 = vmatpush1.msra.mxu0 0.0
  %2917 = vmatprep.subr.mxu0 0.0
  %2918 = vmatpush1.msra.mxu0 0.0
  %2919 = vmatprep.subr.mxu0 0.0
  %2920 = vmatpush1.msra.mxu0 0.0
  %2921 = vmatprep.subr.mxu0 0.0
  %2922 = vmatpush1.msra.mxu0 0.0
  %2923 = vmatprep.subr.mxu0 0.0
  %2924 = vmatpush1.msra.mxu0 0.0
  %2925 = vmatprep.mubr.f32.mxu0 0.0
  %2926 = vmatmul.mubr.f32.gmra.mrb[0].mxu0 %v2856
  %v2927 = vpop.f32.mrb[0].mxu0
  %v2928 = vadd.f32 0.0, %v2927
  %v2929 = vpop.f32.mrb[0].mxu0
  %2930 = vmatprep.mubr.f32.mxu0 0.0
  %2931 = vmatmul.mubr.f32.gmra.mrb[0].mxu0 %v2859
  %v2932 = vpop.f32.mrb[0].mxu0
  %v2933 = vadd.f32 0.0, %v2932
  %v2934 = vpop.f32.mrb[0].mxu0
  %2935 = vdwg.mxu0
  %v2936 = vadd.f32 %v2841, %v2928
  %v2937 = vadd.f32 %v2846, %v2933
  %v2938 = vld [vmem:[#allocation2 + $0x48] sm:$0xff]
  %v2939 = vld [vmem:[#allocation2 + $0x50] sm:$0xff]
  %v2940 = vld [vmem:[%s1334] sm:$0xff]
  %v2941 = vld [vmem:[%s1334 + $0x8] sm:$0xff]
  %v2942 = vld [vmem:[%s1334 + $0x10] sm:$0xff]
  %v2943 = vld [vmem:[%s1334 + $0x18] sm:$0xff]
  %v2945 = vsel %vm1048, %v2938, 0
  %v2948 = vsel %vm1048, %v2939, 0
  %2950 = vmatprep.subr.mxu0 0.0
  %2951 = vmatpush1.msra.mxu0 %v2940
  %2952 = vmatprep.subr.mxu0 0.0
  %2953 = vmatpush1.msra.mxu0 %v2941
  %2954 = vmatprep.subr.mxu0 0.0
  %2955 = vmatpush1.msra.mxu0 %v2942
  %2956 = vmatprep.subr.mxu0 0.0
  %2957 = vmatpush1.msra.mxu0 %v2943
  %2958 = vmatprep.subr.mxu0 0.0
  %2959 = vmatpush1.msra.mxu0 0.0
  %2960 = vmatprep.subr.mxu0 0.0
  %2961 = vmatpush1.msra.mxu0 0.0
  %2962 = vmatprep.subr.mxu0 0.0
  %2963 = vmatpush1.msra.mxu0 0.0
  %2964 = vmatprep.subr.mxu0 0.0
  %2965 = vmatpush1.msra.mxu0 0.0
  %2966 = vmatprep.subr.mxu0 0.0
  %2967 = vmatpush1.msra.mxu0 0.0
  %2968 = vmatprep.subr.mxu0 0.0
  %2969 = vmatpush1.msra.mxu0 0.0
  %2970 = vmatprep.subr.mxu0 0.0
  %2971 = vmatpush1.msra.mxu0 0.0
  %2972 = vmatprep.subr.mxu0 0.0
  %2973 = vmatpush1.msra.mxu0 0.0
  %2974 = vmatprep.subr.mxu0 0.0
  %2975 = vmatpush1.msra.mxu0 0.0
  %2976 = vmatprep.subr.mxu0 0.0
  %2977 = vmatpush1.msra.mxu0 0.0
  %2978 = vmatprep.subr.mxu0 0.0
  %2979 = vmatpush1.msra.mxu0 0.0
  %2980 = vmatprep.subr.mxu0 0.0
  %2981 = vmatpush1.msra.mxu0 0.0
  %2982 = vmatprep.subr.mxu0 0.0
  %2983 = vmatpush1.msra.mxu0 0.0
  %2984 = vmatprep.subr.mxu0 0.0
  %2985 = vmatpush1.msra.mxu0 0.0
  %2986 = vmatprep.subr.mxu0 0.0
  %2987 = vmatpush1.msra.mxu0 0.0
  %2988 = vmatprep.subr.mxu0 0.0
  %2989 = vmatpush1.msra.mxu0 0.0
  %2990 = vmatprep.subr.mxu0 0.0
  %2991 = vmatpush1.msra.mxu0 0.0
  %2992 = vmatprep.subr.mxu0 0.0
  %2993 = vmatpush1.msra.mxu0 0.0
  %2994 = vmatprep.subr.mxu0 0.0
  %2995 = vmatpush1.msra.mxu0 0.0
  %2996 = vmatprep.subr.mxu0 0.0
  %2997 = vmatpush1.msra.mxu0 0.0
  %2998 = vmatprep.subr.mxu0 0.0
  %2999 = vmatpush1.msra.mxu0 0.0
  %3000 = vmatprep.subr.mxu0 0.0
  %3001 = vmatpush1.msra.mxu0 0.0
  %3002 = vmatprep.subr.mxu0 0.0
  %3003 = vmatpush1.msra.mxu0 0.0
  %3004 = vmatprep.subr.mxu0 0.0
  %3005 = vmatpush1.msra.mxu0 0.0
  %3006 = vmatprep.subr.mxu0 0.0
  %3007 = vmatpush1.msra.mxu0 0.0
  %3008 = vmatprep.subr.mxu0 0.0
  %3009 = vmatpush1.msra.mxu0 0.0
  %3010 = vmatprep.subr.mxu0 0.0
  %3011 = vmatpush1.msra.mxu0 0.0
  %3012 = vmatprep.subr.mxu0 0.0
  %3013 = vmatpush1.msra.mxu0 0.0
  %3014 = vmatprep.mubr.f32.mxu0 0.0
  %3015 = vmatmul.mubr.f32.gmra.mrb[0].mxu0 %v2945
  %v3016 = vpop.f32.mrb[0].mxu0
  %v3017 = vadd.f32 0.0, %v3016
  %v3018 = vpop.f32.mrb[0].mxu0
  %3019 = vmatprep.mubr.f32.mxu0 0.0
  %3020 = vmatmul.mubr.f32.gmra.mrb[0].mxu0 %v2948
  %v3021 = vpop.f32.mrb[0].mxu0
  %v3022 = vadd.f32 0.0, %v3021
  %v3023 = vpop.f32.mrb[0].mxu0
  %3024 = vdwg.mxu0
  %v3025 = vadd.f32 %v2936, %v3017
  %v3026 = vadd.f32 %v2937, %v3022
  %v3027 = vld [vmem:[#allocation2 + $0x4c] sm:$0xff]
  %v3028 = vld [vmem:[#allocation2 + $0x54] sm:$0xff]
  %v3029 = vld [vmem:[%s1424] sm:$0xff]
  %v3030 = vld [vmem:[%s1424 + $0x8] sm:$0xff]
  %v3031 = vld [vmem:[%s1424 + $0x10] sm:$0xff]
  %v3032 = vld [vmem:[%s1424 + $0x18] sm:$0xff]
  %v3034 = vsel %vm1048, %v3027, 0
  %v3037 = vsel %vm1048, %v3028, 0
  %3039 = vmatprep.subr.mxu0 0.0
  %3040 = vmatpush1.msra.mxu0 %v3029
  %3041 = vmatprep.subr.mxu0 0.0
  %3042 = vmatpush1.msra.mxu0 %v3030
  %3043 = vmatprep.subr.mxu0 0.0
  %3044 = vmatpush1.msra.mxu0 %v3031
  %3045 = vmatprep.subr.mxu0 0.0
  %3046 = vmatpush1.msra.mxu0 %v3032
  %3047 = vmatprep.subr.mxu0 0.0
  %3048 = vmatpush1.msra.mxu0 0.0
  %3049 = vmatprep.subr.mxu0 0.0
  %3050 = vmatpush1.msra.mxu0 0.0
  %3051 = vmatprep.subr.mxu0 0.0
  %3052 = vmatpush1.msra.mxu0 0.0
  %3053 = vmatprep.subr.mxu0 0.0
  %3054 = vmatpush1.msra.mxu0 0.0
  %3055 = vmatprep.subr.mxu0 0.0
  %3056 = vmatpush1.msra.mxu0 0.0
  %3057 = vmatprep.subr.mxu0 0.0
  %3058 = vmatpush1.msra.mxu0 0.0
  %3059 = vmatprep.subr.mxu0 0.0
  %3060 = vmatpush1.msra.mxu0 0.0
  %3061 = vmatprep.subr.mxu0 0.0
  %3062 = vmatpush1.msra.mxu0 0.0
  %3063 = vmatprep.subr.mxu0 0.0
  %3064 = vmatpush1.msra.mxu0 0.0
  %3065 = vmatprep.subr.mxu0 0.0
  %3066 = vmatpush1.msra.mxu0 0.0
  %3067 = vmatprep.subr.mxu0 0.0
  %3068 = vmatpush1.msra.mxu0 0.0
  %3069 = vmatprep.subr.mxu0 0.0
  %3070 = vmatpush1.msra.mxu0 0.0
  %3071 = vmatprep.subr.mxu0 0.0
  %3072 = vmatpush1.msra.mxu0 0.0
  %3073 = vmatprep.subr.mxu0 0.0
  %3074 = vmatpush1.msra.mxu0 0.0
  %3075 = vmatprep.subr.mxu0 0.0
  %3076 = vmatpush1.msra.mxu0 0.0
  %3077 = vmatprep.subr.mxu0 0.0
  %3078 = vmatpush1.msra.mxu0 0.0
  %3079 = vmatprep.subr.mxu0 0.0
  %3080 = vmatpush1.msra.mxu0 0.0
  %3081 = vmatprep.subr.mxu0 0.0
  %3082 = vmatpush1.msra.mxu0 0.0
  %3083 = vmatprep.subr.mxu0 0.0
  %3084 = vmatpush1.msra.mxu0 0.0
  %3085 = vmatprep.subr.mxu0 0.0
  %3086 = vmatpush1.msra.mxu0 0.0
  %3087 = vmatprep.subr.mxu0 0.0
  %3088 = vmatpush1.msra.mxu0 0.0
  %3089 = vmatprep.subr.mxu0 0.0
  %3090 = vmatpush1.msra.mxu0 0.0
  %3091 = vmatprep.subr.mxu0 0.0
  %3092 = vmatpush1.msra.mxu0 0.0
  %3093 = vmatprep.subr.mxu0 0.0
  %3094 = vmatpush1.msra.mxu0 0.0
  %3095 = vmatprep.subr.mxu0 0.0
  %3096 = vmatpush1.msra.mxu0 0.0
  %3097 = vmatprep.subr.mxu0 0.0
  %3098 = vmatpush1.msra.mxu0 0.0
  %3099 = vmatprep.subr.mxu0 0.0
  %3100 = vmatpush1.msra.mxu0 0.0
  %3101 = vmatprep.subr.mxu0 0.0
  %3102 = vmatpush1.msra.mxu0 0.0
  %3103 = vmatprep.mubr.f32.mxu0 0.0
  %3104 = vmatmul.mubr.f32.gmra.mrb[0].mxu0 %v3034
  %v3105 = vpop.f32.mrb[0].mxu0
  %v3106 = vadd.f32 0.0, %v3105
  %v3107 = vpop.f32.mrb[0].mxu0
  %3108 = vmatprep.mubr.f32.mxu0 0.0
  %3109 = vmatmul.mubr.f32.gmra.mrb[0].mxu0 %v3037
  %v3110 = vpop.f32.mrb[0].mxu0
  %v3111 = vadd.f32 0.0, %v3110
  %v3112 = vpop.f32.mrb[0].mxu0
  %3113 = vdwg.mxu0
  %v3114 = vadd.f32 %v3025, %v3106
  %v3115 = vadd.f32 %v3026, %v3111
  %v3116 = vld [vmem:[#allocation2 + $0x50] sm:$0xff]
  %v3117 = vld [vmem:[#allocation2 + $0x58] sm:$0xff]
  %v3118 = vld [vmem:[%s1514] sm:$0xff]
  %v3119 = vld [vmem:[%s1514 + $0x8] sm:$0xff]
  %v3120 = vld [vmem:[%s1514 + $0x10] sm:$0xff]
  %v3121 = vld [vmem:[%s1514 + $0x18] sm:$0xff]
  %v3123 = vsel %vm1048, %v3116, 0
  %v3126 = vsel %vm1048, %v3117, 0
  %3128 = vmatprep.subr.mxu0 0.0
  %3129 = vmatpush1.msra.mxu0 %v3118
  %3130 = vmatprep.subr.mxu0 0.0
  %3131 = vmatpush1.msra.mxu0 %v3119
  %3132 = vmatprep.subr.mxu0 0.0
  %3133 = vmatpush1.msra.mxu0 %v3120
  %3134 = vmatprep.subr.mxu0 0.0
  %3135 = vmatpush1.msra.mxu0 %v3121
  %3136 = vmatprep.subr.mxu0 0.0
  %3137 = vmatpush1.msra.mxu0 0.0
  %3138 = vmatprep.subr.mxu0 0.0
  %3139 = vmatpush1.msra.mxu0 0.0
  %3140 = vmatprep.subr.mxu0 0.0
  %3141 = vmatpush1.msra.mxu0 0.0
  %3142 = vmatprep.subr.mxu0 0.0
  %3143 = vmatpush1.msra.mxu0 0.0
  %3144 = vmatprep.subr.mxu0 0.0
  %3145 = vmatpush1.msra.mxu0 0.0
  %3146 = vmatprep.subr.mxu0 0.0
  %3147 = vmatpush1.msra.mxu0 0.0
  %3148 = vmatprep.subr.mxu0 0.0
  %3149 = vmatpush1.msra.mxu0 0.0
  %3150 = vmatprep.subr.mxu0 0.0
  %3151 = vmatpush1.msra.mxu0 0.0
  %3152 = vmatprep.subr.mxu0 0.0
  %3153 = vmatpush1.msra.mxu0 0.0
  %3154 = vmatprep.subr.mxu0 0.0
  %3155 = vmatpush1.msra.mxu0 0.0
  %3156 = vmatprep.subr.mxu0 0.0
  %3157 = vmatpush1.msra.mxu0 0.0
  %3158 = vmatprep.subr.mxu0 0.0
  %3159 = vmatpush1.msra.mxu0 0.0
  %3160 = vmatprep.subr.mxu0 0.0
  %3161 = vmatpush1.msra.mxu0 0.0
  %3162 = vmatprep.subr.mxu0 0.0
  %3163 = vmatpush1.msra.mxu0 0.0
  %3164 = vmatprep.subr.mxu0 0.0
  %3165 = vmatpush1.msra.mxu0 0.0
  %3166 = vmatprep.subr.mxu0 0.0
  %3167 = vmatpush1.msra.mxu0 0.0
  %3168 = vmatprep.subr.mxu0 0.0
  %3169 = vmatpush1.msra.mxu0 0.0
  %3170 = vmatprep.subr.mxu0 0.0
  %3171 = vmatpush1.msra.mxu0 0.0
  %3172 = vmatprep.subr.mxu0 0.0
  %3173 = vmatpush1.msra.mxu0 0.0
  %3174 = vmatprep.subr.mxu0 0.0
  %3175 = vmatpush1.msra.mxu0 0.0
  %3176 = vmatprep.subr.mxu0 0.0
  %3177 = vmatpush1.msra.mxu0 0.0
  %3178 = vmatprep.subr.mxu0 0.0
  %3179 = vmatpush1.msra.mxu0 0.0
  %3180 = vmatprep.subr.mxu0 0.0
  %3181 = vmatpush1.msra.mxu0 0.0
  %3182 = vmatprep.subr.mxu0 0.0
  %3183 = vmatpush1.msra.mxu0 0.0
  %3184 = vmatprep.subr.mxu0 0.0
  %3185 = vmatpush1.msra.mxu0 0.0
  %3186 = vmatprep.subr.mxu0 0.0
  %3187 = vmatpush1.msra.mxu0 0.0
  %3188 = vmatprep.subr.mxu0 0.0
  %3189 = vmatpush1.msra.mxu0 0.0
  %3190 = vmatprep.subr.mxu0 0.0
  %3191 = vmatpush1.msra.mxu0 0.0
  %3192 = vmatprep.mubr.f32.mxu0 0.0
  %3193 = vmatmul.mubr.f32.gmra.mrb[0].mxu0 %v3123
  %v3194 = vpop.f32.mrb[0].mxu0
  %v3195 = vadd.f32 0.0, %v3194
  %v3196 = vpop.f32.mrb[0].mxu0
  %3197 = vmatprep.mubr.f32.mxu0 0.0
  %3198 = vmatmul.mubr.f32.gmra.mrb[0].mxu0 %v3126
  %v3199 = vpop.f32.mrb[0].mxu0
  %v3200 = vadd.f32 0.0, %v3199
  %v3201 = vpop.f32.mrb[0].mxu0
  %3202 = vdwg.mxu0
  %v3203 = vadd.f32 %v3114, %v3195
  %v3204 = vadd.f32 %v3115, %v3200
  %v3205 = vld [vmem:[#allocation2 + $0x60] sm:$0xff]
  %v3206 = vld [vmem:[#allocation2 + $0x68] sm:$0xff]
  %v3207 = vld [vmem:[%s1604] sm:$0xff]
  %v3208 = vld [vmem:[%s1604 + $0x8] sm:$0xff]
  %v3209 = vld [vmem:[%s1604 + $0x10] sm:$0xff]
  %v3210 = vld [vmem:[%s1604 + $0x18] sm:$0xff]
  %v3212 = vsel %vm1048, %v3205, 0
  %v3215 = vsel %vm1048, %v3206, 0
  %3217 = vmatprep.subr.mxu0 0.0
  %3218 = vmatpush1.msra.mxu0 %v3207
  %3219 = vmatprep.subr.mxu0 0.0
  %3220 = vmatpush1.msra.mxu0 %v3208
  %3221 = vmatprep.subr.mxu0 0.0
  %3222 = vmatpush1.msra.mxu0 %v3209
  %3223 = vmatprep.subr.mxu0 0.0
  %3224 = vmatpush1.msra.mxu0 %v3210
  %3225 = vmatprep.subr.mxu0 0.0
  %3226 = vmatpush1.msra.mxu0 0.0
  %3227 = vmatprep.subr.mxu0 0.0
  %3228 = vmatpush1.msra.mxu0 0.0
  %3229 = vmatprep.subr.mxu0 0.0
  %3230 = vmatpush1.msra.mxu0 0.0
  %3231 = vmatprep.subr.mxu0 0.0
  %3232 = vmatpush1.msra.mxu0 0.0
  %3233 = vmatprep.subr.mxu0 0.0
  %3234 = vmatpush1.msra.mxu0 0.0
  %3235 = vmatprep.subr.mxu0 0.0
  %3236 = vmatpush1.msra.mxu0 0.0
  %3237 = vmatprep.subr.mxu0 0.0
  %3238 = vmatpush1.msra.mxu0 0.0
  %3239 = vmatprep.subr.mxu0 0.0
  %3240 = vmatpush1.msra.mxu0 0.0
  %3241 = vmatprep.subr.mxu0 0.0
  %3242 = vmatpush1.msra.mxu0 0.0
  %3243 = vmatprep.subr.mxu0 0.0
  %3244 = vmatpush1.msra.mxu0 0.0
  %3245 = vmatprep.subr.mxu0 0.0
  %3246 = vmatpush1.msra.mxu0 0.0
  %3247 = vmatprep.subr.mxu0 0.0
  %3248 = vmatpush1.msra.mxu0 0.0
  %3249 = vmatprep.subr.mxu0 0.0
  %3250 = vmatpush1.msra.mxu0 0.0
  %3251 = vmatprep.subr.mxu0 0.0
  %3252 = vmatpush1.msra.mxu0 0.0
  %3253 = vmatprep.subr.mxu0 0.0
  %3254 = vmatpush1.msra.mxu0 0.0
  %3255 = vmatprep.subr.mxu0 0.0
  %3256 = vmatpush1.msra.mxu0 0.0
  %3257 = vmatprep.subr.mxu0 0.0
  %3258 = vmatpush1.msra.mxu0 0.0
  %3259 = vmatprep.subr.mxu0 0.0
  %3260 = vmatpush1.msra.mxu0 0.0
  %3261 = vmatprep.subr.mxu0 0.0
  %3262 = vmatpush1.msra.mxu0 0.0
  %3263 = vmatprep.subr.mxu0 0.0
  %3264 = vmatpush1.msra.mxu0 0.0
  %3265 = vmatprep.subr.mxu0 0.0
  %3266 = vmatpush1.msra.mxu0 0.0
  %3267 = vmatprep.subr.mxu0 0.0
  %3268 = vmatpush1.msra.mxu0 0.0
  %3269 = vmatprep.subr.mxu0 0.0
  %3270 = vmatpush1.msra.mxu0 0.0
  %3271 = vmatprep.subr.mxu0 0.0
  %3272 = vmatpush1.msra.mxu0 0.0
  %3273 = vmatprep.subr.mxu0 0.0
  %3274 = vmatpush1.msra.mxu0 0.0
  %3275 = vmatprep.subr.mxu0 0.0
  %3276 = vmatpush1.msra.mxu0 0.0
  %3277 = vmatprep.subr.mxu0 0.0
  %3278 = vmatpush1.msra.mxu0 0.0
  %3279 = vmatprep.subr.mxu0 0.0
  %3280 = vmatpush1.msra.mxu0 0.0
  %3281 = vmatprep.mubr.f32.mxu0 0.0
  %3282 = vmatmul.mubr.f32.gmra.mrb[0].mxu0 %v3212
  %v3283 = vpop.f32.mrb[0].mxu0
  %v3284 = vadd.f32 0.0, %v3283
  %v3285 = vpop.f32.mrb[0].mxu0
  %3286 = vmatprep.mubr.f32.mxu0 0.0
  %3287 = vmatmul.mubr.f32.gmra.mrb[0].mxu0 %v3215
  %v3288 = vpop.f32.mrb[0].mxu0
  %v3289 = vadd.f32 0.0, %v3288
  %v3290 = vpop.f32.mrb[0].mxu0
  %3291 = vdwg.mxu0
  %v3292 = vadd.f32 %v3203, %v3284
  %v3293 = vadd.f32 %v3204, %v3289
  %v3294 = vld [vmem:[#allocation2 + $0x64] sm:$0xff]
  %v3295 = vld [vmem:[#allocation2 + $0x6c] sm:$0xff]
  %v3296 = vld [vmem:[%s1694] sm:$0xff]
  %v3297 = vld [vmem:[%s1694 + $0x8] sm:$0xff]
  %v3298 = vld [vmem:[%s1694 + $0x10] sm:$0xff]
  %v3299 = vld [vmem:[%s1694 + $0x18] sm:$0xff]
  %v3301 = vsel %vm1048, %v3294, 0
  %v3304 = vsel %vm1048, %v3295, 0
  %3306 = vmatprep.subr.mxu0 0.0
  %3307 = vmatpush1.msra.mxu0 %v3296
  %3308 = vmatprep.subr.mxu0 0.0
  %3309 = vmatpush1.msra.mxu0 %v3297
  %3310 = vmatprep.subr.mxu0 0.0
  %3311 = vmatpush1.msra.mxu0 %v3298
  %3312 = vmatprep.subr.mxu0 0.0
  %3313 = vmatpush1.msra.mxu0 %v3299
  %3314 = vmatprep.subr.mxu0 0.0
  %3315 = vmatpush1.msra.mxu0 0.0
  %3316 = vmatprep.subr.mxu0 0.0
  %3317 = vmatpush1.msra.mxu0 0.0
  %3318 = vmatprep.subr.mxu0 0.0
  %3319 = vmatpush1.msra.mxu0 0.0
  %3320 = vmatprep.subr.mxu0 0.0
  %3321 = vmatpush1.msra.mxu0 0.0
  %3322 = vmatprep.subr.mxu0 0.0
  %3323 = vmatpush1.msra.mxu0 0.0
  %3324 = vmatprep.subr.mxu0 0.0
  %3325 = vmatpush1.msra.mxu0 0.0
  %3326 = vmatprep.subr.mxu0 0.0
  %3327 = vmatpush1.msra.mxu0 0.0
  %3328 = vmatprep.subr.mxu0 0.0
  %3329 = vmatpush1.msra.mxu0 0.0
  %3330 = vmatprep.subr.mxu0 0.0
  %3331 = vmatpush1.msra.mxu0 0.0
  %3332 = vmatprep.subr.mxu0 0.0
  %3333 = vmatpush1.msra.mxu0 0.0
  %3334 = vmatprep.subr.mxu0 0.0
  %3335 = vmatpush1.msra.mxu0 0.0
  %3336 = vmatprep.subr.mxu0 0.0
  %3337 = vmatpush1.msra.mxu0 0.0
  %3338 = vmatprep.subr.mxu0 0.0
  %3339 = vmatpush1.msra.mxu0 0.0
  %3340 = vmatprep.subr.mxu0 0.0
  %3341 = vmatpush1.msra.mxu0 0.0
  %3342 = vmatprep.subr.mxu0 0.0
  %3343 = vmatpush1.msra.mxu0 0.0
  %3344 = vmatprep.subr.mxu0 0.0
  %3345 = vmatpush1.msra.mxu0 0.0
  %3346 = vmatprep.subr.mxu0 0.0
  %3347 = vmatpush1.msra.mxu0 0.0
  %3348 = vmatprep.subr.mxu0 0.0
  %3349 = vmatpush1.msra.mxu0 0.0
  %3350 = vmatprep.subr.mxu0 0.0
  %3351 = vmatpush1.msra.mxu0 0.0
  %3352 = vmatprep.subr.mxu0 0.0
  %3353 = vmatpush1.msra.mxu0 0.0
  %3354 = vmatprep.subr.mxu0 0.0
  %3355 = vmatpush1.msra.mxu0 0.0
  %3356 = vmatprep.subr.mxu0 0.0
  %3357 = vmatpush1.msra.mxu0 0.0
  %3358 = vmatprep.subr.mxu0 0.0
  %3359 = vmatpush1.msra.mxu0 0.0
  %3360 = vmatprep.subr.mxu0 0.0
  %3361 = vmatpush1.msra.mxu0 0.0
  %3362 = vmatprep.subr.mxu0 0.0
  %3363 = vmatpush1.msra.mxu0 0.0
  %3364 = vmatprep.subr.mxu0 0.0
  %3365 = vmatpush1.msra.mxu0 0.0
  %3366 = vmatprep.subr.mxu0 0.0
  %3367 = vmatpush1.msra.mxu0 0.0
  %3368 = vmatprep.subr.mxu0 0.0
  %3369 = vmatpush1.msra.mxu0 0.0
  %3370 = vmatprep.mubr.f32.mxu0 0.0
  %3371 = vmatmul.mubr.f32.gmra.mrb[0].mxu0 %v3301
  %v3372 = vpop.f32.mrb[0].mxu0
  %v3373 = vadd.f32 0.0, %v3372
  %v3374 = vpop.f32.mrb[0].mxu0
  %3375 = vmatprep.mubr.f32.mxu0 0.0
  %3376 = vmatmul.mubr.f32.gmra.mrb[0].mxu0 %v3304
  %v3377 = vpop.f32.mrb[0].mxu0
  %v3378 = vadd.f32 0.0, %v3377
  %v3379 = vpop.f32.mrb[0].mxu0
  %3380 = vdwg.mxu0
  %v3381 = vadd.f32 %v3292, %v3373
  %v3382 = vadd.f32 %v3293, %v3378
  %v3383 = vld [vmem:[#allocation2 + $0x68] sm:$0xff]
  %v3384 = vld [vmem:[#allocation2 + $0x70] sm:$0xff]
  %v3385 = vld [vmem:[%s1784] sm:$0xff]
  %v3386 = vld [vmem:[%s1784 + $0x8] sm:$0xff]
  %v3387 = vld [vmem:[%s1784 + $0x10] sm:$0xff]
  %v3388 = vld [vmem:[%s1784 + $0x18] sm:$0xff]
  %v3390 = vsel %vm1048, %v3383, 0
  %v3393 = vsel %vm1048, %v3384, 0
  %3395 = vmatprep.subr.mxu0 0.0
  %3396 = vmatpush1.msra.mxu0 %v3385
  %3397 = vmatprep.subr.mxu0 0.0
  %3398 = vmatpush1.msra.mxu0 %v3386
  %3399 = vmatprep.subr.mxu0 0.0
  %3400 = vmatpush1.msra.mxu0 %v3387
  %3401 = vmatprep.subr.mxu0 0.0
  %3402 = vmatpush1.msra.mxu0 %v3388
  %3403 = vmatprep.subr.mxu0 0.0
  %3404 = vmatpush1.msra.mxu0 0.0
  %3405 = vmatprep.subr.mxu0 0.0
  %3406 = vmatpush1.msra.mxu0 0.0
  %3407 = vmatprep.subr.mxu0 0.0
  %3408 = vmatpush1.msra.mxu0 0.0
  %3409 = vmatprep.subr.mxu0 0.0
  %3410 = vmatpush1.msra.mxu0 0.0
  %3411 = vmatprep.subr.mxu0 0.0
  %3412 = vmatpush1.msra.mxu0 0.0
  %3413 = vmatprep.subr.mxu0 0.0
  %3414 = vmatpush1.msra.mxu0 0.0
  %3415 = vmatprep.subr.mxu0 0.0
  %3416 = vmatpush1.msra.mxu0 0.0
  %3417 = vmatprep.subr.mxu0 0.0
  %3418 = vmatpush1.msra.mxu0 0.0
  %3419 = vmatprep.subr.mxu0 0.0
  %3420 = vmatpush1.msra.mxu0 0.0
  %3421 = vmatprep.subr.mxu0 0.0
  %3422 = vmatpush1.msra.mxu0 0.0
  %3423 = vmatprep.subr.mxu0 0.0
  %3424 = vmatpush1.msra.mxu0 0.0
  %3425 = vmatprep.subr.mxu0 0.0
  %3426 = vmatpush1.msra.mxu0 0.0
  %3427 = vmatprep.subr.mxu0 0.0
  %3428 = vmatpush1.msra.mxu0 0.0
  %3429 = vmatprep.subr.mxu0 0.0
  %3430 = vmatpush1.msra.mxu0 0.0
  %3431 = vmatprep.subr.mxu0 0.0
  %3432 = vmatpush1.msra.mxu0 0.0
  %3433 = vmatprep.subr.mxu0 0.0
  %3434 = vmatpush1.msra.mxu0 0.0
  %3435 = vmatprep.subr.mxu0 0.0
  %3436 = vmatpush1.msra.mxu0 0.0
  %3437 = vmatprep.subr.mxu0 0.0
  %3438 = vmatpush1.msra.mxu0 0.0
  %3439 = vmatprep.subr.mxu0 0.0
  %3440 = vmatpush1.msra.mxu0 0.0
  %3441 = vmatprep.subr.mxu0 0.0
  %3442 = vmatpush1.msra.mxu0 0.0
  %3443 = vmatprep.subr.mxu0 0.0
  %3444 = vmatpush1.msra.mxu0 0.0
  %3445 = vmatprep.subr.mxu0 0.0
  %3446 = vmatpush1.msra.mxu0 0.0
  %3447 = vmatprep.subr.mxu0 0.0
  %3448 = vmatpush1.msra.mxu0 0.0
  %3449 = vmatprep.subr.mxu0 0.0
  %3450 = vmatpush1.msra.mxu0 0.0
  %3451 = vmatprep.subr.mxu0 0.0
  %3452 = vmatpush1.msra.mxu0 0.0
  %3453 = vmatprep.subr.mxu0 0.0
  %3454 = vmatpush1.msra.mxu0 0.0
  %3455 = vmatprep.subr.mxu0 0.0
  %3456 = vmatpush1.msra.mxu0 0.0
  %3457 = vmatprep.subr.mxu0 0.0
  %3458 = vmatpush1.msra.mxu0 0.0
  %3459 = vmatprep.mubr.f32.mxu0 0.0
  %3460 = vmatmul.mubr.f32.gmra.mrb[0].mxu0 %v3390
  %v3461 = vpop.f32.mrb[0].mxu0
  %v3462 = vadd.f32 0.0, %v3461
  %v3463 = vpop.f32.mrb[0].mxu0
  %3464 = vmatprep.mubr.f32.mxu0 0.0
  %3465 = vmatmul.mubr.f32.gmra.mrb[0].mxu0 %v3393
  %v3466 = vpop.f32.mrb[0].mxu0
  %v3467 = vadd.f32 0.0, %v3466
  %v3468 = vpop.f32.mrb[0].mxu0
  %3469 = vdwg.mxu0
  %v3470 = vadd.f32 %v3381, %v3462
  %v3471 = vadd.f32 %v3382, %v3467
  %s3472 = scalar_lea.vmem [#allocation3], 32
  %3473 = vst.msk [vmem:[%s3472] sm:$0xff] %vm1872, %v3470
  %3474 = vst.msk [vmem:[%s3472 + $0x8] sm:$0xff] %vm1872, %v3471
  %v3475 = vld [vmem:[#allocation2 + $0x48] sm:$0xff]
  %v3476 = vld [vmem:[#allocation2 + $0x50] sm:$0xff]
  %v3477 = vld [vmem:[%s3] sm:$0xff]
  %v3478 = vld [vmem:[%s3 + $0x8] sm:$0xff]
  %v3479 = vld [vmem:[%s3 + $0x10] sm:$0xff]
  %v3480 = vld [vmem:[%s3 + $0x18] sm:$0xff]
  %v3481 = vld [vmem:[#allocation2 + $0x4c] sm:$0xff]
  %v3482 = vld [vmem:[#allocation2 + $0x54] sm:$0xff]
  %v3483 = vld [vmem:[%s1075] sm:$0xff]
  %v3484 = vld [vmem:[%s1075 + $0x8] sm:$0xff]
  %v3485 = vld [vmem:[%s1075 + $0x10] sm:$0xff]
  %v3486 = vld [vmem:[%s1075 + $0x18] sm:$0xff]
  %v3488 = vsel %vm1048, %v3481, 0
  %v3491 = vsel %vm1048, %v3482, 0
  %3493 = vmatprep.subr.mxu0 0.0
  %3494 = vmatpush1.msra.mxu0 %v3483
  %3495 = vmatprep.subr.mxu0 0.0
  %3496 = vmatpush1.msra.mxu0 %v3484
  %3497 = vmatprep.subr.mxu0 0.0
  %3498 = vmatpush1.msra.mxu0 %v3485
  %3499 = vmatprep.subr.mxu0 0.0
  %3500 = vmatpush1.msra.mxu0 %v3486
  %3501 = vmatprep.subr.mxu0 0.0
  %3502 = vmatpush1.msra.mxu0 0.0
  %3503 = vmatprep.subr.mxu0 0.0
  %3504 = vmatpush1.msra.mxu0 0.0
  %3505 = vmatprep.subr.mxu0 0.0
  %3506 = vmatpush1.msra.mxu0 0.0
  %3507 = vmatprep.subr.mxu0 0.0
  %3508 = vmatpush1.msra.mxu0 0.0
  %3509 = vmatprep.subr.mxu0 0.0
  %3510 = vmatpush1.msra.mxu0 0.0
  %3511 = vmatprep.subr.mxu0 0.0
  %3512 = vmatpush1.msra.mxu0 0.0
  %3513 = vmatprep.subr.mxu0 0.0
  %3514 = vmatpush1.msra.mxu0 0.0
  %3515 = vmatprep.subr.mxu0 0.0
  %3516 = vmatpush1.msra.mxu0 0.0
  %3517 = vmatprep.subr.mxu0 0.0
  %3518 = vmatpush1.msra.mxu0 0.0
  %3519 = vmatprep.subr.mxu0 0.0
  %3520 = vmatpush1.msra.mxu0 0.0
  %3521 = vmatprep.subr.mxu0 0.0
  %3522 = vmatpush1.msra.mxu0 0.0
  %3523 = vmatprep.subr.mxu0 0.0
  %3524 = vmatpush1.msra.mxu0 0.0
  %3525 = vmatprep.subr.mxu0 0.0
  %3526 = vmatpush1.msra.mxu0 0.0
  %3527 = vmatprep.subr.mxu0 0.0
  %3528 = vmatpush1.msra.mxu0 0.0
  %3529 = vmatprep.subr.mxu0 0.0
  %3530 = vmatpush1.msra.mxu0 0.0
  %3531 = vmatprep.subr.mxu0 0.0
  %3532 = vmatpush1.msra.mxu0 0.0
  %3533 = vmatprep.subr.mxu0 0.0
  %3534 = vmatpush1.msra.mxu0 0.0
  %3535 = vmatprep.subr.mxu0 0.0
  %3536 = vmatpush1.msra.mxu0 0.0
  %3537 = vmatprep.subr.mxu0 0.0
  %3538 = vmatpush1.msra.mxu0 0.0
  %3539 = vmatprep.subr.mxu0 0.0
  %3540 = vmatpush1.msra.mxu0 0.0
  %3541 = vmatprep.subr.mxu0 0.0
  %3542 = vmatpush1.msra.mxu0 0.0
  %3543 = vmatprep.subr.mxu0 0.0
  %3544 = vmatpush1.msra.mxu0 0.0
  %3545 = vmatprep.subr.mxu0 0.0
  %3546 = vmatpush1.msra.mxu0 0.0
  %3547 = vmatprep.subr.mxu0 0.0
  %3548 = vmatpush1.msra.mxu0 0.0
  %3549 = vmatprep.subr.mxu0 0.0
  %3550 = vmatpush1.msra.mxu0 0.0
  %3551 = vmatprep.subr.mxu0 0.0
  %3552 = vmatpush1.msra.mxu0 0.0
  %3553 = vmatprep.subr.mxu0 0.0
  %3554 = vmatpush1.msra.mxu0 0.0
  %3555 = vmatprep.subr.mxu0 0.0
  %3556 = vmatpush1.msra.mxu0 0.0
  %3557 = vmatprep.mubr.f32.mxu0 0.0
  %3558 = vmatmul.mubr.f32.gmra.mrb[0].mxu0 %v3488
  %v3559 = vpop.f32.mrb[0].mxu0
  %v3560 = vadd.f32 0.0, %v3559
  %v3561 = vpop.f32.mrb[0].mxu0
  %3562 = vmatprep.mubr.f32.mxu0 0.0
  %3563 = vmatmul.mubr.f32.gmra.mrb[0].mxu0 %v3491
  %v3564 = vpop.f32.mrb[0].mxu0
  %v3565 = vadd.f32 0.0, %v3564
  %v3566 = vpop.f32.mrb[0].mxu0
  %3567 = vdwg.mxu0
  %v3569 = vsel %vm1048, %v3475, 0
  %v3572 = vsel %vm1048, %v3476, 0
  %3574 = vmatprep.subr.mxu0 0.0
  %3575 = vmatpush1.msra.mxu0 %v3477
  %3576 = vmatprep.subr.mxu0 0.0
  %3577 = vmatpush1.msra.mxu0 %v3478
  %3578 = vmatprep.subr.mxu0 0.0
  %3579 = vmatpush1.msra.mxu0 %v3479
  %3580 = vmatprep.subr.mxu0 0.0
  %3581 = vmatpush1.msra.mxu0 %v3480
  %3582 = vmatprep.subr.mxu0 0.0
  %3583 = vmatpush1.msra.mxu0 0.0
  %3584 = vmatprep.subr.mxu0 0.0
  %3585 = vmatpush1.msra.mxu0 0.0
  %3586 = vmatprep.subr.mxu0 0.0
  %3587 = vmatpush1.msra.mxu0 0.0
  %3588 = vmatprep.subr.mxu0 0.0
  %3589 = vmatpush1.msra.mxu0 0.0
  %3590 = vmatprep.subr.mxu0 0.0
  %3591 = vmatpush1.msra.mxu0 0.0
  %3592 = vmatprep.subr.mxu0 0.0
  %3593 = vmatpush1.msra.mxu0 0.0
  %3594 = vmatprep.subr.mxu0 0.0
  %3595 = vmatpush1.msra.mxu0 0.0
  %3596 = vmatprep.subr.mxu0 0.0
  %3597 = vmatpush1.msra.mxu0 0.0
  %3598 = vmatprep.subr.mxu0 0.0
  %3599 = vmatpush1.msra.mxu0 0.0
  %3600 = vmatprep.subr.mxu0 0.0
  %3601 = vmatpush1.msra.mxu0 0.0
  %3602 = vmatprep.subr.mxu0 0.0
  %3603 = vmatpush1.msra.mxu0 0.0
  %3604 = vmatprep.subr.mxu0 0.0
  %3605 = vmatpush1.msra.mxu0 0.0
  %3606 = vmatprep.subr.mxu0 0.0
  %3607 = vmatpush1.msra.mxu0 0.0
  %3608 = vmatprep.subr.mxu0 0.0
  %3609 = vmatpush1.msra.mxu0 0.0
  %3610 = vmatprep.subr.mxu0 0.0
  %3611 = vmatpush1.msra.mxu0 0.0
  %3612 = vmatprep.subr.mxu0 0.0
  %3613 = vmatpush1.msra.mxu0 0.0
  %3614 = vmatprep.subr.mxu0 0.0
  %3615 = vmatpush1.msra.mxu0 0.0
  %3616 = vmatprep.subr.mxu0 0.0
  %3617 = vmatpush1.msra.mxu0 0.0
  %3618 = vmatprep.subr.mxu0 0.0
  %3619 = vmatpush1.msra.mxu0 0.0
  %3620 = vmatprep.subr.mxu0 0.0
  %3621 = vmatpush1.msra.mxu0 0.0
  %3622 = vmatprep.subr.mxu0 0.0
  %3623 = vmatpush1.msra.mxu0 0.0
  %3624 = vmatprep.subr.mxu0 0.0
  %3625 = vmatpush1.msra.mxu0 0.0
  %3626 = vmatprep.subr.mxu0 0.0
  %3627 = vmatpush1.msra.mxu0 0.0
  %3628 = vmatprep.subr.mxu0 0.0
  %3629 = vmatpush1.msra.mxu0 0.0
  %3630 = vmatprep.subr.mxu0 0.0
  %3631 = vmatpush1.msra.mxu0 0.0
  %3632 = vmatprep.subr.mxu0 0.0
  %3633 = vmatpush1.msra.mxu0 0.0
  %3634 = vmatprep.subr.mxu0 0.0
  %3635 = vmatpush1.msra.mxu0 0.0
  %3636 = vmatprep.subr.mxu0 0.0
  %3637 = vmatpush1.msra.mxu0 0.0
  %3638 = vmatprep.mubr.f32.mxu0 0.0
  %3639 = vmatmul.mubr.f32.gmra.mrb[0].mxu0 %v3569
  %v3640 = vpop.f32.mrb[0].mxu0
  %v3641 = vadd.f32 %v3560, %v3640
  %v3642 = vpop.f32.mrb[0].mxu0
  %3643 = vmatprep.mubr.f32.mxu0 0.0
  %3644 = vmatmul.mubr.f32.gmra.mrb[0].mxu0 %v3572
  %v3645 = vpop.f32.mrb[0].mxu0
  %v3646 = vadd.f32 %v3565, %v3645
  %v3647 = vpop.f32.mrb[0].mxu0
  %3648 = vdwg.mxu0
  %v3649 = vld [vmem:[#allocation2 + $0x50] sm:$0xff]
  %v3650 = vld [vmem:[#allocation2 + $0x58] sm:$0xff]
  %v3651 = vld [vmem:[%s1244] sm:$0xff]
  %v3652 = vld [vmem:[%s1244 + $0x8] sm:$0xff]
  %v3653 = vld [vmem:[%s1244 + $0x10] sm:$0xff]
  %v3654 = vld [vmem:[%s1244 + $0x18] sm:$0xff]
  %v3656 = vsel %vm1048, %v3649, 0
  %v3659 = vsel %vm1048, %v3650, 0
  %3661 = vmatprep.subr.mxu0 0.0
  %3662 = vmatpush1.msra.mxu0 %v3651
  %3663 = vmatprep.subr.mxu0 0.0
  %3664 = vmatpush1.msra.mxu0 %v3652
  %3665 = vmatprep.subr.mxu0 0.0
  %3666 = vmatpush1.msra.mxu0 %v3653
  %3667 = vmatprep.subr.mxu0 0.0
  %3668 = vmatpush1.msra.mxu0 %v3654
  %3669 = vmatprep.subr.mxu0 0.0
  %3670 = vmatpush1.msra.mxu0 0.0
  %3671 = vmatprep.subr.mxu0 0.0
  %3672 = vmatpush1.msra.mxu0 0.0
  %3673 = vmatprep.subr.mxu0 0.0
  %3674 = vmatpush1.msra.mxu0 0.0
  %3675 = vmatprep.subr.mxu0 0.0
  %3676 = vmatpush1.msra.mxu0 0.0
  %3677 = vmatprep.subr.mxu0 0.0
  %3678 = vmatpush1.msra.mxu0 0.0
  %3679 = vmatprep.subr.mxu0 0.0
  %3680 = vmatpush1.msra.mxu0 0.0
  %3681 = vmatprep.subr.mxu0 0.0
  %3682 = vmatpush1.msra.mxu0 0.0
  %3683 = vmatprep.subr.mxu0 0.0
  %3684 = vmatpush1.msra.mxu0 0.0
  %3685 = vmatprep.subr.mxu0 0.0
  %3686 = vmatpush1.msra.mxu0 0.0
  %3687 = vmatprep.subr.mxu0 0.0
  %3688 = vmatpush1.msra.mxu0 0.0
  %3689 = vmatprep.subr.mxu0 0.0
  %3690 = vmatpush1.msra.mxu0 0.0
  %3691 = vmatprep.subr.mxu0 0.0
  %3692 = vmatpush1.msra.mxu0 0.0
  %3693 = vmatprep.subr.mxu0 0.0
  %3694 = vmatpush1.msra.mxu0 0.0
  %3695 = vmatprep.subr.mxu0 0.0
  %3696 = vmatpush1.msra.mxu0 0.0
  %3697 = vmatprep.subr.mxu0 0.0
  %3698 = vmatpush1.msra.mxu0 0.0
  %3699 = vmatprep.subr.mxu0 0.0
  %3700 = vmatpush1.msra.mxu0 0.0
  %3701 = vmatprep.subr.mxu0 0.0
  %3702 = vmatpush1.msra.mxu0 0.0
  %3703 = vmatprep.subr.mxu0 0.0
  %3704 = vmatpush1.msra.mxu0 0.0
  %3705 = vmatprep.subr.mxu0 0.0
  %3706 = vmatpush1.msra.mxu0 0.0
  %3707 = vmatprep.subr.mxu0 0.0
  %3708 = vmatpush1.msra.mxu0 0.0
  %3709 = vmatprep.subr.mxu0 0.0
  %3710 = vmatpush1.msra.mxu0 0.0
  %3711 = vmatprep.subr.mxu0 0.0
  %3712 = vmatpush1.msra.mxu0 0.0
  %3713 = vmatprep.subr.mxu0 0.0
  %3714 = vmatpush1.msra.mxu0 0.0
  %3715 = vmatprep.subr.mxu0 0.0
  %3716 = vmatpush1.msra.mxu0 0.0
  %3717 = vmatprep.subr.mxu0 0.0
  %3718 = vmatpush1.msra.mxu0 0.0
  %3719 = vmatprep.subr.mxu0 0.0
  %3720 = vmatpush1.msra.mxu0 0.0
  %3721 = vmatprep.subr.mxu0 0.0
  %3722 = vmatpush1.msra.mxu0 0.0
  %3723 = vmatprep.subr.mxu0 0.0
  %3724 = vmatpush1.msra.mxu0 0.0
  %3725 = vmatprep.mubr.f32.mxu0 0.0
  %3726 = vmatmul.mubr.f32.gmra.mrb[0].mxu0 %v3656
  %v3727 = vpop.f32.mrb[0].mxu0
  %v3728 = vadd.f32 0.0, %v3727
  %v3729 = vpop.f32.mrb[0].mxu0
  %3730 = vmatprep.mubr.f32.mxu0 0.0
  %3731 = vmatmul.mubr.f32.gmra.mrb[0].mxu0 %v3659
  %v3732 = vpop.f32.mrb[0].mxu0
  %v3733 = vadd.f32 0.0, %v3732
  %v3734 = vpop.f32.mrb[0].mxu0
  %3735 = vdwg.mxu0
  %v3736 = vadd.f32 %v3641, %v3728
  %v3737 = vadd.f32 %v3646, %v3733
  %v3738 = vld [vmem:[#allocation2 + $0x60] sm:$0xff]
  %v3739 = vld [vmem:[#allocation2 + $0x68] sm:$0xff]
  %v3740 = vld [vmem:[%s1334] sm:$0xff]
  %v3741 = vld [vmem:[%s1334 + $0x8] sm:$0xff]
  %v3742 = vld [vmem:[%s1334 + $0x10] sm:$0xff]
  %v3743 = vld [vmem:[%s1334 + $0x18] sm:$0xff]
  %v3745 = vsel %vm1048, %v3738, 0
  %v3748 = vsel %vm1048, %v3739, 0
  %3750 = vmatprep.subr.mxu0 0.0
  %3751 = vmatpush1.msra.mxu0 %v3740
  %3752 = vmatprep.subr.mxu0 0.0
  %3753 = vmatpush1.msra.mxu0 %v3741
  %3754 = vmatprep.subr.mxu0 0.0
  %3755 = vmatpush1.msra.mxu0 %v3742
  %3756 = vmatprep.subr.mxu0 0.0
  %3757 = vmatpush1.msra.mxu0 %v3743
  %3758 = vmatprep.subr.mxu0 0.0
  %3759 = vmatpush1.msra.mxu0 0.0
  %3760 = vmatprep.subr.mxu0 0.0
  %3761 = vmatpush1.msra.mxu0 0.0
  %3762 = vmatprep.subr.mxu0 0.0
  %3763 = vmatpush1.msra.mxu0 0.0
  %3764 = vmatprep.subr.mxu0 0.0
  %3765 = vmatpush1.msra.mxu0 0.0
  %3766 = vmatprep.subr.mxu0 0.0
  %3767 = vmatpush1.msra.mxu0 0.0
  %3768 = vmatprep.subr.mxu0 0.0
  %3769 = vmatpush1.msra.mxu0 0.0
  %3770 = vmatprep.subr.mxu0 0.0
  %3771 = vmatpush1.msra.mxu0 0.0
  %3772 = vmatprep.subr.mxu0 0.0
  %3773 = vmatpush1.msra.mxu0 0.0
  %3774 = vmatprep.subr.mxu0 0.0
  %3775 = vmatpush1.msra.mxu0 0.0
  %3776 = vmatprep.subr.mxu0 0.0
  %3777 = vmatpush1.msra.mxu0 0.0
  %3778 = vmatprep.subr.mxu0 0.0
  %3779 = vmatpush1.msra.mxu0 0.0
  %3780 = vmatprep.subr.mxu0 0.0
  %3781 = vmatpush1.msra.mxu0 0.0
  %3782 = vmatprep.subr.mxu0 0.0
  %3783 = vmatpush1.msra.mxu0 0.0
  %3784 = vmatprep.subr.mxu0 0.0
  %3785 = vmatpush1.msra.mxu0 0.0
  %3786 = vmatprep.subr.mxu0 0.0
  %3787 = vmatpush1.msra.mxu0 0.0
  %3788 = vmatprep.subr.mxu0 0.0
  %3789 = vmatpush1.msra.mxu0 0.0
  %3790 = vmatprep.subr.mxu0 0.0
  %3791 = vmatpush1.msra.mxu0 0.0
  %3792 = vmatprep.subr.mxu0 0.0
  %3793 = vmatpush1.msra.mxu0 0.0
  %3794 = vmatprep.subr.mxu0 0.0
  %3795 = vmatpush1.msra.mxu0 0.0
  %3796 = vmatprep.subr.mxu0 0.0
  %3797 = vmatpush1.msra.mxu0 0.0
  %3798 = vmatprep.subr.mxu0 0.0
  %3799 = vmatpush1.msra.mxu0 0.0
  %3800 = vmatprep.subr.mxu0 0.0
  %3801 = vmatpush1.msra.mxu0 0.0
  %3802 = vmatprep.subr.mxu0 0.0
  %3803 = vmatpush1.msra.mxu0 0.0
  %3804 = vmatprep.subr.mxu0 0.0
  %3805 = vmatpush1.msra.mxu0 0.0
  %3806 = vmatprep.subr.mxu0 0.0
  %3807 = vmatpush1.msra.mxu0 0.0
  %3808 = vmatprep.subr.mxu0 0.0
  %3809 = vmatpush1.msra.mxu0 0.0
  %3810 = vmatprep.subr.mxu0 0.0
  %3811 = vmatpush1.msra.mxu0 0.0
  %3812 = vmatprep.subr.mxu0 0.0
  %3813 = vmatpush1.msra.mxu0 0.0
  %3814 = vmatprep.mubr.f32.mxu0 0.0
  %3815 = vmatmul.mubr.f32.gmra.mrb[0].mxu0 %v3745
  %v3816 = vpop.f32.mrb[0].mxu0
  %v3817 = vadd.f32 0.0, %v3816
  %v3818 = vpop.f32.mrb[0].mxu0
  %3819 = vmatprep.mubr.f32.mxu0 0.0
  %3820 = vmatmul.mubr.f32.gmra.mrb[0].mxu0 %v3748
  %v3821 = vpop.f32.mrb[0].mxu0
  %v3822 = vadd.f32 0.0, %v3821
  %v3823 = vpop.f32.mrb[0].mxu0
  %3824 = vdwg.mxu0
  %v3825 = vadd.f32 %v3736, %v3817
  %v3826 = vadd.f32 %v3737, %v3822
  %v3827 = vld [vmem:[#allocation2 + $0x64] sm:$0xff]
  %v3828 = vld [vmem:[#allocation2 + $0x6c] sm:$0xff]
  %v3829 = vld [vmem:[%s1424] sm:$0xff]
  %v3830 = vld [vmem:[%s1424 + $0x8] sm:$0xff]
  %v3831 = vld [vmem:[%s1424 + $0x10] sm:$0xff]
  %v3832 = vld [vmem:[%s1424 + $0x18] sm:$0xff]
  %v3834 = vsel %vm1048, %v3827, 0
  %v3837 = vsel %vm1048, %v3828, 0
  %3839 = vmatprep.subr.mxu0 0.0
  %3840 = vmatpush1.msra.mxu0 %v3829
  %3841 = vmatprep.subr.mxu0 0.0
  %3842 = vmatpush1.msra.mxu0 %v3830
  %3843 = vmatprep.subr.mxu0 0.0
  %3844 = vmatpush1.msra.mxu0 %v3831
  %3845 = vmatprep.subr.mxu0 0.0
  %3846 = vmatpush1.msra.mxu0 %v3832
  %3847 = vmatprep.subr.mxu0 0.0
  %3848 = vmatpush1.msra.mxu0 0.0
  %3849 = vmatprep.subr.mxu0 0.0
  %3850 = vmatpush1.msra.mxu0 0.0
  %3851 = vmatprep.subr.mxu0 0.0
  %3852 = vmatpush1.msra.mxu0 0.0
  %3853 = vmatprep.subr.mxu0 0.0
  %3854 = vmatpush1.msra.mxu0 0.0
  %3855 = vmatprep.subr.mxu0 0.0
  %3856 = vmatpush1.msra.mxu0 0.0
  %3857 = vmatprep.subr.mxu0 0.0
  %3858 = vmatpush1.msra.mxu0 0.0
  %3859 = vmatprep.subr.mxu0 0.0
  %3860 = vmatpush1.msra.mxu0 0.0
  %3861 = vmatprep.subr.mxu0 0.0
  %3862 = vmatpush1.msra.mxu0 0.0
  %3863 = vmatprep.subr.mxu0 0.0
  %3864 = vmatpush1.msra.mxu0 0.0
  %3865 = vmatprep.subr.mxu0 0.0
  %3866 = vmatpush1.msra.mxu0 0.0
  %3867 = vmatprep.subr.mxu0 0.0
  %3868 = vmatpush1.msra.mxu0 0.0
  %3869 = vmatprep.subr.mxu0 0.0
  %3870 = vmatpush1.msra.mxu0 0.0
  %3871 = vmatprep.subr.mxu0 0.0
  %3872 = vmatpush1.msra.mxu0 0.0
  %3873 = vmatprep.subr.mxu0 0.0
  %3874 = vmatpush1.msra.mxu0 0.0
  %3875 = vmatprep.subr.mxu0 0.0
  %3876 = vmatpush1.msra.mxu0 0.0
  %3877 = vmatprep.subr.mxu0 0.0
  %3878 = vmatpush1.msra.mxu0 0.0
  %3879 = vmatprep.subr.mxu0 0.0
  %3880 = vmatpush1.msra.mxu0 0.0
  %3881 = vmatprep.subr.mxu0 0.0
  %3882 = vmatpush1.msra.mxu0 0.0
  %3883 = vmatprep.subr.mxu0 0.0
  %3884 = vmatpush1.msra.mxu0 0.0
  %3885 = vmatprep.subr.mxu0 0.0
  %3886 = vmatpush1.msra.mxu0 0.0
  %3887 = vmatprep.subr.mxu0 0.0
  %3888 = vmatpush1.msra.mxu0 0.0
  %3889 = vmatprep.subr.mxu0 0.0
  %3890 = vmatpush1.msra.mxu0 0.0
  %3891 = vmatprep.subr.mxu0 0.0
  %3892 = vmatpush1.msra.mxu0 0.0
  %3893 = vmatprep.subr.mxu0 0.0
  %3894 = vmatpush1.msra.mxu0 0.0
  %3895 = vmatprep.subr.mxu0 0.0
  %3896 = vmatpush1.msra.mxu0 0.0
  %3897 = vmatprep.subr.mxu0 0.0
  %3898 = vmatpush1.msra.mxu0 0.0
  %3899 = vmatprep.subr.mxu0 0.0
  %3900 = vmatpush1.msra.mxu0 0.0
  %3901 = vmatprep.subr.mxu0 0.0
  %3902 = vmatpush1.msra.mxu0 0.0
  %3903 = vmatprep.mubr.f32.mxu0 0.0
  %3904 = vmatmul.mubr.f32.gmra.mrb[0].mxu0 %v3834
  %v3905 = vpop.f32.mrb[0].mxu0
  %v3906 = vadd.f32 0.0, %v3905
  %v3907 = vpop.f32.mrb[0].mxu0
  %3908 = vmatprep.mubr.f32.mxu0 0.0
  %3909 = vmatmul.mubr.f32.gmra.mrb[0].mxu0 %v3837
  %v3910 = vpop.f32.mrb[0].mxu0
  %v3911 = vadd.f32 0.0, %v3910
  %v3912 = vpop.f32.mrb[0].mxu0
  %3913 = vdwg.mxu0
  %v3914 = vadd.f32 %v3825, %v3906
  %v3915 = vadd.f32 %v3826, %v3911
  %v3916 = vld [vmem:[#allocation2 + $0x68] sm:$0xff]
  %v3917 = vld [vmem:[#allocation2 + $0x70] sm:$0xff]
  %v3918 = vld [vmem:[%s1514] sm:$0xff]
  %v3919 = vld [vmem:[%s1514 + $0x8] sm:$0xff]
  %v3920 = vld [vmem:[%s1514 + $0x10] sm:$0xff]
  %v3921 = vld [vmem:[%s1514 + $0x18] sm:$0xff]
  %v3923 = vsel %vm1048, %v3916, 0
  %v3926 = vsel %vm1048, %v3917, 0
  %3928 = vmatprep.subr.mxu0 0.0
  %3929 = vmatpush1.msra.mxu0 %v3918
  %3930 = vmatprep.subr.mxu0 0.0
  %3931 = vmatpush1.msra.mxu0 %v3919
  %3932 = vmatprep.subr.mxu0 0.0
  %3933 = vmatpush1.msra.mxu0 %v3920
  %3934 = vmatprep.subr.mxu0 0.0
  %3935 = vmatpush1.msra.mxu0 %v3921
  %3936 = vmatprep.subr.mxu0 0.0
  %3937 = vmatpush1.msra.mxu0 0.0
  %3938 = vmatprep.subr.mxu0 0.0
  %3939 = vmatpush1.msra.mxu0 0.0
  %3940 = vmatprep.subr.mxu0 0.0
  %3941 = vmatpush1.msra.mxu0 0.0
  %3942 = vmatprep.subr.mxu0 0.0
  %3943 = vmatpush1.msra.mxu0 0.0
  %3944 = vmatprep.subr.mxu0 0.0
  %3945 = vmatpush1.msra.mxu0 0.0
  %3946 = vmatprep.subr.mxu0 0.0
  %3947 = vmatpush1.msra.mxu0 0.0
  %3948 = vmatprep.subr.mxu0 0.0
  %3949 = vmatpush1.msra.mxu0 0.0
  %3950 = vmatprep.subr.mxu0 0.0
  %3951 = vmatpush1.msra.mxu0 0.0
  %3952 = vmatprep.subr.mxu0 0.0
  %3953 = vmatpush1.msra.mxu0 0.0
  %3954 = vmatprep.subr.mxu0 0.0
  %3955 = vmatpush1.msra.mxu0 0.0
  %3956 = vmatprep.subr.mxu0 0.0
  %3957 = vmatpush1.msra.mxu0 0.0
  %3958 = vmatprep.subr.mxu0 0.0
  %3959 = vmatpush1.msra.mxu0 0.0
  %3960 = vmatprep.subr.mxu0 0.0
  %3961 = vmatpush1.msra.mxu0 0.0
  %3962 = vmatprep.subr.mxu0 0.0
  %3963 = vmatpush1.msra.mxu0 0.0
  %3964 = vmatprep.subr.mxu0 0.0
  %3965 = vmatpush1.msra.mxu0 0.0
  %3966 = vmatprep.subr.mxu0 0.0
  %3967 = vmatpush1.msra.mxu0 0.0
  %3968 = vmatprep.subr.mxu0 0.0
  %3969 = vmatpush1.msra.mxu0 0.0
  %3970 = vmatprep.subr.mxu0 0.0
  %3971 = vmatpush1.msra.mxu0 0.0
  %3972 = vmatprep.subr.mxu0 0.0
  %3973 = vmatpush1.msra.mxu0 0.0
  %3974 = vmatprep.subr.mxu0 0.0
  %3975 = vmatpush1.msra.mxu0 0.0
  %3976 = vmatprep.subr.mxu0 0.0
  %3977 = vmatpush1.msra.mxu0 0.0
  %3978 = vmatprep.subr.mxu0 0.0
  %3979 = vmatpush1.msra.mxu0 0.0
  %3980 = vmatprep.subr.mxu0 0.0
  %3981 = vmatpush1.msra.mxu0 0.0
  %3982 = vmatprep.subr.mxu0 0.0
  %3983 = vmatpush1.msra.mxu0 0.0
  %3984 = vmatprep.subr.mxu0 0.0
  %3985 = vmatpush1.msra.mxu0 0.0
  %3986 = vmatprep.subr.mxu0 0.0
  %3987 = vmatpush1.msra.mxu0 0.0
  %3988 = vmatprep.subr.mxu0 0.0
  %3989 = vmatpush1.msra.mxu0 0.0
  %3990 = vmatprep.subr.mxu0 0.0
  %3991 = vmatpush1.msra.mxu0 0.0
  %3992 = vmatprep.mubr.f32.mxu0 0.0
  %3993 = vmatmul.mubr.f32.gmra.mrb[0].mxu0 %v3923
  %v3994 = vpop.f32.mrb[0].mxu0
  %v3995 = vadd.f32 0.0, %v3994
  %v3996 = vpop.f32.mrb[0].mxu0
  %3997 = vmatprep.mubr.f32.mxu0 0.0
  %3998 = vmatmul.mubr.f32.gmra.mrb[0].mxu0 %v3926
  %v3999 = vpop.f32.mrb[0].mxu0
  %v4000 = vadd.f32 0.0, %v3999
  %v4001 = vpop.f32.mrb[0].mxu0
  %4002 = vdwg.mxu0
  %v4003 = vadd.f32 %v3914, %v3995
  %v4004 = vadd.f32 %v3915, %v4000
  %v4005 = vld [vmem:[#allocation2 + $0x78] sm:$0xff]
  %v4006 = vld [vmem:[#allocation2 + $0x80] sm:$0xff]
  %v4007 = vld [vmem:[%s1604] sm:$0xff]
  %v4008 = vld [vmem:[%s1604 + $0x8] sm:$0xff]
  %v4009 = vld [vmem:[%s1604 + $0x10] sm:$0xff]
  %v4010 = vld [vmem:[%s1604 + $0x18] sm:$0xff]
  %v4012 = vsel %vm1048, %v4005, 0
  %v4015 = vsel %vm1048, %v4006, 0
  %4017 = vmatprep.subr.mxu0 0.0
  %4018 = vmatpush1.msra.mxu0 %v4007
  %4019 = vmatprep.subr.mxu0 0.0
  %4020 = vmatpush1.msra.mxu0 %v4008
  %4021 = vmatprep.subr.mxu0 0.0
  %4022 = vmatpush1.msra.mxu0 %v4009
  %4023 = vmatprep.subr.mxu0 0.0
  %4024 = vmatpush1.msra.mxu0 %v4010
  %4025 = vmatprep.subr.mxu0 0.0
  %4026 = vmatpush1.msra.mxu0 0.0
  %4027 = vmatprep.subr.mxu0 0.0
  %4028 = vmatpush1.msra.mxu0 0.0
  %4029 = vmatprep.subr.mxu0 0.0
  %4030 = vmatpush1.msra.mxu0 0.0
  %4031 = vmatprep.subr.mxu0 0.0
  %4032 = vmatpush1.msra.mxu0 0.0
  %4033 = vmatprep.subr.mxu0 0.0
  %4034 = vmatpush1.msra.mxu0 0.0
  %4035 = vmatprep.subr.mxu0 0.0
  %4036 = vmatpush1.msra.mxu0 0.0
  %4037 = vmatprep.subr.mxu0 0.0
  %4038 = vmatpush1.msra.mxu0 0.0
  %4039 = vmatprep.subr.mxu0 0.0
  %4040 = vmatpush1.msra.mxu0 0.0
  %4041 = vmatprep.subr.mxu0 0.0
  %4042 = vmatpush1.msra.mxu0 0.0
  %4043 = vmatprep.subr.mxu0 0.0
  %4044 = vmatpush1.msra.mxu0 0.0
  %4045 = vmatprep.subr.mxu0 0.0
  %4046 = vmatpush1.msra.mxu0 0.0
  %4047 = vmatprep.subr.mxu0 0.0
  %4048 = vmatpush1.msra.mxu0 0.0
  %4049 = vmatprep.subr.mxu0 0.0
  %4050 = vmatpush1.msra.mxu0 0.0
  %4051 = vmatprep.subr.mxu0 0.0
  %4052 = vmatpush1.msra.mxu0 0.0
  %4053 = vmatprep.subr.mxu0 0.0
  %4054 = vmatpush1.msra.mxu0 0.0
  %4055 = vmatprep.subr.mxu0 0.0
  %4056 = vmatpush1.msra.mxu0 0.0
  %4057 = vmatprep.subr.mxu0 0.0
  %4058 = vmatpush1.msra.mxu0 0.0
  %4059 = vmatprep.subr.mxu0 0.0
  %4060 = vmatpush1.msra.mxu0 0.0
  %4061 = vmatprep.subr.mxu0 0.0
  %4062 = vmatpush1.msra.mxu0 0.0
  %4063 = vmatprep.subr.mxu0 0.0
  %4064 = vmatpush1.msra.mxu0 0.0
  %4065 = vmatprep.subr.mxu0 0.0
  %4066 = vmatpush1.msra.mxu0 0.0
  %4067 = vmatprep.subr.mxu0 0.0
  %4068 = vmatpush1.msra.mxu0 0.0
  %4069 = vmatprep.subr.mxu0 0.0
  %4070 = vmatpush1.msra.mxu0 0.0
  %4071 = vmatprep.subr.mxu0 0.0
  %4072 = vmatpush1.msra.mxu0 0.0
  %4073 = vmatprep.subr.mxu0 0.0
  %4074 = vmatpush1.msra.mxu0 0.0
  %4075 = vmatprep.subr.mxu0 0.0
  %4076 = vmatpush1.msra.mxu0 0.0
  %4077 = vmatprep.subr.mxu0 0.0
  %4078 = vmatpush1.msra.mxu0 0.0
  %4079 = vmatprep.subr.mxu0 0.0
  %4080 = vmatpush1.msra.mxu0 0.0
  %4081 = vmatprep.mubr.f32.mxu0 0.0
  %4082 = vmatmul.mubr.f32.gmra.mrb[0].mxu0 %v4012
  %v4083 = vpop.f32.mrb[0].mxu0
  %v4084 = vadd.f32 0.0, %v4083
  %v4085 = vpop.f32.mrb[0].mxu0
  %4086 = vmatprep.mubr.f32.mxu0 0.0
  %4087 = vmatmul.mubr.f32.gmra.mrb[0].mxu0 %v4015
  %v4088 = vpop.f32.mrb[0].mxu0
  %v4089 = vadd.f32 0.0, %v4088
  %v4090 = vpop.f32.mrb[0].mxu0
  %4091 = vdwg.mxu0
  %v4092 = vadd.f32 %v4003, %v4084
  %v4093 = vadd.f32 %v4004, %v4089
  %v4094 = vld [vmem:[#allocation2 + $0x7c] sm:$0xff]
  %v4095 = vld [vmem:[#allocation2 + $0x84] sm:$0xff]
  %v4096 = vld [vmem:[%s1694] sm:$0xff]
  %v4097 = vld [vmem:[%s1694 + $0x8] sm:$0xff]
  %v4098 = vld [vmem:[%s1694 + $0x10] sm:$0xff]
  %v4099 = vld [vmem:[%s1694 + $0x18] sm:$0xff]
  %v4101 = vsel %vm1048, %v4094, 0
  %v4104 = vsel %vm1048, %v4095, 0
  %4106 = vmatprep.subr.mxu0 0.0
  %4107 = vmatpush1.msra.mxu0 %v4096
  %4108 = vmatprep.subr.mxu0 0.0
  %4109 = vmatpush1.msra.mxu0 %v4097
  %4110 = vmatprep.subr.mxu0 0.0
  %4111 = vmatpush1.msra.mxu0 %v4098
  %4112 = vmatprep.subr.mxu0 0.0
  %4113 = vmatpush1.msra.mxu0 %v4099
  %4114 = vmatprep.subr.mxu0 0.0
  %4115 = vmatpush1.msra.mxu0 0.0
  %4116 = vmatprep.subr.mxu0 0.0
  %4117 = vmatpush1.msra.mxu0 0.0
  %4118 = vmatprep.subr.mxu0 0.0
  %4119 = vmatpush1.msra.mxu0 0.0
  %4120 = vmatprep.subr.mxu0 0.0
  %4121 = vmatpush1.msra.mxu0 0.0
  %4122 = vmatprep.subr.mxu0 0.0
  %4123 = vmatpush1.msra.mxu0 0.0
  %4124 = vmatprep.subr.mxu0 0.0
  %4125 = vmatpush1.msra.mxu0 0.0
  %4126 = vmatprep.subr.mxu0 0.0
  %4127 = vmatpush1.msra.mxu0 0.0
  %4128 = vmatprep.subr.mxu0 0.0
  %4129 = vmatpush1.msra.mxu0 0.0
  %4130 = vmatprep.subr.mxu0 0.0
  %4131 = vmatpush1.msra.mxu0 0.0
  %4132 = vmatprep.subr.mxu0 0.0
  %4133 = vmatpush1.msra.mxu0 0.0
  %4134 = vmatprep.subr.mxu0 0.0
  %4135 = vmatpush1.msra.mxu0 0.0
  %4136 = vmatprep.subr.mxu0 0.0
  %4137 = vmatpush1.msra.mxu0 0.0
  %4138 = vmatprep.subr.mxu0 0.0
  %4139 = vmatpush1.msra.mxu0 0.0
  %4140 = vmatprep.subr.mxu0 0.0
  %4141 = vmatpush1.msra.mxu0 0.0
  %4142 = vmatprep.subr.mxu0 0.0
  %4143 = vmatpush1.msra.mxu0 0.0
  %4144 = vmatprep.subr.mxu0 0.0
  %4145 = vmatpush1.msra.mxu0 0.0
  %4146 = vmatprep.subr.mxu0 0.0
  %4147 = vmatpush1.msra.mxu0 0.0
  %4148 = vmatprep.subr.mxu0 0.0
  %4149 = vmatpush1.msra.mxu0 0.0
  %4150 = vmatprep.subr.mxu0 0.0
  %4151 = vmatpush1.msra.mxu0 0.0
  %4152 = vmatprep.subr.mxu0 0.0
  %4153 = vmatpush1.msra.mxu0 0.0
  %4154 = vmatprep.subr.mxu0 0.0
  %4155 = vmatpush1.msra.mxu0 0.0
  %4156 = vmatprep.subr.mxu0 0.0
  %4157 = vmatpush1.msra.mxu0 0.0
  %4158 = vmatprep.subr.mxu0 0.0
  %4159 = vmatpush1.msra.mxu0 0.0
  %4160 = vmatprep.subr.mxu0 0.0
  %4161 = vmatpush1.msra.mxu0 0.0
  %4162 = vmatprep.subr.mxu0 0.0
  %4163 = vmatpush1.msra.mxu0 0.0
  %4164 = vmatprep.subr.mxu0 0.0
  %4165 = vmatpush1.msra.mxu0 0.0
  %4166 = vmatprep.subr.mxu0 0.0
  %4167 = vmatpush1.msra.mxu0 0.0
  %4168 = vmatprep.subr.mxu0 0.0
  %4169 = vmatpush1.msra.mxu0 0.0
  %4170 = vmatprep.mubr.f32.mxu0 0.0
  %4171 = vmatmul.mubr.f32.gmra.mrb[0].mxu0 %v4101
  %v4172 = vpop.f32.mrb[0].mxu0
  %v4173 = vadd.f32 0.0, %v4172
  %v4174 = vpop.f32.mrb[0].mxu0
  %4175 = vmatprep.mubr.f32.mxu0 0.0
  %4176 = vmatmul.mubr.f32.gmra.mrb[0].mxu0 %v4104
  %v4177 = vpop.f32.mrb[0].mxu0
  %v4178 = vadd.f32 0.0, %v4177
  %v4179 = vpop.f32.mrb[0].mxu0
  %4180 = vdwg.mxu0
  %v4181 = vadd.f32 %v4092, %v4173
  %v4182 = vadd.f32 %v4093, %v4178
  %v4183 = vld [vmem:[#allocation2 + $0x80] sm:$0xff]
  %v4184 = vld [vmem:[#allocation2 + $0x88] sm:$0xff]
  %v4185 = vld [vmem:[%s1784] sm:$0xff]
  %v4186 = vld [vmem:[%s1784 + $0x8] sm:$0xff]
  %v4187 = vld [vmem:[%s1784 + $0x10] sm:$0xff]
  %v4188 = vld [vmem:[%s1784 + $0x18] sm:$0xff]
  %v4190 = vsel %vm1048, %v4183, 0
  %v4193 = vsel %vm1048, %v4184, 0
  %4195 = vmatprep.subr.mxu0 0.0
  %4196 = vmatpush1.msra.mxu0 %v4185
  %4197 = vmatprep.subr.mxu0 0.0
  %4198 = vmatpush1.msra.mxu0 %v4186
  %4199 = vmatprep.subr.mxu0 0.0
  %4200 = vmatpush1.msra.mxu0 %v4187
  %4201 = vmatprep.subr.mxu0 0.0
  %4202 = vmatpush1.msra.mxu0 %v4188
  %4203 = vmatprep.subr.mxu0 0.0
  %4204 = vmatpush1.msra.mxu0 0.0
  %4205 = vmatprep.subr.mxu0 0.0
  %4206 = vmatpush1.msra.mxu0 0.0
  %4207 = vmatprep.subr.mxu0 0.0
  %4208 = vmatpush1.msra.mxu0 0.0
  %4209 = vmatprep.subr.mxu0 0.0
  %4210 = vmatpush1.msra.mxu0 0.0
  %4211 = vmatprep.subr.mxu0 0.0
  %4212 = vmatpush1.msra.mxu0 0.0
  %4213 = vmatprep.subr.mxu0 0.0
  %4214 = vmatpush1.msra.mxu0 0.0
  %4215 = vmatprep.subr.mxu0 0.0
  %4216 = vmatpush1.msra.mxu0 0.0
  %4217 = vmatprep.subr.mxu0 0.0
  %4218 = vmatpush1.msra.mxu0 0.0
  %4219 = vmatprep.subr.mxu0 0.0
  %4220 = vmatpush1.msra.mxu0 0.0
  %4221 = vmatprep.subr.mxu0 0.0
  %4222 = vmatpush1.msra.mxu0 0.0
  %4223 = vmatprep.subr.mxu0 0.0
  %4224 = vmatpush1.msra.mxu0 0.0
  %4225 = vmatprep.subr.mxu0 0.0
  %4226 = vmatpush1.msra.mxu0 0.0
  %4227 = vmatprep.subr.mxu0 0.0
  %4228 = vmatpush1.msra.mxu0 0.0
  %4229 = vmatprep.subr.mxu0 0.0
  %4230 = vmatpush1.msra.mxu0 0.0
  %4231 = vmatprep.subr.mxu0 0.0
  %4232 = vmatpush1.msra.mxu0 0.0
  %4233 = vmatprep.subr.mxu0 0.0
  %4234 = vmatpush1.msra.mxu0 0.0
  %4235 = vmatprep.subr.mxu0 0.0
  %4236 = vmatpush1.msra.mxu0 0.0
  %4237 = vmatprep.subr.mxu0 0.0
  %4238 = vmatpush1.msra.mxu0 0.0
  %4239 = vmatprep.subr.mxu0 0.0
  %4240 = vmatpush1.msra.mxu0 0.0
  %4241 = vmatprep.subr.mxu0 0.0
  %4242 = vmatpush1.msra.mxu0 0.0
  %4243 = vmatprep.subr.mxu0 0.0
  %4244 = vmatpush1.msra.mxu0 0.0
  %4245 = vmatprep.subr.mxu0 0.0
  %4246 = vmatpush1.msra.mxu0 0.0
  %4247 = vmatprep.subr.mxu0 0.0
  %4248 = vmatpush1.msra.mxu0 0.0
  %4249 = vmatprep.subr.mxu0 0.0
  %4250 = vmatpush1.msra.mxu0 0.0
  %4251 = vmatprep.subr.mxu0 0.0
  %4252 = vmatpush1.msra.mxu0 0.0
  %4253 = vmatprep.subr.mxu0 0.0
  %4254 = vmatpush1.msra.mxu0 0.0
  %4255 = vmatprep.subr.mxu0 0.0
  %4256 = vmatpush1.msra.mxu0 0.0
  %4257 = vmatprep.subr.mxu0 0.0
  %4258 = vmatpush1.msra.mxu0 0.0
  %4259 = vmatprep.mubr.f32.mxu0 0.0
  %4260 = vmatmul.mubr.f32.gmra.mrb[0].mxu0 %v4190
  %v4261 = vpop.f32.mrb[0].mxu0
  %v4262 = vadd.f32 0.0, %v4261
  %v4263 = vpop.f32.mrb[0].mxu0
  %4264 = vmatprep.mubr.f32.mxu0 0.0
  %4265 = vmatmul.mubr.f32.gmra.mrb[0].mxu0 %v4193
  %v4266 = vpop.f32.mrb[0].mxu0
  %v4267 = vadd.f32 0.0, %v4266
  %v4268 = vpop.f32.mrb[0].mxu0
  %4269 = vdwg.mxu0
  %v4270 = vadd.f32 %v4181, %v4262
  %v4271 = vadd.f32 %v4182, %v4267
  %s4272 = scalar_lea.vmem [#allocation3], 48
  %4273 = vst.msk [vmem:[%s4272] sm:$0xff] %vm1872, %v4270
  %4274 = vst.msk [vmem:[%s4272 + $0x8] sm:$0xff] %vm1872, %v4271
  %v4275 = vld [vmem:[#allocation3] sm:$0x3]
  %v4276 = vld [vmem:[#allocation3 + $0x4] sm:$0x3]
  %v4277 = vld [vmem:[%s2672] sm:$0x3]
  %v4278 = vld [vmem:[%s2672 + $0x4] sm:$0x3]
  %v4279 = vmax.f32 %v4275, %v4276
  %v4280 = vmax.f32 %v4277, %v4278
  %v4281 = vmax.f32 %v4279, %v4280
  %v4282 = vld [vmem:[%s4] sm:$0x1]
  %v4284 = vlaneseq
  %v4285 = vshrl.u32 %v4284, 7
  %v4286 = vsub.s32 0, %v4285
  %v4287 = vrot.slane %v4282, %v4286
  %v4289 = vadd.f32 %v4281, %v4287
  %v4290 = vmax.f32 %v4289, 0.0
  %v4291 = vld [vmem:[%s5] sm:$0xff]
  %v4292 = vld [vmem:[%s5 + $0x8] sm:$0xff]
  %v4293 = vld [vmem:[%s5 + $0x10] sm:$0xff]
  %v4294 = vld [vmem:[%s5 + $0x18] sm:$0xff]
  %v4295 = vld [vmem:[%s5 + $0x20] sm:$0xff]
  %v4296 = vld [vmem:[%s5 + $0x28] sm:$0xff]
  %v4297 = vld [vmem:[%s5 + $0x30] sm:$0xff]
  %v4298 = vld [vmem:[%s5 + $0x38] sm:$0xff]
  %v4299 = vld [vmem:[#allocation3 + $0x8] sm:$0x3]
  %v4300 = vld [vmem:[#allocation3 + $0xc] sm:$0x3]
  %v4301 = vld [vmem:[%s2672 + $0x8] sm:$0x3]
  %v4302 = vld [vmem:[%s2672 + $0xc] sm:$0x3]
  %v4303 = vmax.f32 %v4299, %v4300
  %v4304 = vmax.f32 %v4301, %v4302
  %v4305 = vmax.f32 %v4303, %v4304
  %v4306 = vadd.f32 %v4305, %v4287
  %v4307 = vmax.f32 %v4306, 0.0
  %s4308 = scalar_lea.vmem %s5, 64
  %v4309 = vld [vmem:[%s4308] sm:$0xff]
  %v4310 = vld [vmem:[%s4308 + $0x8] sm:$0xff]
  %v4311 = vld [vmem:[%s4308 + $0x10] sm:$0xff]
  %v4312 = vld [vmem:[%s4308 + $0x18] sm:$0xff]
  %v4313 = vld [vmem:[%s4308 + $0x20] sm:$0xff]
  %v4314 = vld [vmem:[%s4308 + $0x28] sm:$0xff]
  %v4315 = vld [vmem:[%s4308 + $0x30] sm:$0xff]
  %v4316 = vld [vmem:[%s4308 + $0x38] sm:$0xff]
  %v4318 = vsel %vm1872, %v4307, 0
  %4320 = vmatprep.subr.mxu0 0.0
  %4321 = vmatpush1.msra.mxu0 %v4309
  %4322 = vmatprep.subr.mxu0 0.0
  %4323 = vmatpush1.msra.mxu0 %v4310
  %4324 = vmatprep.subr.mxu0 0.0
  %4325 = vmatpush1.msra.mxu0 %v4311
  %4326 = vmatprep.subr.mxu0 0.0
  %4327 = vmatpush1.msra.mxu0 %v4312
  %4328 = vmatprep.subr.mxu0 0.0
  %4329 = vmatpush1.msra.mxu0 %v4313
  %4330 = vmatprep.subr.mxu0 0.0
  %4331 = vmatpush1.msra.mxu0 %v4314
  %4332 = vmatprep.subr.mxu0 0.0
  %4333 = vmatpush1.msra.mxu0 %v4315
  %4334 = vmatprep.subr.mxu0 0.0
  %4335 = vmatpush1.msra.mxu0 %v4316
  %4336 = vmatprep.subr.mxu0 0.0
  %4337 = vmatpush1.msra.mxu0 0.0
  %4338 = vmatprep.subr.mxu0 0.0
  %4339 = vmatpush1.msra.mxu0 0.0
  %4340 = vmatprep.subr.mxu0 0.0
  %4341 = vmatpush1.msra.mxu0 0.0
  %4342 = vmatprep.subr.mxu0 0.0
  %4343 = vmatpush1.msra.mxu0 0.0
  %4344 = vmatprep.subr.mxu0 0.0
  %4345 = vmatpush1.msra.mxu0 0.0
  %4346 = vmatprep.subr.mxu0 0.0
  %4347 = vmatpush1.msra.mxu0 0.0
  %4348 = vmatprep.subr.mxu0 0.0
  %4349 = vmatpush1.msra.mxu0 0.0
  %4350 = vmatprep.subr.mxu0 0.0
  %4351 = vmatpush1.msra.mxu0 0.0
  %4352 = vmatprep.subr.mxu0 0.0
  %4353 = vmatpush1.msra.mxu0 0.0
  %4354 = vmatprep.subr.mxu0 0.0
  %4355 = vmatpush1.msra.mxu0 0.0
  %4356 = vmatprep.subr.mxu0 0.0
  %4357 = vmatpush1.msra.mxu0 0.0
  %4358 = vmatprep.subr.mxu0 0.0
  %4359 = vmatpush1.msra.mxu0 0.0
  %4360 = vmatprep.subr.mxu0 0.0
  %4361 = vmatpush1.msra.mxu0 0.0
  %4362 = vmatprep.subr.mxu0 0.0
  %4363 = vmatpush1.msra.mxu0 0.0
  %4364 = vmatprep.subr.mxu0 0.0
  %4365 = vmatpush1.msra.mxu0 0.0
  %4366 = vmatprep.subr.mxu0 0.0
  %4367 = vmatpush1.msra.mxu0 0.0
  %4368 = vmatprep.subr.mxu0 0.0
  %4369 = vmatpush1.msra.mxu0 0.0
  %4370 = vmatprep.subr.mxu0 0.0
  %4371 = vmatpush1.msra.mxu0 0.0
  %4372 = vmatprep.subr.mxu0 0.0
  %4373 = vmatpush1.msra.mxu0 0.0
  %4374 = vmatprep.subr.mxu0 0.0
  %4375 = vmatpush1.msra.mxu0 0.0
  %4376 = vmatprep.subr.mxu0 0.0
  %4377 = vmatpush1.msra.mxu0 0.0
  %4378 = vmatprep.subr.mxu0 0.0
  %4379 = vmatpush1.msra.mxu0 0.0
  %4380 = vmatprep.subr.mxu0 0.0
  %4381 = vmatpush1.msra.mxu0 0.0
  %4382 = vmatprep.subr.mxu0 0.0
  %4383 = vmatpush1.msra.mxu0 0.0
  %4384 = vmatprep.mubr.f32.mxu0 0.0
  %4385 = vmatmul.mubr.f32.gmra.mrb[0].mxu0 %v4318
  %v4386 = vpop.f32.mrb[0].mxu0
  %v4387 = vadd.f32 0.0, %v4386
  %v4388 = vpop.f32.mrb[0].mxu0
  %4389 = vdwg.mxu0
  %v4391 = vsel %vm1872, %v4290, 0
  %4393 = vmatprep.subr.mxu0 0.0
  %4394 = vmatpush1.msra.mxu0 %v4291
  %4395 = vmatprep.subr.mxu0 0.0
  %4396 = vmatpush1.msra.mxu0 %v4292
  %4397 = vmatprep.subr.mxu0 0.0
  %4398 = vmatpush1.msra.mxu0 %v4293
  %4399 = vmatprep.subr.mxu0 0.0
  %4400 = vmatpush1.msra.mxu0 %v4294
  %4401 = vmatprep.subr.mxu0 0.0
  %4402 = vmatpush1.msra.mxu0 %v4295
  %4403 = vmatprep.subr.mxu0 0.0
  %4404 = vmatpush1.msra.mxu0 %v4296
  %4405 = vmatprep.subr.mxu0 0.0
  %4406 = vmatpush1.msra.mxu0 %v4297
  %4407 = vmatprep.subr.mxu0 0.0
  %4408 = vmatpush1.msra.mxu0 %v4298
  %4409 = vmatprep.subr.mxu0 0.0
  %4410 = vmatpush1.msra.mxu0 0.0
  %4411 = vmatprep.subr.mxu0 0.0
  %4412 = vmatpush1.msra.mxu0 0.0
  %4413 = vmatprep.subr.mxu0 0.0
  %4414 = vmatpush1.msra.mxu0 0.0
  %4415 = vmatprep.subr.mxu0 0.0
  %4416 = vmatpush1.msra.mxu0 0.0
  %4417 = vmatprep.subr.mxu0 0.0
  %4418 = vmatpush1.msra.mxu0 0.0
  %4419 = vmatprep.subr.mxu0 0.0
  %4420 = vmatpush1.msra.mxu0 0.0
  %4421 = vmatprep.subr.mxu0 0.0
  %4422 = vmatpush1.msra.mxu0 0.0
  %4423 = vmatprep.subr.mxu0 0.0
  %4424 = vmatpush1.msra.mxu0 0.0
  %4425 = vmatprep.subr.mxu0 0.0
  %4426 = vmatpush1.msra.mxu0 0.0
  %4427 = vmatprep.subr.mxu0 0.0
  %4428 = vmatpush1.msra.mxu0 0.0
  %4429 = vmatprep.subr.mxu0 0.0
  %4430 = vmatpush1.msra.mxu0 0.0
  %4431 = vmatprep.subr.mxu0 0.0
  %4432 = vmatpush1.msra.mxu0 0.0
  %4433 = vmatprep.subr.mxu0 0.0
  %4434 = vmatpush1.msra.mxu0 0.0
  %4435 = vmatprep.subr.mxu0 0.0
  %4436 = vmatpush1.msra.mxu0 0.0
  %4437 = vmatprep.subr.mxu0 0.0
  %4438 = vmatpush1.msra.mxu0 0.0
  %4439 = vmatprep.subr.mxu0 0.0
  %4440 = vmatpush1.msra.mxu0 0.0
  %4441 = vmatprep.subr.mxu0 0.0
  %4442 = vmatpush1.msra.mxu0 0.0
  %4443 = vmatprep.subr.mxu0 0.0
  %4444 = vmatpush1.msra.mxu0 0.0
  %4445 = vmatprep.subr.mxu0 0.0
  %4446 = vmatpush1.msra.mxu0 0.0
  %4447 = vmatprep.subr.mxu0 0.0
  %4448 = vmatpush1.msra.mxu0 0.0
  %4449 = vmatprep.subr.mxu0 0.0
  %4450 = vmatpush1.msra.mxu0 0.0
  %4451 = vmatprep.subr.mxu0 0.0
  %4452 = vmatpush1.msra.mxu0 0.0
  %4453 = vmatprep.subr.mxu0 0.0
  %4454 = vmatpush1.msra.mxu0 0.0
  %4455 = vmatprep.subr.mxu0 0.0
  %4456 = vmatpush1.msra.mxu0 0.0
  %4457 = vmatprep.mubr.f32.mxu0 0.0
  %4458 = vmatmul.mubr.f32.gmra.mrb[0].mxu0 %v4391
  %v4459 = vpop.f32.mrb[0].mxu0
  %v4460 = vadd.f32 %v4387, %v4459
  %v4461 = vpop.f32.mrb[0].mxu0
  %4462 = vdwg.mxu0
  %v4463 = vld [vmem:[%s3472] sm:$0x3]
  %v4464 = vld [vmem:[%s3472 + $0x4] sm:$0x3]
  %v4465 = vld [vmem:[%s4272] sm:$0x3]
  %v4466 = vld [vmem:[%s4272 + $0x4] sm:$0x3]
  %v4467 = vmax.f32 %v4463, %v4464
  %v4468 = vmax.f32 %v4465, %v4466
  %v4469 = vmax.f32 %v4467, %v4468
  %v4470 = vadd.f32 %v4469, %v4287
  %v4471 = vmax.f32 %v4470, 0.0
  %s4472 = scalar_lea.vmem %s5, 128
  %v4473 = vld [vmem:[%s4472] sm:$0xff]
  %v4474 = vld [vmem:[%s4472 + $0x8] sm:$0xff]
  %v4475 = vld [vmem:[%s4472 + $0x10] sm:$0xff]
  %v4476 = vld [vmem:[%s4472 + $0x18] sm:$0xff]
  %v4477 = vld [vmem:[%s4472 + $0x20] sm:$0xff]
  %v4478 = vld [vmem:[%s4472 + $0x28] sm:$0xff]
  %v4479 = vld [vmem:[%s4472 + $0x30] sm:$0xff]
  %v4480 = vld [vmem:[%s4472 + $0x38] sm:$0xff]
  %v4482 = vsel %vm1872, %v4471, 0
  %4484 = vmatprep.subr.mxu0 0.0
  %4485 = vmatpush1.msra.mxu0 %v4473
  %4486 = vmatprep.subr.mxu0 0.0
  %4487 = vmatpush1.msra.mxu0 %v4474
  %4488 = vmatprep.subr.mxu0 0.0
  %4489 = vmatpush1.msra.mxu0 %v4475
  %4490 = vmatprep.subr.mxu0 0.0
  %4491 = vmatpush1.msra.mxu0 %v4476
  %4492 = vmatprep.subr.mxu0 0.0
  %4493 = vmatpush1.msra.mxu0 %v4477
  %4494 = vmatprep.subr.mxu0 0.0
  %4495 = vmatpush1.msra.mxu0 %v4478
  %4496 = vmatprep.subr.mxu0 0.0
  %4497 = vmatpush1.msra.mxu0 %v4479
  %4498 = vmatprep.subr.mxu0 0.0
  %4499 = vmatpush1.msra.mxu0 %v4480
  %4500 = vmatprep.subr.mxu0 0.0
  %4501 = vmatpush1.msra.mxu0 0.0
  %4502 = vmatprep.subr.mxu0 0.0
  %4503 = vmatpush1.msra.mxu0 0.0
  %4504 = vmatprep.subr.mxu0 0.0
  %4505 = vmatpush1.msra.mxu0 0.0
  %4506 = vmatprep.subr.mxu0 0.0
  %4507 = vmatpush1.msra.mxu0 0.0
  %4508 = vmatprep.subr.mxu0 0.0
  %4509 = vmatpush1.msra.mxu0 0.0
  %4510 = vmatprep.subr.mxu0 0.0
  %4511 = vmatpush1.msra.mxu0 0.0
  %4512 = vmatprep.subr.mxu0 0.0
  %4513 = vmatpush1.msra.mxu0 0.0
  %4514 = vmatprep.subr.mxu0 0.0
  %4515 = vmatpush1.msra.mxu0 0.0
  %4516 = vmatprep.subr.mxu0 0.0
  %4517 = vmatpush1.msra.mxu0 0.0
  %4518 = vmatprep.subr.mxu0 0.0
  %4519 = vmatpush1.msra.mxu0 0.0
  %4520 = vmatprep.subr.mxu0 0.0
  %4521 = vmatpush1.msra.mxu0 0.0
  %4522 = vmatprep.subr.mxu0 0.0
  %4523 = vmatpush1.msra.mxu0 0.0
  %4524 = vmatprep.subr.mxu0 0.0
  %4525 = vmatpush1.msra.mxu0 0.0
  %4526 = vmatprep.subr.mxu0 0.0
  %4527 = vmatpush1.msra.mxu0 0.0
  %4528 = vmatprep.subr.mxu0 0.0
  %4529 = vmatpush1.msra.mxu0 0.0
  %4530 = vmatprep.subr.mxu0 0.0
  %4531 = vmatpush1.msra.mxu0 0.0
  %4532 = vmatprep.subr.mxu0 0.0
  %4533 = vmatpush1.msra.mxu0 0.0
  %4534 = vmatprep.subr.mxu0 0.0
  %4535 = vmatpush1.msra.mxu0 0.0
  %4536 = vmatprep.subr.mxu0 0.0
  %4537 = vmatpush1.msra.mxu0 0.0
  %4538 = vmatprep.subr.mxu0 0.0
  %4539 = vmatpush1.msra.mxu0 0.0
  %4540 = vmatprep.subr.mxu0 0.0
  %4541 = vmatpush1.msra.mxu0 0.0
  %4542 = vmatprep.subr.mxu0 0.0
  %4543 = vmatpush1.msra.mxu0 0.0
  %4544 = vmatprep.subr.mxu0 0.0
  %4545 = vmatpush1.msra.mxu0 0.0
  %4546 = vmatprep.subr.mxu0 0.0
  %4547 = vmatpush1.msra.mxu0 0.0
  %4548 = vmatprep.mubr.f32.mxu0 0.0
  %4549 = vmatmul.mubr.f32.gmra.mrb[0].mxu0 %v4482
  %v4550 = vpop.f32.mrb[0].mxu0
  %v4551 = vadd.f32 0.0, %v4550
  %v4552 = vpop.f32.mrb[0].mxu0
  %4553 = vdwg.mxu0
  %v4554 = vadd.f32 %v4460, %v4551
  %v4555 = vld [vmem:[%s3472 + $0x8] sm:$0x3]
  %v4556 = vld [vmem:[%s3472 + $0xc] sm:$0x3]
  %v4557 = vld [vmem:[%s4272 + $0x8] sm:$0x3]
  %v4558 = vld [vmem:[%s4272 + $0xc] sm:$0x3]
  %v4559 = vmax.f32 %v4555, %v4556
  %v4560 = vmax.f32 %v4557, %v4558
  %v4561 = vmax.f32 %v4559, %v4560
  %v4562 = vadd.f32 %v4561, %v4287
  %v4563 = vmax.f32 %v4562, 0.0
  %s4564 = scalar_lea.vmem %s5, 192
  %v4565 = vld [vmem:[%s4564] sm:$0xff]
  %v4566 = vld [vmem:[%s4564 + $0x8] sm:$0xff]
  %v4567 = vld [vmem:[%s4564 + $0x10] sm:$0xff]
  %v4568 = vld [vmem:[%s4564 + $0x18] sm:$0xff]
  %v4569 = vld [vmem:[%s4564 + $0x20] sm:$0xff]
  %v4570 = vld [vmem:[%s4564 + $0x28] sm:$0xff]
  %v4571 = vld [vmem:[%s4564 + $0x30] sm:$0xff]
  %v4572 = vld [vmem:[%s4564 + $0x38] sm:$0xff]
  %v4574 = vsel %vm1872, %v4563, 0
  %4576 = vmatprep.subr.mxu0 0.0
  %4577 = vmatpush1.msra.mxu0 %v4565
  %4578 = vmatprep.subr.mxu0 0.0
  %4579 = vmatpush1.msra.mxu0 %v4566
  %4580 = vmatprep.subr.mxu0 0.0
  %4581 = vmatpush1.msra.mxu0 %v4567
  %4582 = vmatprep.subr.mxu0 0.0
  %4583 = vmatpush1.msra.mxu0 %v4568
  %4584 = vmatprep.subr.mxu0 0.0
  %4585 = vmatpush1.msra.mxu0 %v4569
  %4586 = vmatprep.subr.mxu0 0.0
  %4587 = vmatpush1.msra.mxu0 %v4570
  %4588 = vmatprep.subr.mxu0 0.0
  %4589 = vmatpush1.msra.mxu0 %v4571
  %4590 = vmatprep.subr.mxu0 0.0
  %4591 = vmatpush1.msra.mxu0 %v4572
  %4592 = vmatprep.subr.mxu0 0.0
  %4593 = vmatpush1.msra.mxu0 0.0
  %4594 = vmatprep.subr.mxu0 0.0
  %4595 = vmatpush1.msra.mxu0 0.0
  %4596 = vmatprep.subr.mxu0 0.0
  %4597 = vmatpush1.msra.mxu0 0.0
  %4598 = vmatprep.subr.mxu0 0.0
  %4599 = vmatpush1.msra.mxu0 0.0
  %4600 = vmatprep.subr.mxu0 0.0
  %4601 = vmatpush1.msra.mxu0 0.0
  %4602 = vmatprep.subr.mxu0 0.0
  %4603 = vmatpush1.msra.mxu0 0.0
  %4604 = vmatprep.subr.mxu0 0.0
  %4605 = vmatpush1.msra.mxu0 0.0
  %4606 = vmatprep.subr.mxu0 0.0
  %4607 = vmatpush1.msra.mxu0 0.0
  %4608 = vmatprep.subr.mxu0 0.0
  %4609 = vmatpush1.msra.mxu0 0.0
  %4610 = vmatprep.subr.mxu0 0.0
  %4611 = vmatpush1.msra.mxu0 0.0
  %4612 = vmatprep.subr.mxu0 0.0
  %4613 = vmatpush1.msra.mxu0 0.0
  %4614 = vmatprep.subr.mxu0 0.0
  %4615 = vmatpush1.msra.mxu0 0.0
  %4616 = vmatprep.subr.mxu0 0.0
  %4617 = vmatpush1.msra.mxu0 0.0
  %4618 = vmatprep.subr.mxu0 0.0
  %4619 = vmatpush1.msra.mxu0 0.0
  %4620 = vmatprep.subr.mxu0 0.0
  %4621 = vmatpush1.msra.mxu0 0.0
  %4622 = vmatprep.subr.mxu0 0.0
  %4623 = vmatpush1.msra.mxu0 0.0
  %4624 = vmatprep.subr.mxu0 0.0
  %4625 = vmatpush1.msra.mxu0 0.0
  %4626 = vmatprep.subr.mxu0 0.0
  %4627 = vmatpush1.msra.mxu0 0.0
  %4628 = vmatprep.subr.mxu0 0.0
  %4629 = vmatpush1.msra.mxu0 0.0
  %4630 = vmatprep.subr.mxu0 0.0
  %4631 = vmatpush1.msra.mxu0 0.0
  %4632 = vmatprep.subr.mxu0 0.0
  %4633 = vmatpush1.msra.mxu0 0.0
  %4634 = vmatprep.subr.mxu0 0.0
  %4635 = vmatpush1.msra.mxu0 0.0
  %4636 = vmatprep.subr.mxu0 0.0
  %4637 = vmatpush1.msra.mxu0 0.0
  %4638 = vmatprep.subr.mxu0 0.0
  %4639 = vmatpush1.msra.mxu0 0.0
  %4640 = vmatprep.mubr.f32.mxu0 0.0
  %4641 = vmatmul.mubr.f32.gmra.mrb[0].mxu0 %v4574
  %v4642 = vpop.f32.mrb[0].mxu0
  %v4643 = vadd.f32 0.0, %v4642
  %v4644 = vpop.f32.mrb[0].mxu0
  %4645 = vdwg.mxu0
  %v4646 = vadd.f32 %v4554, %v4643
  %v4647 = vld [vmem:[#allocation3 + $0x2] sm:$0x3]
  %v4648 = vld [vmem:[#allocation3 + $0x6] sm:$0x3]
  %v4649 = vld [vmem:[%s2672 + $0x2] sm:$0x3]
  %v4650 = vld [vmem:[%s2672 + $0x6] sm:$0x3]
  %v4651 = vmax.f32 %v4647, %v4648
  %v4652 = vmax.f32 %v4649, %v4650
  %v4653 = vmax.f32 %v4651, %v4652
  %v4654 = vadd.f32 %v4653, %v4287
  %v4655 = vmax.f32 %v4654, 0.0
  %s4656 = scalar_lea.vmem %s5, 256
  %v4657 = vld [vmem:[%s4656] sm:$0xff]
  %v4658 = vld [vmem:[%s4656 + $0x8] sm:$0xff]
  %v4659 = vld [vmem:[%s4656 + $0x10] sm:$0xff]
  %v4660 = vld [vmem:[%s4656 + $0x18] sm:$0xff]
  %v4661 = vld [vmem:[%s4656 + $0x20] sm:$0xff]
  %v4662 = vld [vmem:[%s4656 + $0x28] sm:$0xff]
  %v4663 = vld [vmem:[%s4656 + $0x30] sm:$0xff]
  %v4664 = vld [vmem:[%s4656 + $0x38] sm:$0xff]
  %v4666 = vsel %vm1872, %v4655, 0
  %4668 = vmatprep.subr.mxu0 0.0
  %4669 = vmatpush1.msra.mxu0 %v4657
  %4670 = vmatprep.subr.mxu0 0.0
  %4671 = vmatpush1.msra.mxu0 %v4658
  %4672 = vmatprep.subr.mxu0 0.0
  %4673 = vmatpush1.msra.mxu0 %v4659
  %4674 = vmatprep.subr.mxu0 0.0
  %4675 = vmatpush1.msra.mxu0 %v4660
  %4676 = vmatprep.subr.mxu0 0.0
  %4677 = vmatpush1.msra.mxu0 %v4661
  %4678 = vmatprep.subr.mxu0 0.0
  %4679 = vmatpush1.msra.mxu0 %v4662
  %4680 = vmatprep.subr.mxu0 0.0
  %4681 = vmatpush1.msra.mxu0 %v4663
  %4682 = vmatprep.subr.mxu0 0.0
  %4683 = vmatpush1.msra.mxu0 %v4664
  %4684 = vmatprep.subr.mxu0 0.0
  %4685 = vmatpush1.msra.mxu0 0.0
  %4686 = vmatprep.subr.mxu0 0.0
  %4687 = vmatpush1.msra.mxu0 0.0
  %4688 = vmatprep.subr.mxu0 0.0
  %4689 = vmatpush1.msra.mxu0 0.0
  %4690 = vmatprep.subr.mxu0 0.0
  %4691 = vmatpush1.msra.mxu0 0.0
  %4692 = vmatprep.subr.mxu0 0.0
  %4693 = vmatpush1.msra.mxu0 0.0
  %4694 = vmatprep.subr.mxu0 0.0
  %4695 = vmatpush1.msra.mxu0 0.0
  %4696 = vmatprep.subr.mxu0 0.0
  %4697 = vmatpush1.msra.mxu0 0.0
  %4698 = vmatprep.subr.mxu0 0.0
  %4699 = vmatpush1.msra.mxu0 0.0
  %4700 = vmatprep.subr.mxu0 0.0
  %4701 = vmatpush1.msra.mxu0 0.0
  %4702 = vmatprep.subr.mxu0 0.0
  %4703 = vmatpush1.msra.mxu0 0.0
  %4704 = vmatprep.subr.mxu0 0.0
  %4705 = vmatpush1.msra.mxu0 0.0
  %4706 = vmatprep.subr.mxu0 0.0
  %4707 = vmatpush1.msra.mxu0 0.0
  %4708 = vmatprep.subr.mxu0 0.0
  %4709 = vmatpush1.msra.mxu0 0.0
  %4710 = vmatprep.subr.mxu0 0.0
  %4711 = vmatpush1.msra.mxu0 0.0
  %4712 = vmatprep.subr.mxu0 0.0
  %4713 = vmatpush1.msra.mxu0 0.0
  %4714 = vmatprep.subr.mxu0 0.0
  %4715 = vmatpush1.msra.mxu0 0.0
  %4716 = vmatprep.subr.mxu0 0.0
  %4717 = vmatpush1.msra.mxu0 0.0
  %4718 = vmatprep.subr.mxu0 0.0
  %4719 = vmatpush1.msra.mxu0 0.0
  %4720 = vmatprep.subr.mxu0 0.0
  %4721 = vmatpush1.msra.mxu0 0.0
  %4722 = vmatprep.subr.mxu0 0.0
  %4723 = vmatpush1.msra.mxu0 0.0
  %4724 = vmatprep.subr.mxu0 0.0
  %4725 = vmatpush1.msra.mxu0 0.0
  %4726 = vmatprep.subr.mxu0 0.0
  %4727 = vmatpush1.msra.mxu0 0.0
  %4728 = vmatprep.subr.mxu0 0.0
  %4729 = vmatpush1.msra.mxu0 0.0
  %4730 = vmatprep.subr.mxu0 0.0
  %4731 = vmatpush1.msra.mxu0 0.0
  %4732 = vmatprep.mubr.f32.mxu0 0.0
  %4733 = vmatmul.mubr.f32.gmra.mrb[0].mxu0 %v4666
  %v4734 = vpop.f32.mrb[0].mxu0
  %v4735 = vadd.f32 0.0, %v4734
  %v4736 = vpop.f32.mrb[0].mxu0
  %4737 = vdwg.mxu0
  %v4738 = vadd.f32 %v4646, %v4735
  %v4739 = vld [vmem:[#allocation3 + $0xa] sm:$0x3]
  %v4740 = vld [vmem:[#allocation3 + $0xe] sm:$0x3]
  %v4741 = vld [vmem:[%s2672 + $0xa] sm:$0x3]
  %v4742 = vld [vmem:[%s2672 + $0xe] sm:$0x3]
  %v4743 = vmax.f32 %v4739, %v4740
  %v4744 = vmax.f32 %v4741, %v4742
  %v4745 = vmax.f32 %v4743, %v4744
  %v4746 = vadd.f32 %v4745, %v4287
  %v4747 = vmax.f32 %v4746, 0.0
  %s4748 = scalar_lea.vmem %s5, 320
  %v4749 = vld [vmem:[%s4748] sm:$0xff]
  %v4750 = vld [vmem:[%s4748 + $0x8] sm:$0xff]
  %v4751 = vld [vmem:[%s4748 + $0x10] sm:$0xff]
  %v4752 = vld [vmem:[%s4748 + $0x18] sm:$0xff]
  %v4753 = vld [vmem:[%s4748 + $0x20] sm:$0xff]
  %v4754 = vld [vmem:[%s4748 + $0x28] sm:$0xff]
  %v4755 = vld [vmem:[%s4748 + $0x30] sm:$0xff]
  %v4756 = vld [vmem:[%s4748 + $0x38] sm:$0xff]
  %v4758 = vsel %vm1872, %v4747, 0
  %4760 = vmatprep.subr.mxu0 0.0
  %4761 = vmatpush1.msra.mxu0 %v4749
  %4762 = vmatprep.subr.mxu0 0.0
  %4763 = vmatpush1.msra.mxu0 %v4750
  %4764 = vmatprep.subr.mxu0 0.0
  %4765 = vmatpush1.msra.mxu0 %v4751
  %4766 = vmatprep.subr.mxu0 0.0
  %4767 = vmatpush1.msra.mxu0 %v4752
  %4768 = vmatprep.subr.mxu0 0.0
  %4769 = vmatpush1.msra.mxu0 %v4753
  %4770 = vmatprep.subr.mxu0 0.0
  %4771 = vmatpush1.msra.mxu0 %v4754
  %4772 = vmatprep.subr.mxu0 0.0
  %4773 = vmatpush1.msra.mxu0 %v4755
  %4774 = vmatprep.subr.mxu0 0.0
  %4775 = vmatpush1.msra.mxu0 %v4756
  %4776 = vmatprep.subr.mxu0 0.0
  %4777 = vmatpush1.msra.mxu0 0.0
  %4778 = vmatprep.subr.mxu0 0.0
  %4779 = vmatpush1.msra.mxu0 0.0
  %4780 = vmatprep.subr.mxu0 0.0
  %4781 = vmatpush1.msra.mxu0 0.0
  %4782 = vmatprep.subr.mxu0 0.0
  %4783 = vmatpush1.msra.mxu0 0.0
  %4784 = vmatprep.subr.mxu0 0.0
  %4785 = vmatpush1.msra.mxu0 0.0
  %4786 = vmatprep.subr.mxu0 0.0
  %4787 = vmatpush1.msra.mxu0 0.0
  %4788 = vmatprep.subr.mxu0 0.0
  %4789 = vmatpush1.msra.mxu0 0.0
  %4790 = vmatprep.subr.mxu0 0.0
  %4791 = vmatpush1.msra.mxu0 0.0
  %4792 = vmatprep.subr.mxu0 0.0
  %4793 = vmatpush1.msra.mxu0 0.0
  %4794 = vmatprep.subr.mxu0 0.0
  %4795 = vmatpush1.msra.mxu0 0.0
  %4796 = vmatprep.subr.mxu0 0.0
  %4797 = vmatpush1.msra.mxu0 0.0
  %4798 = vmatprep.subr.mxu0 0.0
  %4799 = vmatpush1.msra.mxu0 0.0
  %4800 = vmatprep.subr.mxu0 0.0
  %4801 = vmatpush1.msra.mxu0 0.0
  %4802 = vmatprep.subr.mxu0 0.0
  %4803 = vmatpush1.msra.mxu0 0.0
  %4804 = vmatprep.subr.mxu0 0.0
  %4805 = vmatpush1.msra.mxu0 0.0
  %4806 = vmatprep.subr.mxu0 0.0
  %4807 = vmatpush1.msra.mxu0 0.0
  %4808 = vmatprep.subr.mxu0 0.0
  %4809 = vmatpush1.msra.mxu0 0.0
  %4810 = vmatprep.subr.mxu0 0.0
  %4811 = vmatpush1.msra.mxu0 0.0
  %4812 = vmatprep.subr.mxu0 0.0
  %4813 = vmatpush1.msra.mxu0 0.0
  %4814 = vmatprep.subr.mxu0 0.0
  %4815 = vmatpush1.msra.mxu0 0.0
  %4816 = vmatprep.subr.mxu0 0.0
  %4817 = vmatpush1.msra.mxu0 0.0
  %4818 = vmatprep.subr.mxu0 0.0
  %4819 = vmatpush1.msra.mxu0 0.0
  %4820 = vmatprep.subr.mxu0 0.0
  %4821 = vmatpush1.msra.mxu0 0.0
  %4822 = vmatprep.subr.mxu0 0.0
  %4823 = vmatpush1.msra.mxu0 0.0
  %4824 = vmatprep.mubr.f32.mxu0 0.0
  %4825 = vmatmul.mubr.f32.gmra.mrb[0].mxu0 %v4758
  %v4826 = vpop.f32.mrb[0].mxu0
  %v4827 = vadd.f32 0.0, %v4826
  %v4828 = vpop.f32.mrb[0].mxu0
  %4829 = vdwg.mxu0
  %v4830 = vadd.f32 %v4738, %v4827
  %v4831 = vld [vmem:[%s3472 + $0x2] sm:$0x3]
  %v4832 = vld [vmem:[%s3472 + $0x6] sm:$0x3]
  %v4833 = vld [vmem:[%s4272 + $0x2] sm:$0x3]
  %v4834 = vld [vmem:[%s4272 + $0x6] sm:$0x3]
  %v4835 = vmax.f32 %v4831, %v4832
  %v4836 = vmax.f32 %v4833, %v4834
  %v4837 = vmax.f32 %v4835, %v4836
  %v4838 = vadd.f32 %v4837, %v4287
  %v4839 = vmax.f32 %v4838, 0.0
  %s4840 = scalar_lea.vmem %s5, 384
  %v4841 = vld [vmem:[%s4840] sm:$0xff]
  %v4842 = vld [vmem:[%s4840 + $0x8] sm:$0xff]
  %v4843 = vld [vmem:[%s4840 + $0x10] sm:$0xff]
  %v4844 = vld [vmem:[%s4840 + $0x18] sm:$0xff]
  %v4845 = vld [vmem:[%s4840 + $0x20] sm:$0xff]
  %v4846 = vld [vmem:[%s4840 + $0x28] sm:$0xff]
  %v4847 = vld [vmem:[%s4840 + $0x30] sm:$0xff]
  %v4848 = vld [vmem:[%s4840 + $0x38] sm:$0xff]
  %v4850 = vsel %vm1872, %v4839, 0
  %4852 = vmatprep.subr.mxu0 0.0
  %4853 = vmatpush1.msra.mxu0 %v4841
  %4854 = vmatprep.subr.mxu0 0.0
  %4855 = vmatpush1.msra.mxu0 %v4842
  %4856 = vmatprep.subr.mxu0 0.0
  %4857 = vmatpush1.msra.mxu0 %v4843
  %4858 = vmatprep.subr.mxu0 0.0
  %4859 = vmatpush1.msra.mxu0 %v4844
  %4860 = vmatprep.subr.mxu0 0.0
  %4861 = vmatpush1.msra.mxu0 %v4845
  %4862 = vmatprep.subr.mxu0 0.0
  %4863 = vmatpush1.msra.mxu0 %v4846
  %4864 = vmatprep.subr.mxu0 0.0
  %4865 = vmatpush1.msra.mxu0 %v4847
  %4866 = vmatprep.subr.mxu0 0.0
  %4867 = vmatpush1.msra.mxu0 %v4848
  %4868 = vmatprep.subr.mxu0 0.0
  %4869 = vmatpush1.msra.mxu0 0.0
  %4870 = vmatprep.subr.mxu0 0.0
  %4871 = vmatpush1.msra.mxu0 0.0
  %4872 = vmatprep.subr.mxu0 0.0
  %4873 = vmatpush1.msra.mxu0 0.0
  %4874 = vmatprep.subr.mxu0 0.0
  %4875 = vmatpush1.msra.mxu0 0.0
  %4876 = vmatprep.subr.mxu0 0.0
  %4877 = vmatpush1.msra.mxu0 0.0
  %4878 = vmatprep.subr.mxu0 0.0
  %4879 = vmatpush1.msra.mxu0 0.0
  %4880 = vmatprep.subr.mxu0 0.0
  %4881 = vmatpush1.msra.mxu0 0.0
  %4882 = vmatprep.subr.mxu0 0.0
  %4883 = vmatpush1.msra.mxu0 0.0
  %4884 = vmatprep.subr.mxu0 0.0
  %4885 = vmatpush1.msra.mxu0 0.0
  %4886 = vmatprep.subr.mxu0 0.0
  %4887 = vmatpush1.msra.mxu0 0.0
  %4888 = vmatprep.subr.mxu0 0.0
  %4889 = vmatpush1.msra.mxu0 0.0
  %4890 = vmatprep.subr.mxu0 0.0
  %4891 = vmatpush1.msra.mxu0 0.0
  %4892 = vmatprep.subr.mxu0 0.0
  %4893 = vmatpush1.msra.mxu0 0.0
  %4894 = vmatprep.subr.mxu0 0.0
  %4895 = vmatpush1.msra.mxu0 0.0
  %4896 = vmatprep.subr.mxu0 0.0
  %4897 = vmatpush1.msra.mxu0 0.0
  %4898 = vmatprep.subr.mxu0 0.0
  %4899 = vmatpush1.msra.mxu0 0.0
  %4900 = vmatprep.subr.mxu0 0.0
  %4901 = vmatpush1.msra.mxu0 0.0
  %4902 = vmatprep.subr.mxu0 0.0
  %4903 = vmatpush1.msra.mxu0 0.0
  %4904 = vmatprep.subr.mxu0 0.0
  %4905 = vmatpush1.msra.mxu0 0.0
  %4906 = vmatprep.subr.mxu0 0.0
  %4907 = vmatpush1.msra.mxu0 0.0
  %4908 = vmatprep.subr.mxu0 0.0
  %4909 = vmatpush1.msra.mxu0 0.0
  %4910 = vmatprep.subr.mxu0 0.0
  %4911 = vmatpush1.msra.mxu0 0.0
  %4912 = vmatprep.subr.mxu0 0.0
  %4913 = vmatpush1.msra.mxu0 0.0
  %4914 = vmatprep.subr.mxu0 0.0
  %4915 = vmatpush1.msra.mxu0 0.0
  %4916 = vmatprep.mubr.f32.mxu0 0.0
  %4917 = vmatmul.mubr.f32.gmra.mrb[0].mxu0 %v4850
  %v4918 = vpop.f32.mrb[0].mxu0
  %v4919 = vadd.f32 0.0, %v4918
  %v4920 = vpop.f32.mrb[0].mxu0
  %4921 = vdwg.mxu0
  %v4922 = vadd.f32 %v4830, %v4919
  %v4923 = vld [vmem:[%s3472 + $0xa] sm:$0x3]
  %v4924 = vld [vmem:[%s3472 + $0xe] sm:$0x3]
  %v4925 = vld [vmem:[%s4272 + $0xa] sm:$0x3]
  %v4926 = vld [vmem:[%s4272 + $0xe] sm:$0x3]
  %v4927 = vmax.f32 %v4923, %v4924
  %v4928 = vmax.f32 %v4925, %v4926
  %v4929 = vmax.f32 %v4927, %v4928
  %v4930 = vadd.f32 %v4929, %v4287
  %v4931 = vmax.f32 %v4930, 0.0
  %s4932 = scalar_lea.vmem %s5, 448
  %v4933 = vld [vmem:[%s4932] sm:$0xff]
  %v4934 = vld [vmem:[%s4932 + $0x8] sm:$0xff]
  %v4935 = vld [vmem:[%s4932 + $0x10] sm:$0xff]
  %v4936 = vld [vmem:[%s4932 + $0x18] sm:$0xff]
  %v4937 = vld [vmem:[%s4932 + $0x20] sm:$0xff]
  %v4938 = vld [vmem:[%s4932 + $0x28] sm:$0xff]
  %v4939 = vld [vmem:[%s4932 + $0x30] sm:$0xff]
  %v4940 = vld [vmem:[%s4932 + $0x38] sm:$0xff]
  %v4942 = vsel %vm1872, %v4931, 0
  %4944 = vmatprep.subr.mxu0 0.0
  %4945 = vmatpush1.msra.mxu0 %v4933
  %4946 = vmatprep.subr.mxu0 0.0
  %4947 = vmatpush1.msra.mxu0 %v4934
  %4948 = vmatprep.subr.mxu0 0.0
  %4949 = vmatpush1.msra.mxu0 %v4935
  %4950 = vmatprep.subr.mxu0 0.0
  %4951 = vmatpush1.msra.mxu0 %v4936
  %4952 = vmatprep.subr.mxu0 0.0
  %4953 = vmatpush1.msra.mxu0 %v4937
  %4954 = vmatprep.subr.mxu0 0.0
  %4955 = vmatpush1.msra.mxu0 %v4938
  %4956 = vmatprep.subr.mxu0 0.0
  %4957 = vmatpush1.msra.mxu0 %v4939
  %4958 = vmatprep.subr.mxu0 0.0
  %4959 = vmatpush1.msra.mxu0 %v4940
  %4960 = vmatprep.subr.mxu0 0.0
  %4961 = vmatpush1.msra.mxu0 0.0
  %4962 = vmatprep.subr.mxu0 0.0
  %4963 = vmatpush1.msra.mxu0 0.0
  %4964 = vmatprep.subr.mxu0 0.0
  %4965 = vmatpush1.msra.mxu0 0.0
  %4966 = vmatprep.subr.mxu0 0.0
  %4967 = vmatpush1.msra.mxu0 0.0
  %4968 = vmatprep.subr.mxu0 0.0
  %4969 = vmatpush1.msra.mxu0 0.0
  %4970 = vmatprep.subr.mxu0 0.0
  %4971 = vmatpush1.msra.mxu0 0.0
  %4972 = vmatprep.subr.mxu0 0.0
  %4973 = vmatpush1.msra.mxu0 0.0
  %4974 = vmatprep.subr.mxu0 0.0
  %4975 = vmatpush1.msra.mxu0 0.0
  %4976 = vmatprep.subr.mxu0 0.0
  %4977 = vmatpush1.msra.mxu0 0.0
  %4978 = vmatprep.subr.mxu0 0.0
  %4979 = vmatpush1.msra.mxu0 0.0
  %4980 = vmatprep.subr.mxu0 0.0
  %4981 = vmatpush1.msra.mxu0 0.0
  %4982 = vmatprep.subr.mxu0 0.0
  %4983 = vmatpush1.msra.mxu0 0.0
  %4984 = vmatprep.subr.mxu0 0.0
  %4985 = vmatpush1.msra.mxu0 0.0
  %4986 = vmatprep.subr.mxu0 0.0
  %4987 = vmatpush1.msra.mxu0 0.0
  %4988 = vmatprep.subr.mxu0 0.0
  %4989 = vmatpush1.msra.mxu0 0.0
  %4990 = vmatprep.subr.mxu0 0.0
  %4991 = vmatpush1.msra.mxu0 0.0
  %4992 = vmatprep.subr.mxu0 0.0
  %4993 = vmatpush1.msra.mxu0 0.0
  %4994 = vmatprep.subr.mxu0 0.0
  %4995 = vmatpush1.msra.mxu0 0.0
  %4996 = vmatprep.subr.mxu0 0.0
  %4997 = vmatpush1.msra.mxu0 0.0
  %4998 = vmatprep.subr.mxu0 0.0
  %4999 = vmatpush1.msra.mxu0 0.0
  %5000 = vmatprep.subr.mxu0 0.0
  %5001 = vmatpush1.msra.mxu0 0.0
  %5002 = vmatprep.subr.mxu0 0.0
  %5003 = vmatpush1.msra.mxu0 0.0
  %5004 = vmatprep.subr.mxu0 0.0
  %5005 = vmatpush1.msra.mxu0 0.0
  %5006 = vmatprep.subr.mxu0 0.0
  %5007 = vmatpush1.msra.mxu0 0.0
  %5008 = vmatprep.mubr.f32.mxu0 0.0
  %5009 = vmatmul.mubr.f32.gmra.mrb[0].mxu0 %v4942
  %v5010 = vpop.f32.mrb[0].mxu0
  %v5011 = vadd.f32 0.0, %v5010
  %v5012 = vpop.f32.mrb[0].mxu0
  %5013 = vdwg.mxu0
  %v5014 = vadd.f32 %v4922, %v5011
  %v5015 = vld [vmem:[%s6] sm:$0x1]
  %v5017 = vlaneseq
  %v5018 = vshrl.u32 %v5017, 7
  %v5019 = vsub.s32 0, %v5018
  %v5020 = vrot.slane %v5015, %v5019
  %v5022 = vadd.f32 %v5014, %v5020
  %v5023 = vmax.f32 %v5022, 0.0
  %v5024 = vld [vmem:[%s7] sm:$0x1]
  %v5026 = vlaneseq
  %v5027 = vshrl.u32 %v5026, 7
  %v5028 = vsub.s32 0, %v5027
  %v5029 = vrot.slane %v5024, %v5028
  %v5031 = vmul.f32 %v5023, %v5029
  %vm5032 = vcmask 1041408
  %v5033 = vsel %vm5032, %v5031, 0.0
  %5034 = vadd.xlane.f32.xlu0 %v5033
  %v5035 = vpop.xlane.xlu0 %5034
  %s5036 = sld [smem:[#allocation4]]
  %v5037 = vstv %s5036
  %v5038 = vadd.f32 %v5035, %v5037
  %vm5039 = vcmask 1024
  %5040 = vst.msk [vmem:[%s9] sm:$0x3] %vm5039, %v5038
  // Predicated region
  $region38: #{net_sharing1_forward.1} parent=0 // pred_check
    _
  $region39: #{net_sharing1_forward.1} parent=0 // pred_check_branch
    %5042 = sbr.rel (0) target = $region41
  $region40: #{net_sharing1_forward.1} parent=0 // pred_region
    _
  $region41: #{net_sharing1_forward.1} parent=0 // pred_fallthru
    _
  // Predicated region
  $region42: #{net_sharing1_forward.1} parent=0 // pred_check
    _
  $region43: #{net_sharing1_forward.1} parent=0 // pred_check_branch
    %5044 = sbr.rel (0) target = $region45
  $region44: #{net_sharing1_forward.1} parent=0 // pred_region
    _
  $region45: #{net_sharing1_forward.1} parent=0 // pred_fallthru
    _

</llo_original>
